<compile_context>
chip_gen: v7x
topology: tpu7x:2x2x1
jax: 0.10.0
libtpu: 0.0.40
codegen_flags: <defaults>
</compile_context>

<pallas_src>
import numpy as np
import jax
import jax.numpy as jnp
from jax.experimental import pallas as pl
from jax.experimental.pallas import tpu as pltpu


# ------------------------------ Pallas kernel -------------------------------

def planner_kernel(*refs):
    """Whole Planner forward fused into one kernel.

    Ref order: x, in_scale, in_shift, [L, R, shift_row] x 9 convs, gx, gy, out.
    Activation layout everywhere: (N*H, W*C) with W*C on the lane axis.
    """
    o_ref = refs[-1]
    it = iter(refs[:-1])

    x_ref = next(it)
    in_scale_ref = next(it)
    in_shift_ref = next(it)

    def conv(act, relu):
        # Conv2d (no bias) + folded eval-BatchNorm (+ optional ReLU):
        #   out = sum_dy  L[dy] @ (act @ R[dy])  + shift_row
        l_ref = next(it)
        r_ref = next(it)
        sh_ref = next(it)
        kh = l_ref.shape[0]
        acc = None
        for dy in range(kh):
            t = jnp.dot(act, r_ref[dy], preferred_element_type=jnp.float32)
            term = jnp.dot(l_ref[dy], t, preferred_element_type=jnp.float32)
            acc = term if acc is None else acc + term
        acc = acc + sh_ref[...]
        if relu:
            acc = jnp.maximum(acc, 0.0)
        return acc

    # input BatchNorm2d (eval mode), fused elementwise
    a = x_ref[...] * in_scale_ref[...] + in_shift_ref[...]

    # initial_conv: Conv2d(7x7, stride 2, pad 3) + BN + ReLU
    a = conv(a, relu=True)

    # encoder BlockConv(n_input->dim0, s=2) then decoder BlockConv(dim0->1, s=2)
    for _ in range(2):
        ident = conv(a, relu=False)   # downsample branch: 1x1/s2 conv + BN
        h = conv(a, relu=True)        # 3x3/s2 conv + BN + ReLU
        h = conv(h, relu=True)        # 3x3/s1 conv + BN + ReLU
        h = conv(h, relu=True)        # 3x3/s1 conv + BN + ReLU (Dropout=id, eval)
        a = h + ident                 # residual add

    # spatial soft-argmax over the (N*Hf, Wf) single-channel heatmap
    gx = next(it)[...]                # (1, Wf)
    gy = next(it)[...]                # (Hf, 1)
    hf = gy.shape[0]
    nb = o_ref.shape[0]
    for n in range(nb):
        l = a[n * hf:(n + 1) * hf, :]                        # (Hf, Wf)
        m = jnp.max(jnp.max(l, axis=1, keepdims=True), axis=0, keepdims=True)
        e = jnp.exp(l - m)
        s = jnp.sum(jnp.sum(e, axis=1, keepdims=True), axis=0, keepdims=True)
        w = e / s                                            # softmax over H*W
        sx = jnp.sum(w, axis=0, keepdims=True)               # (1, Wf)
        sy = jnp.sum(w, axis=1, keepdims=True)               # (Hf, 1)
        xc = jnp.sum(sx * gx, axis=1, keepdims=True)         # (1, 1)
        yc = jnp.sum(sy * gy, axis=0, keepdims=True)         # (1, 1)
        o_ref[pl.ds(n, 1), pl.ds(0, 1)] = xc
        o_ref[pl.ds(n, 1), pl.ds(1, 1)] = yc


# ------------------------------ host wrapper --------------------------------

def _full_spec(arr):
    nd = arr.ndim
    return pl.BlockSpec(arr.shape, lambda i, _nd=nd: (0,) * _nd)


def planner_forward(x_nchw, consts):
    n, c, h, w = x_nchw.shape
    # NCHW -> (N*H, W*C) layout (layout plumbing only; tiny)
    x2 = jnp.transpose(x_nchw, (0, 2, 3, 1)).reshape(n * h, w * c)
    args = (x2,) + tuple(consts)
    return pl.pallas_call(
        planner_kernel,
        grid=(1,),
        in_specs=[_full_spec(a) for a in args],
        out_specs=pl.BlockSpec((n, 2), lambda i: (0, 0)),
        out_shape=jax.ShapeDtypeStruct((n, 2), jnp.float32),
        compiler_params=pltpu.CompilerParams(dimension_semantics=("arbitrary",)),
    )(*args)


# -------------------- host-side weight / matrix preparation -----------------

def _conv_matrices(w_hwio, bn_scale, bn_shift, n, hin, win, stride, padding):
    """Build L[dy], R[dy], shift_row for one Conv2d+BN(eval) in (N*H, W*C) layout."""
    w = np.asarray(w_hwio, np.float32)
    scale = np.asarray(bn_scale, np.float32)
    shift = np.asarray(bn_shift, np.float32)
    kh, kw, cin, cout = w.shape
    ho = (hin + 2 * padding - kh) // stride + 1
    wo = (win + 2 * padding - kw) // stride + 1
    wf = w * scale.reshape(1, 1, 1, cout)            # fold BN scale into weights
    # R[dy]: scatter kernel row dy over W (stride + zero padding folded in)
    r = np.zeros((kh, win * cin, wo * cout), np.float32)
    for dy in range(kh):
        for xo in range(wo):
            for dx in range(kw):
                wi = stride * xo + dx - padding
                if 0 <= wi < win:
                    r[dy, wi * cin:(wi + 1) * cin, xo * cout:(xo + 1) * cout] = wf[dy, dx]
    # L[dy]: 0/1 row selection along H per batch image (stride + zero padding)
    lsel = np.zeros((kh, n * ho, n * hin), np.float32)
    for dy in range(kh):
        for b in range(n):
            for y in range(ho):
                hsrc = stride * y + dy - padding
                if 0 <= hsrc < hin:
                    lsel[dy, b * ho + y, b * hin + hsrc] = 1.0
    shift_row = np.tile(shift.reshape(1, cout), (1, wo)).astype(np.float32)
    return lsel, r, shift_row, ho, wo


def prepare_planner(params, n, h, w, cin):
    """Precompute BN-folded selection/weight matrices; returns the flat const list."""
    consts = []
    consts.append(np.tile(np.asarray(params["norm_scale"], np.float32).reshape(1, cin), (1, w)))
    consts.append(np.tile(np.asarray(params["norm_shift"], np.float32).reshape(1, cin), (1, w)))

    def add_conv(wgt, scale, shift, hin, win, stride, padding):
        lsel, r, sr, ho, wo = _conv_matrices(wgt, scale, shift, n, hin, win, stride, padding)
        consts.extend([lsel, r, sr])
        return ho, wo

    hc, wc = h, w
    hc, wc = add_conv(params["init_w"], params["init_scale"], params["init_shift"],
                      hc, wc, 2, 3)
    for bkey in ("block_down", "block_up"):
        p = params[bkey]
        hb, wb = hc, wc                                   # block input size
        add_conv(p["ds_w"], p["ds_scale"], p["ds_shift"], hb, wb, 2, 0)   # downsample
        hc, wc = add_conv(p["w1"], p["s1"], p["b1"], hb, wb, 2, 1)
        hc, wc = add_conv(p["w2"], p["s2"], p["b2"], hc, wc, 1, 1)
        hc, wc = add_conv(p["w3"], p["s3"], p["b3"], hc, wc, 1, 1)
    consts.append(np.linspace(-1.0, 1.0, wc, dtype=np.float32).reshape(1, wc))   # grid_x
    consts.append(np.linspace(-1.0, 1.0, hc, dtype=np.float32).reshape(hc, 1))   # grid_y
    return tuple(jnp.asarray(c) for c in consts)


# --------------------------- deterministic params ---------------------------

def make_bn(key, c):
    k1, k2, k3, k4 = jax.random.split(key, 4)
    gamma = 1.0 + 0.1 * jax.random.normal(k1, (c,), jnp.float32)
    beta = 0.1 * jax.random.normal(k2, (c,), jnp.float32)
    mean = 0.1 * jax.random.normal(k3, (c,), jnp.float32)
    var = 1.0 + 0.1 * jax.random.uniform(k4, (c,), jnp.float32)
    scale = gamma / jnp.sqrt(var + 1e-5)
    shift = beta - mean * scale
    return scale, shift


def make_conv(key, kh, kw, cin, cout):
    fan_in = kh * kw * cin
    return (jax.random.normal(key, (kh, kw, cin, cout), jnp.float32)
            / jnp.sqrt(float(fan_in)))


def make_block_params(key, cin, cout):
    ks = jax.random.split(key, 8)
    p = {}
    p["ds_w"] = make_conv(ks[0], 1, 1, cin, cout)
    p["ds_scale"], p["ds_shift"] = make_bn(ks[1], cout)
    p["w1"] = make_conv(ks[2], 3, 3, cin, cout)
    p["s1"], p["b1"] = make_bn(ks[3], cout)
    p["w2"] = make_conv(ks[4], 3, 3, cout, cout)
    p["s2"], p["b2"] = make_bn(ks[5], cout)
    p["w3"] = make_conv(ks[6], 3, 3, cout, cout)
    p["s3"], p["b3"] = make_bn(ks[7], cout)
    return p


# ----------------------------------- main -----------------------------------

if __name__ == "__main__":
    key = jax.random.PRNGKey(0)
    k_in, k_norm, k_init_w, k_init_bn, k_b1, k_b2 = jax.random.split(key, 6)

    N_INPUT = 4
    DIM_LAYERS = [4]       # must equal n_input for the reference wiring (see NOTE)
    B, H, W = 2, 32, 32    # -> heatmap 4x4 after 3 stride-2 stages

    params = {}
    params["norm_scale"], params["norm_shift"] = make_bn(k_norm, N_INPUT)
    params["init_w"] = make_conv(k_init_w, 7, 7, N_INPUT, DIM_LAYERS[0])
    params["init_scale"], params["init_shift"] = make_bn(k_init_bn, DIM_LAYERS[0])
    params["block_down"] = make_block_params(k_b1, N_INPUT, DIM_LAYERS[0])
    params["block_up"] = make_block_params(k_b2, DIM_LAYERS[0], 1)

    consts = prepare_planner(params, B, H, W, N_INPUT)

    x = jax.random.normal(k_in, (B, N_INPUT, H, W), jnp.float32)   # NCHW input

    fwd = jax.jit(planner_forward)
    out = fwd(x, consts)
    out = jax.block_until_ready(out)
    assert out.shape == (B, 2) and out.dtype == jnp.float32
    assert bool(jnp.all(jnp.isfinite(out)))
    print("KERNEL_OK")
</pallas_src>

<mosaic_0001>
module attributes {stable_mosaic.version = 11 : i64} {
  func.func @planner_kernel(%arg0: i32, %arg1: memref<64x128xf32, #tpu.memory_space<vmem>>, %arg2: memref<1x128xf32, #tpu.memory_space<vmem>>, %arg3: memref<1x128xf32, #tpu.memory_space<vmem>>, %arg4: memref<7x32x64xf32, #tpu.memory_space<vmem>>, %arg5: memref<7x128x64xf32, #tpu.memory_space<vmem>>, %arg6: memref<1x64xf32, #tpu.memory_space<vmem>>, %arg7: memref<1x16x32xf32, #tpu.memory_space<vmem>>, %arg8: memref<1x64x32xf32, #tpu.memory_space<vmem>>, %arg9: memref<1x32xf32, #tpu.memory_space<vmem>>, %arg10: memref<3x16x32xf32, #tpu.memory_space<vmem>>, %arg11: memref<3x64x32xf32, #tpu.memory_space<vmem>>, %arg12: memref<1x32xf32, #tpu.memory_space<vmem>>, %arg13: memref<3x16x16xf32, #tpu.memory_space<vmem>>, %arg14: memref<3x32x32xf32, #tpu.memory_space<vmem>>, %arg15: memref<1x32xf32, #tpu.memory_space<vmem>>, %arg16: memref<3x16x16xf32, #tpu.memory_space<vmem>>, %arg17: memref<3x32x32xf32, #tpu.memory_space<vmem>>, %arg18: memref<1x32xf32, #tpu.memory_space<vmem>>, %arg19: memref<1x8x16xf32, #tpu.memory_space<vmem>>, %arg20: memref<1x32x4xf32, #tpu.memory_space<vmem>>, %arg21: memref<1x4xf32, #tpu.memory_space<vmem>>, %arg22: memref<3x8x16xf32, #tpu.memory_space<vmem>>, %arg23: memref<3x32x4xf32, #tpu.memory_space<vmem>>, %arg24: memref<1x4xf32, #tpu.memory_space<vmem>>, %arg25: memref<3x8x8xf32, #tpu.memory_space<vmem>>, %arg26: memref<3x4x4xf32, #tpu.memory_space<vmem>>, %arg27: memref<1x4xf32, #tpu.memory_space<vmem>>, %arg28: memref<3x8x8xf32, #tpu.memory_space<vmem>>, %arg29: memref<3x4x4xf32, #tpu.memory_space<vmem>>, %arg30: memref<1x4xf32, #tpu.memory_space<vmem>>, %arg31: memref<1x4xf32, #tpu.memory_space<vmem>>, %arg32: memref<4x1xf32, #tpu.memory_space<vmem>>, %arg33: memref<2x2xf32, #tpu.memory_space<vmem>>) attributes {dimension_semantics = [#tpu.dimension_semantics<arbitrary>], iteration_bounds = array<i64: 1>, scalar_prefetch = 0 : i64, scratch_operands = 0 : i64, tpu.core_type = #tpu.core_type<tc>, window_params = [{pipeline_mode = #tpu.pipeline_mode<synchronous>, transform_indices = @transform_0, window_bounds = array<i64: 64, 128>}, {pipeline_mode = #tpu.pipeline_mode<synchronous>, transform_indices = @transform_1, window_bounds = array<i64: 1, 128>}, {pipeline_mode = #tpu.pipeline_mode<synchronous>, transform_indices = @transform_2, window_bounds = array<i64: 1, 128>}, {pipeline_mode = #tpu.pipeline_mode<synchronous>, transform_indices = @transform_3, window_bounds = array<i64: 7, 32, 64>}, {pipeline_mode = #tpu.pipeline_mode<synchronous>, transform_indices = @transform_4, window_bounds = array<i64: 7, 128, 64>}, {pipeline_mode = #tpu.pipeline_mode<synchronous>, transform_indices = @transform_5, window_bounds = array<i64: 1, 64>}, {pipeline_mode = #tpu.pipeline_mode<synchronous>, transform_indices = @transform_6, window_bounds = array<i64: 1, 16, 32>}, {pipeline_mode = #tpu.pipeline_mode<synchronous>, transform_indices = @transform_7, window_bounds = array<i64: 1, 64, 32>}, {pipeline_mode = #tpu.pipeline_mode<synchronous>, transform_indices = @transform_8, window_bounds = array<i64: 1, 32>}, {pipeline_mode = #tpu.pipeline_mode<synchronous>, transform_indices = @transform_9, window_bounds = array<i64: 3, 16, 32>}, {pipeline_mode = #tpu.pipeline_mode<synchronous>, transform_indices = @transform_10, window_bounds = array<i64: 3, 64, 32>}, {pipeline_mode = #tpu.pipeline_mode<synchronous>, transform_indices = @transform_11, window_bounds = array<i64: 1, 32>}, {pipeline_mode = #tpu.pipeline_mode<synchronous>, transform_indices = @transform_12, window_bounds = array<i64: 3, 16, 16>}, {pipeline_mode = #tpu.pipeline_mode<synchronous>, transform_indices = @transform_13, window_bounds = array<i64: 3, 32, 32>}, {pipeline_mode = #tpu.pipeline_mode<synchronous>, transform_indices = @transform_14, window_bounds = array<i64: 1, 32>}, {pipeline_mode = #tpu.pipeline_mode<synchronous>, transform_indices = @transform_15, window_bounds = array<i64: 3, 16, 16>}, {pipeline_mode = #tpu.pipeline_mode<synchronous>, transform_indices = @transform_16, window_bounds = array<i64: 3, 32, 32>}, {pipeline_mode = #tpu.pipeline_mode<synchronous>, transform_indices = @transform_17, window_bounds = array<i64: 1, 32>}, {pipeline_mode = #tpu.pipeline_mode<synchronous>, transform_indices = @transform_18, window_bounds = array<i64: 1, 8, 16>}, {pipeline_mode = #tpu.pipeline_mode<synchronous>, transform_indices = @transform_19, window_bounds = array<i64: 1, 32, 4>}, {pipeline_mode = #tpu.pipeline_mode<synchronous>, transform_indices = @transform_20, window_bounds = array<i64: 1, 4>}, {pipeline_mode = #tpu.pipeline_mode<synchronous>, transform_indices = @transform_21, window_bounds = array<i64: 3, 8, 16>}, {pipeline_mode = #tpu.pipeline_mode<synchronous>, transform_indices = @transform_22, window_bounds = array<i64: 3, 32, 4>}, {pipeline_mode = #tpu.pipeline_mode<synchronous>, transform_indices = @transform_23, window_bounds = array<i64: 1, 4>}, {pipeline_mode = #tpu.pipeline_mode<synchronous>, transform_indices = @transform_24, window_bounds = array<i64: 3, 8, 8>}, {pipeline_mode = #tpu.pipeline_mode<synchronous>, transform_indices = @transform_25, window_bounds = array<i64: 3, 4, 4>}, {pipeline_mode = #tpu.pipeline_mode<synchronous>, transform_indices = @transform_26, window_bounds = array<i64: 1, 4>}, {pipeline_mode = #tpu.pipeline_mode<synchronous>, transform_indices = @transform_27, window_bounds = array<i64: 3, 8, 8>}, {pipeline_mode = #tpu.pipeline_mode<synchronous>, transform_indices = @transform_28, window_bounds = array<i64: 3, 4, 4>}, {pipeline_mode = #tpu.pipeline_mode<synchronous>, transform_indices = @transform_29, window_bounds = array<i64: 1, 4>}, {pipeline_mode = #tpu.pipeline_mode<synchronous>, transform_indices = @transform_30, window_bounds = array<i64: 1, 4>}, {pipeline_mode = #tpu.pipeline_mode<synchronous>, transform_indices = @transform_31, window_bounds = array<i64: 4, 1>}, {pipeline_mode = #tpu.pipeline_mode<synchronous>, transform_indices = @transform_32, window_bounds = array<i64: 2, 2>}]} {
    %c0 = arith.constant 0 : index
    %c0_0 = arith.constant 0 : index
    %0 = vector.load %arg1[%c0, %c0_0] : memref<64x128xf32, #tpu.memory_space<vmem>>, vector<64x128xf32>
    %c0_1 = arith.constant 0 : index
    %c0_2 = arith.constant 0 : index
    %1 = vector.load %arg2[%c0_1, %c0_2] : memref<1x128xf32, #tpu.memory_space<vmem>>, vector<1x128xf32>
    %2 = vector.broadcast %1 : vector<1x128xf32> to vector<64x128xf32>
    %3 = arith.mulf %0, %2 : vector<64x128xf32>
    %c0_3 = arith.constant 0 : index
    %c0_4 = arith.constant 0 : index
    %4 = vector.load %arg3[%c0_3, %c0_4] : memref<1x128xf32, #tpu.memory_space<vmem>>, vector<1x128xf32>
    %5 = vector.broadcast %4 : vector<1x128xf32> to vector<64x128xf32>
    %6 = arith.addf %3, %5 : vector<64x128xf32>
    %c0_5 = arith.constant 0 : index
    %c0_6 = arith.constant 0 : index
    %c0_7 = arith.constant 0 : index
    %7 = vector.load %arg5[%c0_5, %c0_6, %c0_7] : memref<7x128x64xf32, #tpu.memory_space<vmem>>, vector<1x128x64xf32>
    %8 = vector.shape_cast %7 : vector<1x128x64xf32> to vector<128x64xf32>
    %cst = arith.constant dense<0.000000e+00> : vector<64x64xf32>
    %9 = tpu.matmul %6, %8, %cst {dimension_numbers = #tpu.dot_dimension_numbers<[1], [0], [0], [1], [0, 0, 1, 1], [], []>} : vector<64x128xf32>, vector<128x64xf32>, vector<64x64xf32> -> vector<64x64xf32>
    %c0_8 = arith.constant 0 : index
    %c0_9 = arith.constant 0 : index
    %c0_10 = arith.constant 0 : index
    %10 = vector.load %arg4[%c0_8, %c0_9, %c0_10] : memref<7x32x64xf32, #tpu.memory_space<vmem>>, vector<1x32x64xf32>
    %11 = vector.shape_cast %10 : vector<1x32x64xf32> to vector<32x64xf32>
    %cst_11 = arith.constant dense<0.000000e+00> : vector<32x64xf32>
    %12 = tpu.matmul %11, %9, %cst_11 {dimension_numbers = #tpu.dot_dimension_numbers<[1], [0], [0], [1], [0, 0, 1, 1], [], []>} : vector<32x64xf32>, vector<64x64xf32>, vector<32x64xf32> -> vector<32x64xf32>
    %c1 = arith.constant 1 : index
    %c0_12 = arith.constant 0 : index
    %c0_13 = arith.constant 0 : index
    %13 = vector.load %arg5[%c1, %c0_12, %c0_13] : memref<7x128x64xf32, #tpu.memory_space<vmem>>, vector<1x128x64xf32>
    %14 = vector.shape_cast %13 : vector<1x128x64xf32> to vector<128x64xf32>
    %cst_14 = arith.constant dense<0.000000e+00> : vector<64x64xf32>
    %15 = tpu.matmul %6, %14, %cst_14 {dimension_numbers = #tpu.dot_dimension_numbers<[1], [0], [0], [1], [0, 0, 1, 1], [], []>} : vector<64x128xf32>, vector<128x64xf32>, vector<64x64xf32> -> vector<64x64xf32>
    %c1_15 = arith.constant 1 : index
    %c0_16 = arith.constant 0 : index
    %c0_17 = arith.constant 0 : index
    %16 = vector.load %arg4[%c1_15, %c0_16, %c0_17] : memref<7x32x64xf32, #tpu.memory_space<vmem>>, vector<1x32x64xf32>
    %17 = vector.shape_cast %16 : vector<1x32x64xf32> to vector<32x64xf32>
    %cst_18 = arith.constant dense<0.000000e+00> : vector<32x64xf32>
    %18 = tpu.matmul %17, %15, %cst_18 {dimension_numbers = #tpu.dot_dimension_numbers<[1], [0], [0], [1], [0, 0, 1, 1], [], []>} : vector<32x64xf32>, vector<64x64xf32>, vector<32x64xf32> -> vector<32x64xf32>
    %19 = arith.addf %12, %18 : vector<32x64xf32>
    %c2 = arith.constant 2 : index
    %c0_19 = arith.constant 0 : index
    %c0_20 = arith.constant 0 : index
    %20 = vector.load %arg5[%c2, %c0_19, %c0_20] : memref<7x128x64xf32, #tpu.memory_space<vmem>>, vector<1x128x64xf32>
    %21 = vector.shape_cast %20 : vector<1x128x64xf32> to vector<128x64xf32>
    %cst_21 = arith.constant dense<0.000000e+00> : vector<64x64xf32>
    %22 = tpu.matmul %6, %21, %cst_21 {dimension_numbers = #tpu.dot_dimension_numbers<[1], [0], [0], [1], [0, 0, 1, 1], [], []>} : vector<64x128xf32>, vector<128x64xf32>, vector<64x64xf32> -> vector<64x64xf32>
    %c2_22 = arith.constant 2 : index
    %c0_23 = arith.constant 0 : index
    %c0_24 = arith.constant 0 : index
    %23 = vector.load %arg4[%c2_22, %c0_23, %c0_24] : memref<7x32x64xf32, #tpu.memory_space<vmem>>, vector<1x32x64xf32>
    %24 = vector.shape_cast %23 : vector<1x32x64xf32> to vector<32x64xf32>
    %cst_25 = arith.constant dense<0.000000e+00> : vector<32x64xf32>
    %25 = tpu.matmul %24, %22, %cst_25 {dimension_numbers = #tpu.dot_dimension_numbers<[1], [0], [0], [1], [0, 0, 1, 1], [], []>} : vector<32x64xf32>, vector<64x64xf32>, vector<32x64xf32> -> vector<32x64xf32>
    %26 = arith.addf %19, %25 : vector<32x64xf32>
    %c3 = arith.constant 3 : index
    %c0_26 = arith.constant 0 : index
    %c0_27 = arith.constant 0 : index
    %27 = vector.load %arg5[%c3, %c0_26, %c0_27] : memref<7x128x64xf32, #tpu.memory_space<vmem>>, vector<1x128x64xf32>
    %28 = vector.shape_cast %27 : vector<1x128x64xf32> to vector<128x64xf32>
    %cst_28 = arith.constant dense<0.000000e+00> : vector<64x64xf32>
    %29 = tpu.matmul %6, %28, %cst_28 {dimension_numbers = #tpu.dot_dimension_numbers<[1], [0], [0], [1], [0, 0, 1, 1], [], []>} : vector<64x128xf32>, vector<128x64xf32>, vector<64x64xf32> -> vector<64x64xf32>
    %c3_29 = arith.constant 3 : index
    %c0_30 = arith.constant 0 : index
    %c0_31 = arith.constant 0 : index
    %30 = vector.load %arg4[%c3_29, %c0_30, %c0_31] : memref<7x32x64xf32, #tpu.memory_space<vmem>>, vector<1x32x64xf32>
    %31 = vector.shape_cast %30 : vector<1x32x64xf32> to vector<32x64xf32>
    %cst_32 = arith.constant dense<0.000000e+00> : vector<32x64xf32>
    %32 = tpu.matmul %31, %29, %cst_32 {dimension_numbers = #tpu.dot_dimension_numbers<[1], [0], [0], [1], [0, 0, 1, 1], [], []>} : vector<32x64xf32>, vector<64x64xf32>, vector<32x64xf32> -> vector<32x64xf32>
    %33 = arith.addf %26, %32 : vector<32x64xf32>
    %c4 = arith.constant 4 : index
    %c0_33 = arith.constant 0 : index
    %c0_34 = arith.constant 0 : index
    %34 = vector.load %arg5[%c4, %c0_33, %c0_34] : memref<7x128x64xf32, #tpu.memory_space<vmem>>, vector<1x128x64xf32>
    %35 = vector.shape_cast %34 : vector<1x128x64xf32> to vector<128x64xf32>
    %cst_35 = arith.constant dense<0.000000e+00> : vector<64x64xf32>
    %36 = tpu.matmul %6, %35, %cst_35 {dimension_numbers = #tpu.dot_dimension_numbers<[1], [0], [0], [1], [0, 0, 1, 1], [], []>} : vector<64x128xf32>, vector<128x64xf32>, vector<64x64xf32> -> vector<64x64xf32>
    %c4_36 = arith.constant 4 : index
    %c0_37 = arith.constant 0 : index
    %c0_38 = arith.constant 0 : index
    %37 = vector.load %arg4[%c4_36, %c0_37, %c0_38] : memref<7x32x64xf32, #tpu.memory_space<vmem>>, vector<1x32x64xf32>
    %38 = vector.shape_cast %37 : vector<1x32x64xf32> to vector<32x64xf32>
    %cst_39 = arith.constant dense<0.000000e+00> : vector<32x64xf32>
    %39 = tpu.matmul %38, %36, %cst_39 {dimension_numbers = #tpu.dot_dimension_numbers<[1], [0], [0], [1], [0, 0, 1, 1], [], []>} : vector<32x64xf32>, vector<64x64xf32>, vector<32x64xf32> -> vector<32x64xf32>
    %40 = arith.addf %33, %39 : vector<32x64xf32>
    %c5 = arith.constant 5 : index
    %c0_40 = arith.constant 0 : index
    %c0_41 = arith.constant 0 : index
    %41 = vector.load %arg5[%c5, %c0_40, %c0_41] : memref<7x128x64xf32, #tpu.memory_space<vmem>>, vector<1x128x64xf32>
    %42 = vector.shape_cast %41 : vector<1x128x64xf32> to vector<128x64xf32>
    %cst_42 = arith.constant dense<0.000000e+00> : vector<64x64xf32>
    %43 = tpu.matmul %6, %42, %cst_42 {dimension_numbers = #tpu.dot_dimension_numbers<[1], [0], [0], [1], [0, 0, 1, 1], [], []>} : vector<64x128xf32>, vector<128x64xf32>, vector<64x64xf32> -> vector<64x64xf32>
    %c5_43 = arith.constant 5 : index
    %c0_44 = arith.constant 0 : index
    %c0_45 = arith.constant 0 : index
    %44 = vector.load %arg4[%c5_43, %c0_44, %c0_45] : memref<7x32x64xf32, #tpu.memory_space<vmem>>, vector<1x32x64xf32>
    %45 = vector.shape_cast %44 : vector<1x32x64xf32> to vector<32x64xf32>
    %cst_46 = arith.constant dense<0.000000e+00> : vector<32x64xf32>
    %46 = tpu.matmul %45, %43, %cst_46 {dimension_numbers = #tpu.dot_dimension_numbers<[1], [0], [0], [1], [0, 0, 1, 1], [], []>} : vector<32x64xf32>, vector<64x64xf32>, vector<32x64xf32> -> vector<32x64xf32>
    %47 = arith.addf %40, %46 : vector<32x64xf32>
    %c6 = arith.constant 6 : index
    %c0_47 = arith.constant 0 : index
    %c0_48 = arith.constant 0 : index
    %48 = vector.load %arg5[%c6, %c0_47, %c0_48] : memref<7x128x64xf32, #tpu.memory_space<vmem>>, vector<1x128x64xf32>
    %49 = vector.shape_cast %48 : vector<1x128x64xf32> to vector<128x64xf32>
    %cst_49 = arith.constant dense<0.000000e+00> : vector<64x64xf32>
    %50 = tpu.matmul %6, %49, %cst_49 {dimension_numbers = #tpu.dot_dimension_numbers<[1], [0], [0], [1], [0, 0, 1, 1], [], []>} : vector<64x128xf32>, vector<128x64xf32>, vector<64x64xf32> -> vector<64x64xf32>
    %c6_50 = arith.constant 6 : index
    %c0_51 = arith.constant 0 : index
    %c0_52 = arith.constant 0 : index
    %51 = vector.load %arg4[%c6_50, %c0_51, %c0_52] : memref<7x32x64xf32, #tpu.memory_space<vmem>>, vector<1x32x64xf32>
    %52 = vector.shape_cast %51 : vector<1x32x64xf32> to vector<32x64xf32>
    %cst_53 = arith.constant dense<0.000000e+00> : vector<32x64xf32>
    %53 = tpu.matmul %52, %50, %cst_53 {dimension_numbers = #tpu.dot_dimension_numbers<[1], [0], [0], [1], [0, 0, 1, 1], [], []>} : vector<32x64xf32>, vector<64x64xf32>, vector<32x64xf32> -> vector<32x64xf32>
    %54 = arith.addf %47, %53 : vector<32x64xf32>
    %c0_54 = arith.constant 0 : index
    %c0_55 = arith.constant 0 : index
    %55 = vector.load %arg6[%c0_54, %c0_55] : memref<1x64xf32, #tpu.memory_space<vmem>>, vector<1x64xf32>
    %56 = vector.broadcast %55 : vector<1x64xf32> to vector<32x64xf32>
    %57 = arith.addf %54, %56 : vector<32x64xf32>
    %cst_56 = arith.constant 0.000000e+00 : f32
    %58 = vector.broadcast %cst_56 : f32 to vector<32x64xf32>
    %59 = arith.maximumf %57, %58 : vector<32x64xf32>
    %c0_57 = arith.constant 0 : index
    %c0_58 = arith.constant 0 : index
    %c0_59 = arith.constant 0 : index
    %60 = vector.load %arg8[%c0_57, %c0_58, %c0_59] : memref<1x64x32xf32, #tpu.memory_space<vmem>>, vector<1x64x32xf32>
    %61 = vector.shape_cast %60 : vector<1x64x32xf32> to vector<64x32xf32>
    %cst_60 = arith.constant dense<0.000000e+00> : vector<32x32xf32>
    %62 = tpu.matmul %59, %61, %cst_60 {dimension_numbers = #tpu.dot_dimension_numbers<[1], [0], [0], [1], [0, 0, 1, 1], [], []>} : vector<32x64xf32>, vector<64x32xf32>, vector<32x32xf32> -> vector<32x32xf32>
    %c0_61 = arith.constant 0 : index
    %c0_62 = arith.constant 0 : index
    %c0_63 = arith.constant 0 : index
    %63 = vector.load %arg7[%c0_61, %c0_62, %c0_63] : memref<1x16x32xf32, #tpu.memory_space<vmem>>, vector<1x16x32xf32>
    %64 = vector.shape_cast %63 : vector<1x16x32xf32> to vector<16x32xf32>
    %cst_64 = arith.constant dense<0.000000e+00> : vector<16x32xf32>
    %65 = tpu.matmul %64, %62, %cst_64 {dimension_numbers = #tpu.dot_dimension_numbers<[1], [0], [0], [1], [0, 0, 1, 1], [], []>} : vector<16x32xf32>, vector<32x32xf32>, vector<16x32xf32> -> vector<16x32xf32>
    %c0_65 = arith.constant 0 : index
    %c0_66 = arith.constant 0 : index
    %66 = vector.load %arg9[%c0_65, %c0_66] : memref<1x32xf32, #tpu.memory_space<vmem>>, vector<1x32xf32>
    %67 = vector.broadcast %66 : vector<1x32xf32> to vector<16x32xf32>
    %68 = arith.addf %65, %67 : vector<16x32xf32>
    %c0_67 = arith.constant 0 : index
    %c0_68 = arith.constant 0 : index
    %c0_69 = arith.constant 0 : index
    %69 = vector.load %arg11[%c0_67, %c0_68, %c0_69] : memref<3x64x32xf32, #tpu.memory_space<vmem>>, vector<1x64x32xf32>
    %70 = vector.shape_cast %69 : vector<1x64x32xf32> to vector<64x32xf32>
    %cst_70 = arith.constant dense<0.000000e+00> : vector<32x32xf32>
    %71 = tpu.matmul %59, %70, %cst_70 {dimension_numbers = #tpu.dot_dimension_numbers<[1], [0], [0], [1], [0, 0, 1, 1], [], []>} : vector<32x64xf32>, vector<64x32xf32>, vector<32x32xf32> -> vector<32x32xf32>
    %c0_71 = arith.constant 0 : index
    %c0_72 = arith.constant 0 : index
    %c0_73 = arith.constant 0 : index
    %72 = vector.load %arg10[%c0_71, %c0_72, %c0_73] : memref<3x16x32xf32, #tpu.memory_space<vmem>>, vector<1x16x32xf32>
    %73 = vector.shape_cast %72 : vector<1x16x32xf32> to vector<16x32xf32>
    %cst_74 = arith.constant dense<0.000000e+00> : vector<16x32xf32>
    %74 = tpu.matmul %73, %71, %cst_74 {dimension_numbers = #tpu.dot_dimension_numbers<[1], [0], [0], [1], [0, 0, 1, 1], [], []>} : vector<16x32xf32>, vector<32x32xf32>, vector<16x32xf32> -> vector<16x32xf32>
    %c1_75 = arith.constant 1 : index
    %c0_76 = arith.constant 0 : index
    %c0_77 = arith.constant 0 : index
    %75 = vector.load %arg11[%c1_75, %c0_76, %c0_77] : memref<3x64x32xf32, #tpu.memory_space<vmem>>, vector<1x64x32xf32>
    %76 = vector.shape_cast %75 : vector<1x64x32xf32> to vector<64x32xf32>
    %cst_78 = arith.constant dense<0.000000e+00> : vector<32x32xf32>
    %77 = tpu.matmul %59, %76, %cst_78 {dimension_numbers = #tpu.dot_dimension_numbers<[1], [0], [0], [1], [0, 0, 1, 1], [], []>} : vector<32x64xf32>, vector<64x32xf32>, vector<32x32xf32> -> vector<32x32xf32>
    %c1_79 = arith.constant 1 : index
    %c0_80 = arith.constant 0 : index
    %c0_81 = arith.constant 0 : index
    %78 = vector.load %arg10[%c1_79, %c0_80, %c0_81] : memref<3x16x32xf32, #tpu.memory_space<vmem>>, vector<1x16x32xf32>
    %79 = vector.shape_cast %78 : vector<1x16x32xf32> to vector<16x32xf32>
    %cst_82 = arith.constant dense<0.000000e+00> : vector<16x32xf32>
    %80 = tpu.matmul %79, %77, %cst_82 {dimension_numbers = #tpu.dot_dimension_numbers<[1], [0], [0], [1], [0, 0, 1, 1], [], []>} : vector<16x32xf32>, vector<32x32xf32>, vector<16x32xf32> -> vector<16x32xf32>
    %81 = arith.addf %74, %80 : vector<16x32xf32>
    %c2_83 = arith.constant 2 : index
    %c0_84 = arith.constant 0 : index
    %c0_85 = arith.constant 0 : index
    %82 = vector.load %arg11[%c2_83, %c0_84, %c0_85] : memref<3x64x32xf32, #tpu.memory_space<vmem>>, vector<1x64x32xf32>
    %83 = vector.shape_cast %82 : vector<1x64x32xf32> to vector<64x32xf32>
    %cst_86 = arith.constant dense<0.000000e+00> : vector<32x32xf32>
    %84 = tpu.matmul %59, %83, %cst_86 {dimension_numbers = #tpu.dot_dimension_numbers<[1], [0], [0], [1], [0, 0, 1, 1], [], []>} : vector<32x64xf32>, vector<64x32xf32>, vector<32x32xf32> -> vector<32x32xf32>
    %c2_87 = arith.constant 2 : index
    %c0_88 = arith.constant 0 : index
    %c0_89 = arith.constant 0 : index
    %85 = vector.load %arg10[%c2_87, %c0_88, %c0_89] : memref<3x16x32xf32, #tpu.memory_space<vmem>>, vector<1x16x32xf32>
    %86 = vector.shape_cast %85 : vector<1x16x32xf32> to vector<16x32xf32>
    %cst_90 = arith.constant dense<0.000000e+00> : vector<16x32xf32>
    %87 = tpu.matmul %86, %84, %cst_90 {dimension_numbers = #tpu.dot_dimension_numbers<[1], [0], [0], [1], [0, 0, 1, 1], [], []>} : vector<16x32xf32>, vector<32x32xf32>, vector<16x32xf32> -> vector<16x32xf32>
    %88 = arith.addf %81, %87 : vector<16x32xf32>
    %c0_91 = arith.constant 0 : index
    %c0_92 = arith.constant 0 : index
    %89 = vector.load %arg12[%c0_91, %c0_92] : memref<1x32xf32, #tpu.memory_space<vmem>>, vector<1x32xf32>
    %90 = vector.broadcast %89 : vector<1x32xf32> to vector<16x32xf32>
    %91 = arith.addf %88, %90 : vector<16x32xf32>
    %cst_93 = arith.constant 0.000000e+00 : f32
    %92 = vector.broadcast %cst_93 : f32 to vector<16x32xf32>
    %93 = arith.maximumf %91, %92 : vector<16x32xf32>
    %c0_94 = arith.constant 0 : index
    %c0_95 = arith.constant 0 : index
    %c0_96 = arith.constant 0 : index
    %94 = vector.load %arg14[%c0_94, %c0_95, %c0_96] : memref<3x32x32xf32, #tpu.memory_space<vmem>>, vector<1x32x32xf32>
    %95 = vector.shape_cast %94 : vector<1x32x32xf32> to vector<32x32xf32>
    %cst_97 = arith.constant dense<0.000000e+00> : vector<16x32xf32>
    %96 = tpu.matmul %93, %95, %cst_97 {dimension_numbers = #tpu.dot_dimension_numbers<[1], [0], [0], [1], [0, 0, 1, 1], [], []>} : vector<16x32xf32>, vector<32x32xf32>, vector<16x32xf32> -> vector<16x32xf32>
    %c0_98 = arith.constant 0 : index
    %c0_99 = arith.constant 0 : index
    %c0_100 = arith.constant 0 : index
    %97 = vector.load %arg13[%c0_98, %c0_99, %c0_100] : memref<3x16x16xf32, #tpu.memory_space<vmem>>, vector<1x16x16xf32>
    %98 = vector.shape_cast %97 : vector<1x16x16xf32> to vector<16x16xf32>
    %cst_101 = arith.constant dense<0.000000e+00> : vector<16x32xf32>
    %99 = tpu.matmul %98, %96, %cst_101 {dimension_numbers = #tpu.dot_dimension_numbers<[1], [0], [0], [1], [0, 0, 1, 1], [], []>} : vector<16x16xf32>, vector<16x32xf32>, vector<16x32xf32> -> vector<16x32xf32>
    %c1_102 = arith.constant 1 : index
    %c0_103 = arith.constant 0 : index
    %c0_104 = arith.constant 0 : index
    %100 = vector.load %arg14[%c1_102, %c0_103, %c0_104] : memref<3x32x32xf32, #tpu.memory_space<vmem>>, vector<1x32x32xf32>
    %101 = vector.shape_cast %100 : vector<1x32x32xf32> to vector<32x32xf32>
    %cst_105 = arith.constant dense<0.000000e+00> : vector<16x32xf32>
    %102 = tpu.matmul %93, %101, %cst_105 {dimension_numbers = #tpu.dot_dimension_numbers<[1], [0], [0], [1], [0, 0, 1, 1], [], []>} : vector<16x32xf32>, vector<32x32xf32>, vector<16x32xf32> -> vector<16x32xf32>
    %c1_106 = arith.constant 1 : index
    %c0_107 = arith.constant 0 : index
    %c0_108 = arith.constant 0 : index
    %103 = vector.load %arg13[%c1_106, %c0_107, %c0_108] : memref<3x16x16xf32, #tpu.memory_space<vmem>>, vector<1x16x16xf32>
    %104 = vector.shape_cast %103 : vector<1x16x16xf32> to vector<16x16xf32>
    %cst_109 = arith.constant dense<0.000000e+00> : vector<16x32xf32>
    %105 = tpu.matmul %104, %102, %cst_109 {dimension_numbers = #tpu.dot_dimension_numbers<[1], [0], [0], [1], [0, 0, 1, 1], [], []>} : vector<16x16xf32>, vector<16x32xf32>, vector<16x32xf32> -> vector<16x32xf32>
    %106 = arith.addf %99, %105 : vector<16x32xf32>
    %c2_110 = arith.constant 2 : index
    %c0_111 = arith.constant 0 : index
    %c0_112 = arith.constant 0 : index
    %107 = vector.load %arg14[%c2_110, %c0_111, %c0_112] : memref<3x32x32xf32, #tpu.memory_space<vmem>>, vector<1x32x32xf32>
    %108 = vector.shape_cast %107 : vector<1x32x32xf32> to vector<32x32xf32>
    %cst_113 = arith.constant dense<0.000000e+00> : vector<16x32xf32>
    %109 = tpu.matmul %93, %108, %cst_113 {dimension_numbers = #tpu.dot_dimension_numbers<[1], [0], [0], [1], [0, 0, 1, 1], [], []>} : vector<16x32xf32>, vector<32x32xf32>, vector<16x32xf32> -> vector<16x32xf32>
    %c2_114 = arith.constant 2 : index
    %c0_115 = arith.constant 0 : index
    %c0_116 = arith.constant 0 : index
    %110 = vector.load %arg13[%c2_114, %c0_115, %c0_116] : memref<3x16x16xf32, #tpu.memory_space<vmem>>, vector<1x16x16xf32>
    %111 = vector.shape_cast %110 : vector<1x16x16xf32> to vector<16x16xf32>
    %cst_117 = arith.constant dense<0.000000e+00> : vector<16x32xf32>
    %112 = tpu.matmul %111, %109, %cst_117 {dimension_numbers = #tpu.dot_dimension_numbers<[1], [0], [0], [1], [0, 0, 1, 1], [], []>} : vector<16x16xf32>, vector<16x32xf32>, vector<16x32xf32> -> vector<16x32xf32>
    %113 = arith.addf %106, %112 : vector<16x32xf32>
    %c0_118 = arith.constant 0 : index
    %c0_119 = arith.constant 0 : index
    %114 = vector.load %arg15[%c0_118, %c0_119] : memref<1x32xf32, #tpu.memory_space<vmem>>, vector<1x32xf32>
    %115 = vector.broadcast %114 : vector<1x32xf32> to vector<16x32xf32>
    %116 = arith.addf %113, %115 : vector<16x32xf32>
    %cst_120 = arith.constant 0.000000e+00 : f32
    %117 = vector.broadcast %cst_120 : f32 to vector<16x32xf32>
    %118 = arith.maximumf %116, %117 : vector<16x32xf32>
    %c0_121 = arith.constant 0 : index
    %c0_122 = arith.constant 0 : index
    %c0_123 = arith.constant 0 : index
    %119 = vector.load %arg17[%c0_121, %c0_122, %c0_123] : memref<3x32x32xf32, #tpu.memory_space<vmem>>, vector<1x32x32xf32>
    %120 = vector.shape_cast %119 : vector<1x32x32xf32> to vector<32x32xf32>
    %cst_124 = arith.constant dense<0.000000e+00> : vector<16x32xf32>
    %121 = tpu.matmul %118, %120, %cst_124 {dimension_numbers = #tpu.dot_dimension_numbers<[1], [0], [0], [1], [0, 0, 1, 1], [], []>} : vector<16x32xf32>, vector<32x32xf32>, vector<16x32xf32> -> vector<16x32xf32>
    %c0_125 = arith.constant 0 : index
    %c0_126 = arith.constant 0 : index
    %c0_127 = arith.constant 0 : index
    %122 = vector.load %arg16[%c0_125, %c0_126, %c0_127] : memref<3x16x16xf32, #tpu.memory_space<vmem>>, vector<1x16x16xf32>
    %123 = vector.shape_cast %122 : vector<1x16x16xf32> to vector<16x16xf32>
    %cst_128 = arith.constant dense<0.000000e+00> : vector<16x32xf32>
    %124 = tpu.matmul %123, %121, %cst_128 {dimension_numbers = #tpu.dot_dimension_numbers<[1], [0], [0], [1], [0, 0, 1, 1], [], []>} : vector<16x16xf32>, vector<16x32xf32>, vector<16x32xf32> -> vector<16x32xf32>
    %c1_129 = arith.constant 1 : index
    %c0_130 = arith.constant 0 : index
    %c0_131 = arith.constant 0 : index
    %125 = vector.load %arg17[%c1_129, %c0_130, %c0_131] : memref<3x32x32xf32, #tpu.memory_space<vmem>>, vector<1x32x32xf32>
    %126 = vector.shape_cast %125 : vector<1x32x32xf32> to vector<32x32xf32>
    %cst_132 = arith.constant dense<0.000000e+00> : vector<16x32xf32>
    %127 = tpu.matmul %118, %126, %cst_132 {dimension_numbers = #tpu.dot_dimension_numbers<[1], [0], [0], [1], [0, 0, 1, 1], [], []>} : vector<16x32xf32>, vector<32x32xf32>, vector<16x32xf32> -> vector<16x32xf32>
    %c1_133 = arith.constant 1 : index
    %c0_134 = arith.constant 0 : index
    %c0_135 = arith.constant 0 : index
    %128 = vector.load %arg16[%c1_133, %c0_134, %c0_135] : memref<3x16x16xf32, #tpu.memory_space<vmem>>, vector<1x16x16xf32>
    %129 = vector.shape_cast %128 : vector<1x16x16xf32> to vector<16x16xf32>
    %cst_136 = arith.constant dense<0.000000e+00> : vector<16x32xf32>
    %130 = tpu.matmul %129, %127, %cst_136 {dimension_numbers = #tpu.dot_dimension_numbers<[1], [0], [0], [1], [0, 0, 1, 1], [], []>} : vector<16x16xf32>, vector<16x32xf32>, vector<16x32xf32> -> vector<16x32xf32>
    %131 = arith.addf %124, %130 : vector<16x32xf32>
    %c2_137 = arith.constant 2 : index
    %c0_138 = arith.constant 0 : index
    %c0_139 = arith.constant 0 : index
    %132 = vector.load %arg17[%c2_137, %c0_138, %c0_139] : memref<3x32x32xf32, #tpu.memory_space<vmem>>, vector<1x32x32xf32>
    %133 = vector.shape_cast %132 : vector<1x32x32xf32> to vector<32x32xf32>
    %cst_140 = arith.constant dense<0.000000e+00> : vector<16x32xf32>
    %134 = tpu.matmul %118, %133, %cst_140 {dimension_numbers = #tpu.dot_dimension_numbers<[1], [0], [0], [1], [0, 0, 1, 1], [], []>} : vector<16x32xf32>, vector<32x32xf32>, vector<16x32xf32> -> vector<16x32xf32>
    %c2_141 = arith.constant 2 : index
    %c0_142 = arith.constant 0 : index
    %c0_143 = arith.constant 0 : index
    %135 = vector.load %arg16[%c2_141, %c0_142, %c0_143] : memref<3x16x16xf32, #tpu.memory_space<vmem>>, vector<1x16x16xf32>
    %136 = vector.shape_cast %135 : vector<1x16x16xf32> to vector<16x16xf32>
    %cst_144 = arith.constant dense<0.000000e+00> : vector<16x32xf32>
    %137 = tpu.matmul %136, %134, %cst_144 {dimension_numbers = #tpu.dot_dimension_numbers<[1], [0], [0], [1], [0, 0, 1, 1], [], []>} : vector<16x16xf32>, vector<16x32xf32>, vector<16x32xf32> -> vector<16x32xf32>
    %138 = arith.addf %131, %137 : vector<16x32xf32>
    %c0_145 = arith.constant 0 : index
    %c0_146 = arith.constant 0 : index
    %139 = vector.load %arg18[%c0_145, %c0_146] : memref<1x32xf32, #tpu.memory_space<vmem>>, vector<1x32xf32>
    %140 = vector.broadcast %139 : vector<1x32xf32> to vector<16x32xf32>
    %141 = arith.addf %138, %140 : vector<16x32xf32>
    %cst_147 = arith.constant 0.000000e+00 : f32
    %142 = vector.broadcast %cst_147 : f32 to vector<16x32xf32>
    %143 = arith.maximumf %141, %142 : vector<16x32xf32>
    %144 = arith.addf %143, %68 : vector<16x32xf32>
    %c0_148 = arith.constant 0 : index
    %c0_149 = arith.constant 0 : index
    %c0_150 = arith.constant 0 : index
    %145 = vector.load %arg20[%c0_148, %c0_149, %c0_150] : memref<1x32x4xf32, #tpu.memory_space<vmem>>, vector<1x32x4xf32>
    %146 = vector.shape_cast %145 : vector<1x32x4xf32> to vector<32x4xf32>
    %cst_151 = arith.constant dense<0.000000e+00> : vector<16x4xf32>
    %147 = tpu.matmul %144, %146, %cst_151 {dimension_numbers = #tpu.dot_dimension_numbers<[1], [0], [0], [1], [0, 0, 1, 1], [], []>} : vector<16x32xf32>, vector<32x4xf32>, vector<16x4xf32> -> vector<16x4xf32>
    %c0_152 = arith.constant 0 : index
    %c0_153 = arith.constant 0 : index
    %c0_154 = arith.constant 0 : index
    %148 = vector.load %arg19[%c0_152, %c0_153, %c0_154] : memref<1x8x16xf32, #tpu.memory_space<vmem>>, vector<1x8x16xf32>
    %149 = vector.shape_cast %148 : vector<1x8x16xf32> to vector<8x16xf32>
    %cst_155 = arith.constant dense<0.000000e+00> : vector<8x4xf32>
    %150 = tpu.matmul %149, %147, %cst_155 {dimension_numbers = #tpu.dot_dimension_numbers<[1], [0], [0], [1], [0, 0, 1, 1], [], []>} : vector<8x16xf32>, vector<16x4xf32>, vector<8x4xf32> -> vector<8x4xf32>
    %c0_156 = arith.constant 0 : index
    %c0_157 = arith.constant 0 : index
    %151 = vector.load %arg21[%c0_156, %c0_157] : memref<1x4xf32, #tpu.memory_space<vmem>>, vector<1x4xf32>
    %152 = vector.broadcast %151 : vector<1x4xf32> to vector<8x4xf32>
    %153 = arith.addf %150, %152 : vector<8x4xf32>
    %c0_158 = arith.constant 0 : index
    %c0_159 = arith.constant 0 : index
    %c0_160 = arith.constant 0 : index
    %154 = vector.load %arg23[%c0_158, %c0_159, %c0_160] : memref<3x32x4xf32, #tpu.memory_space<vmem>>, vector<1x32x4xf32>
    %155 = vector.shape_cast %154 : vector<1x32x4xf32> to vector<32x4xf32>
    %cst_161 = arith.constant dense<0.000000e+00> : vector<16x4xf32>
    %156 = tpu.matmul %144, %155, %cst_161 {dimension_numbers = #tpu.dot_dimension_numbers<[1], [0], [0], [1], [0, 0, 1, 1], [], []>} : vector<16x32xf32>, vector<32x4xf32>, vector<16x4xf32> -> vector<16x4xf32>
    %c0_162 = arith.constant 0 : index
    %c0_163 = arith.constant 0 : index
    %c0_164 = arith.constant 0 : index
    %157 = vector.load %arg22[%c0_162, %c0_163, %c0_164] : memref<3x8x16xf32, #tpu.memory_space<vmem>>, vector<1x8x16xf32>
    %158 = vector.shape_cast %157 : vector<1x8x16xf32> to vector<8x16xf32>
    %cst_165 = arith.constant dense<0.000000e+00> : vector<8x4xf32>
    %159 = tpu.matmul %158, %156, %cst_165 {dimension_numbers = #tpu.dot_dimension_numbers<[1], [0], [0], [1], [0, 0, 1, 1], [], []>} : vector<8x16xf32>, vector<16x4xf32>, vector<8x4xf32> -> vector<8x4xf32>
    %c1_166 = arith.constant 1 : index
    %c0_167 = arith.constant 0 : index
    %c0_168 = arith.constant 0 : index
    %160 = vector.load %arg23[%c1_166, %c0_167, %c0_168] : memref<3x32x4xf32, #tpu.memory_space<vmem>>, vector<1x32x4xf32>
    %161 = vector.shape_cast %160 : vector<1x32x4xf32> to vector<32x4xf32>
    %cst_169 = arith.constant dense<0.000000e+00> : vector<16x4xf32>
    %162 = tpu.matmul %144, %161, %cst_169 {dimension_numbers = #tpu.dot_dimension_numbers<[1], [0], [0], [1], [0, 0, 1, 1], [], []>} : vector<16x32xf32>, vector<32x4xf32>, vector<16x4xf32> -> vector<16x4xf32>
    %c1_170 = arith.constant 1 : index
    %c0_171 = arith.constant 0 : index
    %c0_172 = arith.constant 0 : index
    %163 = vector.load %arg22[%c1_170, %c0_171, %c0_172] : memref<3x8x16xf32, #tpu.memory_space<vmem>>, vector<1x8x16xf32>
    %164 = vector.shape_cast %163 : vector<1x8x16xf32> to vector<8x16xf32>
    %cst_173 = arith.constant dense<0.000000e+00> : vector<8x4xf32>
    %165 = tpu.matmul %164, %162, %cst_173 {dimension_numbers = #tpu.dot_dimension_numbers<[1], [0], [0], [1], [0, 0, 1, 1], [], []>} : vector<8x16xf32>, vector<16x4xf32>, vector<8x4xf32> -> vector<8x4xf32>
    %166 = arith.addf %159, %165 : vector<8x4xf32>
    %c2_174 = arith.constant 2 : index
    %c0_175 = arith.constant 0 : index
    %c0_176 = arith.constant 0 : index
    %167 = vector.load %arg23[%c2_174, %c0_175, %c0_176] : memref<3x32x4xf32, #tpu.memory_space<vmem>>, vector<1x32x4xf32>
    %168 = vector.shape_cast %167 : vector<1x32x4xf32> to vector<32x4xf32>
    %cst_177 = arith.constant dense<0.000000e+00> : vector<16x4xf32>
    %169 = tpu.matmul %144, %168, %cst_177 {dimension_numbers = #tpu.dot_dimension_numbers<[1], [0], [0], [1], [0, 0, 1, 1], [], []>} : vector<16x32xf32>, vector<32x4xf32>, vector<16x4xf32> -> vector<16x4xf32>
    %c2_178 = arith.constant 2 : index
    %c0_179 = arith.constant 0 : index
    %c0_180 = arith.constant 0 : index
    %170 = vector.load %arg22[%c2_178, %c0_179, %c0_180] : memref<3x8x16xf32, #tpu.memory_space<vmem>>, vector<1x8x16xf32>
    %171 = vector.shape_cast %170 : vector<1x8x16xf32> to vector<8x16xf32>
    %cst_181 = arith.constant dense<0.000000e+00> : vector<8x4xf32>
    %172 = tpu.matmul %171, %169, %cst_181 {dimension_numbers = #tpu.dot_dimension_numbers<[1], [0], [0], [1], [0, 0, 1, 1], [], []>} : vector<8x16xf32>, vector<16x4xf32>, vector<8x4xf32> -> vector<8x4xf32>
    %173 = arith.addf %166, %172 : vector<8x4xf32>
    %c0_182 = arith.constant 0 : index
    %c0_183 = arith.constant 0 : index
    %174 = vector.load %arg24[%c0_182, %c0_183] : memref<1x4xf32, #tpu.memory_space<vmem>>, vector<1x4xf32>
    %175 = vector.broadcast %174 : vector<1x4xf32> to vector<8x4xf32>
    %176 = arith.addf %173, %175 : vector<8x4xf32>
    %cst_184 = arith.constant 0.000000e+00 : f32
    %177 = vector.broadcast %cst_184 : f32 to vector<8x4xf32>
    %178 = arith.maximumf %176, %177 : vector<8x4xf32>
    %c0_185 = arith.constant 0 : index
    %c0_186 = arith.constant 0 : index
    %c0_187 = arith.constant 0 : index
    %179 = vector.load %arg26[%c0_185, %c0_186, %c0_187] : memref<3x4x4xf32, #tpu.memory_space<vmem>>, vector<1x4x4xf32>
    %180 = vector.shape_cast %179 : vector<1x4x4xf32> to vector<4x4xf32>
    %cst_188 = arith.constant dense<0.000000e+00> : vector<8x4xf32>
    %181 = tpu.matmul %178, %180, %cst_188 {dimension_numbers = #tpu.dot_dimension_numbers<[1], [0], [0], [1], [0, 0, 1, 1], [], []>} : vector<8x4xf32>, vector<4x4xf32>, vector<8x4xf32> -> vector<8x4xf32>
    %c0_189 = arith.constant 0 : index
    %c0_190 = arith.constant 0 : index
    %c0_191 = arith.constant 0 : index
    %182 = vector.load %arg25[%c0_189, %c0_190, %c0_191] : memref<3x8x8xf32, #tpu.memory_space<vmem>>, vector<1x8x8xf32>
    %183 = vector.shape_cast %182 : vector<1x8x8xf32> to vector<8x8xf32>
    %cst_192 = arith.constant dense<0.000000e+00> : vector<8x4xf32>
    %184 = tpu.matmul %183, %181, %cst_192 {dimension_numbers = #tpu.dot_dimension_numbers<[1], [0], [0], [1], [0, 0, 1, 1], [], []>} : vector<8x8xf32>, vector<8x4xf32>, vector<8x4xf32> -> vector<8x4xf32>
    %c1_193 = arith.constant 1 : index
    %c0_194 = arith.constant 0 : index
    %c0_195 = arith.constant 0 : index
    %185 = vector.load %arg26[%c1_193, %c0_194, %c0_195] : memref<3x4x4xf32, #tpu.memory_space<vmem>>, vector<1x4x4xf32>
    %186 = vector.shape_cast %185 : vector<1x4x4xf32> to vector<4x4xf32>
    %cst_196 = arith.constant dense<0.000000e+00> : vector<8x4xf32>
    %187 = tpu.matmul %178, %186, %cst_196 {dimension_numbers = #tpu.dot_dimension_numbers<[1], [0], [0], [1], [0, 0, 1, 1], [], []>} : vector<8x4xf32>, vector<4x4xf32>, vector<8x4xf32> -> vector<8x4xf32>
    %c1_197 = arith.constant 1 : index
    %c0_198 = arith.constant 0 : index
    %c0_199 = arith.constant 0 : index
    %188 = vector.load %arg25[%c1_197, %c0_198, %c0_199] : memref<3x8x8xf32, #tpu.memory_space<vmem>>, vector<1x8x8xf32>
    %189 = vector.shape_cast %188 : vector<1x8x8xf32> to vector<8x8xf32>
    %cst_200 = arith.constant dense<0.000000e+00> : vector<8x4xf32>
    %190 = tpu.matmul %189, %187, %cst_200 {dimension_numbers = #tpu.dot_dimension_numbers<[1], [0], [0], [1], [0, 0, 1, 1], [], []>} : vector<8x8xf32>, vector<8x4xf32>, vector<8x4xf32> -> vector<8x4xf32>
    %191 = arith.addf %184, %190 : vector<8x4xf32>
    %c2_201 = arith.constant 2 : index
    %c0_202 = arith.constant 0 : index
    %c0_203 = arith.constant 0 : index
    %192 = vector.load %arg26[%c2_201, %c0_202, %c0_203] : memref<3x4x4xf32, #tpu.memory_space<vmem>>, vector<1x4x4xf32>
    %193 = vector.shape_cast %192 : vector<1x4x4xf32> to vector<4x4xf32>
    %cst_204 = arith.constant dense<0.000000e+00> : vector<8x4xf32>
    %194 = tpu.matmul %178, %193, %cst_204 {dimension_numbers = #tpu.dot_dimension_numbers<[1], [0], [0], [1], [0, 0, 1, 1], [], []>} : vector<8x4xf32>, vector<4x4xf32>, vector<8x4xf32> -> vector<8x4xf32>
    %c2_205 = arith.constant 2 : index
    %c0_206 = arith.constant 0 : index
    %c0_207 = arith.constant 0 : index
    %195 = vector.load %arg25[%c2_205, %c0_206, %c0_207] : memref<3x8x8xf32, #tpu.memory_space<vmem>>, vector<1x8x8xf32>
    %196 = vector.shape_cast %195 : vector<1x8x8xf32> to vector<8x8xf32>
    %cst_208 = arith.constant dense<0.000000e+00> : vector<8x4xf32>
    %197 = tpu.matmul %196, %194, %cst_208 {dimension_numbers = #tpu.dot_dimension_numbers<[1], [0], [0], [1], [0, 0, 1, 1], [], []>} : vector<8x8xf32>, vector<8x4xf32>, vector<8x4xf32> -> vector<8x4xf32>
    %198 = arith.addf %191, %197 : vector<8x4xf32>
    %c0_209 = arith.constant 0 : index
    %c0_210 = arith.constant 0 : index
    %199 = vector.load %arg27[%c0_209, %c0_210] : memref<1x4xf32, #tpu.memory_space<vmem>>, vector<1x4xf32>
    %200 = vector.broadcast %199 : vector<1x4xf32> to vector<8x4xf32>
    %201 = arith.addf %198, %200 : vector<8x4xf32>
    %cst_211 = arith.constant 0.000000e+00 : f32
    %202 = vector.broadcast %cst_211 : f32 to vector<8x4xf32>
    %203 = arith.maximumf %201, %202 : vector<8x4xf32>
    %c0_212 = arith.constant 0 : index
    %c0_213 = arith.constant 0 : index
    %c0_214 = arith.constant 0 : index
    %204 = vector.load %arg29[%c0_212, %c0_213, %c0_214] : memref<3x4x4xf32, #tpu.memory_space<vmem>>, vector<1x4x4xf32>
    %205 = vector.shape_cast %204 : vector<1x4x4xf32> to vector<4x4xf32>
    %cst_215 = arith.constant dense<0.000000e+00> : vector<8x4xf32>
    %206 = tpu.matmul %203, %205, %cst_215 {dimension_numbers = #tpu.dot_dimension_numbers<[1], [0], [0], [1], [0, 0, 1, 1], [], []>} : vector<8x4xf32>, vector<4x4xf32>, vector<8x4xf32> -> vector<8x4xf32>
    %c0_216 = arith.constant 0 : index
    %c0_217 = arith.constant 0 : index
    %c0_218 = arith.constant 0 : index
    %207 = vector.load %arg28[%c0_216, %c0_217, %c0_218] : memref<3x8x8xf32, #tpu.memory_space<vmem>>, vector<1x8x8xf32>
    %208 = vector.shape_cast %207 : vector<1x8x8xf32> to vector<8x8xf32>
    %cst_219 = arith.constant dense<0.000000e+00> : vector<8x4xf32>
    %209 = tpu.matmul %208, %206, %cst_219 {dimension_numbers = #tpu.dot_dimension_numbers<[1], [0], [0], [1], [0, 0, 1, 1], [], []>} : vector<8x8xf32>, vector<8x4xf32>, vector<8x4xf32> -> vector<8x4xf32>
    %c1_220 = arith.constant 1 : index
    %c0_221 = arith.constant 0 : index
    %c0_222 = arith.constant 0 : index
    %210 = vector.load %arg29[%c1_220, %c0_221, %c0_222] : memref<3x4x4xf32, #tpu.memory_space<vmem>>, vector<1x4x4xf32>
    %211 = vector.shape_cast %210 : vector<1x4x4xf32> to vector<4x4xf32>
    %cst_223 = arith.constant dense<0.000000e+00> : vector<8x4xf32>
    %212 = tpu.matmul %203, %211, %cst_223 {dimension_numbers = #tpu.dot_dimension_numbers<[1], [0], [0], [1], [0, 0, 1, 1], [], []>} : vector<8x4xf32>, vector<4x4xf32>, vector<8x4xf32> -> vector<8x4xf32>
    %c1_224 = arith.constant 1 : index
    %c0_225 = arith.constant 0 : index
    %c0_226 = arith.constant 0 : index
    %213 = vector.load %arg28[%c1_224, %c0_225, %c0_226] : memref<3x8x8xf32, #tpu.memory_space<vmem>>, vector<1x8x8xf32>
    %214 = vector.shape_cast %213 : vector<1x8x8xf32> to vector<8x8xf32>
    %cst_227 = arith.constant dense<0.000000e+00> : vector<8x4xf32>
    %215 = tpu.matmul %214, %212, %cst_227 {dimension_numbers = #tpu.dot_dimension_numbers<[1], [0], [0], [1], [0, 0, 1, 1], [], []>} : vector<8x8xf32>, vector<8x4xf32>, vector<8x4xf32> -> vector<8x4xf32>
    %216 = arith.addf %209, %215 : vector<8x4xf32>
    %c2_228 = arith.constant 2 : index
    %c0_229 = arith.constant 0 : index
    %c0_230 = arith.constant 0 : index
    %217 = vector.load %arg29[%c2_228, %c0_229, %c0_230] : memref<3x4x4xf32, #tpu.memory_space<vmem>>, vector<1x4x4xf32>
    %218 = vector.shape_cast %217 : vector<1x4x4xf32> to vector<4x4xf32>
    %cst_231 = arith.constant dense<0.000000e+00> : vector<8x4xf32>
    %219 = tpu.matmul %203, %218, %cst_231 {dimension_numbers = #tpu.dot_dimension_numbers<[1], [0], [0], [1], [0, 0, 1, 1], [], []>} : vector<8x4xf32>, vector<4x4xf32>, vector<8x4xf32> -> vector<8x4xf32>
    %c2_232 = arith.constant 2 : index
    %c0_233 = arith.constant 0 : index
    %c0_234 = arith.constant 0 : index
    %220 = vector.load %arg28[%c2_232, %c0_233, %c0_234] : memref<3x8x8xf32, #tpu.memory_space<vmem>>, vector<1x8x8xf32>
    %221 = vector.shape_cast %220 : vector<1x8x8xf32> to vector<8x8xf32>
    %cst_235 = arith.constant dense<0.000000e+00> : vector<8x4xf32>
    %222 = tpu.matmul %221, %219, %cst_235 {dimension_numbers = #tpu.dot_dimension_numbers<[1], [0], [0], [1], [0, 0, 1, 1], [], []>} : vector<8x8xf32>, vector<8x4xf32>, vector<8x4xf32> -> vector<8x4xf32>
    %223 = arith.addf %216, %222 : vector<8x4xf32>
    %c0_236 = arith.constant 0 : index
    %c0_237 = arith.constant 0 : index
    %224 = vector.load %arg30[%c0_236, %c0_237] : memref<1x4xf32, #tpu.memory_space<vmem>>, vector<1x4xf32>
    %225 = vector.broadcast %224 : vector<1x4xf32> to vector<8x4xf32>
    %226 = arith.addf %223, %225 : vector<8x4xf32>
    %cst_238 = arith.constant 0.000000e+00 : f32
    %227 = vector.broadcast %cst_238 : f32 to vector<8x4xf32>
    %228 = arith.maximumf %226, %227 : vector<8x4xf32>
    %229 = arith.addf %228, %153 : vector<8x4xf32>
    %c0_239 = arith.constant 0 : index
    %c0_240 = arith.constant 0 : index
    %230 = vector.load %arg31[%c0_239, %c0_240] : memref<1x4xf32, #tpu.memory_space<vmem>>, vector<1x4xf32>
    %c0_241 = arith.constant 0 : index
    %c0_242 = arith.constant 0 : index
    %231 = vector.load %arg32[%c0_241, %c0_242] : memref<4x1xf32, #tpu.memory_space<vmem>>, vector<4x1xf32>
    %232 = vector.extract_strided_slice %229 {offsets = [0, 0], sizes = [4, 4], strides = [1, 1]} : vector<8x4xf32> to vector<4x4xf32>
    %cst_243 = arith.constant dense<0xFF800000> : vector<4xf32>
    %233 = vector.multi_reduction <maximumf>, %232, %cst_243 [1] : vector<4x4xf32> to vector<4xf32>
    %234 = vector.shape_cast %233 : vector<4xf32> to vector<4x1xf32>
    %cst_244 = arith.constant dense<0xFF800000> : vector<1xf32>
    %235 = vector.multi_reduction <maximumf>, %234, %cst_244 [0] : vector<4x1xf32> to vector<1xf32>
    %236 = vector.shape_cast %235 : vector<1xf32> to vector<1x1xf32>
    %237 = vector.broadcast %236 : vector<1x1xf32> to vector<4x4xf32>
    %238 = arith.subf %232, %237 : vector<4x4xf32>
    %239 = math.exp %238 : vector<4x4xf32>
    %cst_245 = arith.constant dense<0.000000e+00> : vector<4xf32>
    %240 = vector.multi_reduction <add>, %239, %cst_245 [1] : vector<4x4xf32> to vector<4xf32>
    %241 = vector.shape_cast %240 : vector<4xf32> to vector<4x1xf32>
    %cst_246 = arith.constant dense<0.000000e+00> : vector<1xf32>
    %242 = vector.multi_reduction <add>, %241, %cst_246 [0] : vector<4x1xf32> to vector<1xf32>
    %243 = vector.shape_cast %242 : vector<1xf32> to vector<1x1xf32>
    %244 = vector.broadcast %243 : vector<1x1xf32> to vector<4x4xf32>
    %245 = arith.divf %239, %244 : vector<4x4xf32>
    %cst_247 = arith.constant dense<0.000000e+00> : vector<4xf32>
    %246 = vector.multi_reduction <add>, %245, %cst_247 [0] : vector<4x4xf32> to vector<4xf32>
    %247 = vector.shape_cast %246 : vector<4xf32> to vector<1x4xf32>
    %cst_248 = arith.constant dense<0.000000e+00> : vector<4xf32>
    %248 = vector.multi_reduction <add>, %245, %cst_248 [1] : vector<4x4xf32> to vector<4xf32>
    %249 = vector.shape_cast %248 : vector<4xf32> to vector<4x1xf32>
    %250 = arith.mulf %247, %230 : vector<1x4xf32>
    %cst_249 = arith.constant dense<0.000000e+00> : vector<1xf32>
    %251 = vector.multi_reduction <add>, %250, %cst_249 [1] : vector<1x4xf32> to vector<1xf32>
    %252 = vector.shape_cast %251 : vector<1xf32> to vector<1x1xf32>
    %253 = arith.mulf %249, %231 : vector<4x1xf32>
    %cst_250 = arith.constant dense<0.000000e+00> : vector<1xf32>
    %254 = vector.multi_reduction <add>, %253, %cst_250 [0] : vector<4x1xf32> to vector<1xf32>
    %255 = vector.shape_cast %254 : vector<1xf32> to vector<1x1xf32>
    %c0_251 = arith.constant 0 : index
    %c0_252 = arith.constant 0 : index
    %256 = vector.load %arg33[%c0_251, %c0_252] : memref<2x2xf32, #tpu.memory_space<vmem>>, vector<1x1xf32>
    tpu.vector_store %arg33[%c0_251, %c0_252], %252 {strides = array<i32>} : memref<2x2xf32, #tpu.memory_space<vmem>>, vector<1x1xf32>,
    %c0_253 = arith.constant 0 : index
    %c1_254 = arith.constant 1 : index
    %257 = vector.load %arg33[%c0_253, %c1_254] : memref<2x2xf32, #tpu.memory_space<vmem>>, vector<1x1xf32>
    tpu.vector_store %arg33[%c0_253, %c1_254], %255 {strides = array<i32>} : memref<2x2xf32, #tpu.memory_space<vmem>>, vector<1x1xf32>,
    %258 = vector.extract_strided_slice %229 {offsets = [4, 0], sizes = [4, 4], strides = [1, 1]} : vector<8x4xf32> to vector<4x4xf32>
    %cst_255 = arith.constant dense<0xFF800000> : vector<4xf32>
    %259 = vector.multi_reduction <maximumf>, %258, %cst_255 [1] : vector<4x4xf32> to vector<4xf32>
    %260 = vector.shape_cast %259 : vector<4xf32> to vector<4x1xf32>
    %cst_256 = arith.constant dense<0xFF800000> : vector<1xf32>
    %261 = vector.multi_reduction <maximumf>, %260, %cst_256 [0] : vector<4x1xf32> to vector<1xf32>
    %262 = vector.shape_cast %261 : vector<1xf32> to vector<1x1xf32>
    %263 = vector.broadcast %262 : vector<1x1xf32> to vector<4x4xf32>
    %264 = arith.subf %258, %263 : vector<4x4xf32>
    %265 = math.exp %264 : vector<4x4xf32>
    %cst_257 = arith.constant dense<0.000000e+00> : vector<4xf32>
    %266 = vector.multi_reduction <add>, %265, %cst_257 [1] : vector<4x4xf32> to vector<4xf32>
    %267 = vector.shape_cast %266 : vector<4xf32> to vector<4x1xf32>
    %cst_258 = arith.constant dense<0.000000e+00> : vector<1xf32>
    %268 = vector.multi_reduction <add>, %267, %cst_258 [0] : vector<4x1xf32> to vector<1xf32>
    %269 = vector.shape_cast %268 : vector<1xf32> to vector<1x1xf32>
    %270 = vector.broadcast %269 : vector<1x1xf32> to vector<4x4xf32>
    %271 = arith.divf %265, %270 : vector<4x4xf32>
    %cst_259 = arith.constant dense<0.000000e+00> : vector<4xf32>
    %272 = vector.multi_reduction <add>, %271, %cst_259 [0] : vector<4x4xf32> to vector<4xf32>
    %273 = vector.shape_cast %272 : vector<4xf32> to vector<1x4xf32>
    %cst_260 = arith.constant dense<0.000000e+00> : vector<4xf32>
    %274 = vector.multi_reduction <add>, %271, %cst_260 [1] : vector<4x4xf32> to vector<4xf32>
    %275 = vector.shape_cast %274 : vector<4xf32> to vector<4x1xf32>
    %276 = arith.mulf %273, %230 : vector<1x4xf32>
    %cst_261 = arith.constant dense<0.000000e+00> : vector<1xf32>
    %277 = vector.multi_reduction <add>, %276, %cst_261 [1] : vector<1x4xf32> to vector<1xf32>
    %278 = vector.shape_cast %277 : vector<1xf32> to vector<1x1xf32>
    %279 = arith.mulf %275, %231 : vector<4x1xf32>
    %cst_262 = arith.constant dense<0.000000e+00> : vector<1xf32>
    %280 = vector.multi_reduction <add>, %279, %cst_262 [0] : vector<4x1xf32> to vector<1xf32>
    %281 = vector.shape_cast %280 : vector<1xf32> to vector<1x1xf32>
    %c1_263 = arith.constant 1 : index
    %c0_264 = arith.constant 0 : index
    %282 = vector.load %arg33[%c1_263, %c0_264] : memref<2x2xf32, #tpu.memory_space<vmem>>, vector<1x1xf32>
    tpu.vector_store %arg33[%c1_263, %c0_264], %278 {strides = array<i32>} : memref<2x2xf32, #tpu.memory_space<vmem>>, vector<1x1xf32>,
    %c1_265 = arith.constant 1 : index
    %c1_266 = arith.constant 1 : index
    %283 = vector.load %arg33[%c1_265, %c1_266] : memref<2x2xf32, #tpu.memory_space<vmem>>, vector<1x1xf32>
    tpu.vector_store %arg33[%c1_265, %c1_266], %281 {strides = array<i32>} : memref<2x2xf32, #tpu.memory_space<vmem>>, vector<1x1xf32>,
    return
  }
  func.func @transform_0(%arg0: i32) -> (i32, i32) {
    %c0_i32 = arith.constant 0 : i32
    %c0_i32_0 = arith.constant 0 : i32
    %c0_i32_1 = arith.constant 0 : i32
    return %c0_i32, %c0_i32_0 : i32, i32
  }
  func.func @transform_1(%arg0: i32) -> (i32, i32) {
    %c0_i32 = arith.constant 0 : i32
    %c0_i32_0 = arith.constant 0 : i32
    %c0_i32_1 = arith.constant 0 : i32
    return %c0_i32, %c0_i32_0 : i32, i32
  }
  func.func @transform_2(%arg0: i32) -> (i32, i32) {
    %c0_i32 = arith.constant 0 : i32
    %c0_i32_0 = arith.constant 0 : i32
    %c0_i32_1 = arith.constant 0 : i32
    return %c0_i32, %c0_i32_0 : i32, i32
  }
  func.func @transform_3(%arg0: i32) -> (i32, i32, i32) {
    %c0_i32 = arith.constant 0 : i32
    %c0_i32_0 = arith.constant 0 : i32
    %c0_i32_1 = arith.constant 0 : i32
    %c0_i32_2 = arith.constant 0 : i32
    return %c0_i32, %c0_i32_0, %c0_i32_1 : i32, i32, i32
  }
  func.func @transform_4(%arg0: i32) -> (i32, i32, i32) {
    %c0_i32 = arith.constant 0 : i32
    %c0_i32_0 = arith.constant 0 : i32
    %c0_i32_1 = arith.constant 0 : i32
    %c0_i32_2 = arith.constant 0 : i32
    return %c0_i32, %c0_i32_0, %c0_i32_1 : i32, i32, i32
  }
  func.func @transform_5(%arg0: i32) -> (i32, i32) {
    %c0_i32 = arith.constant 0 : i32
    %c0_i32_0 = arith.constant 0 : i32
    %c0_i32_1 = arith.constant 0 : i32
    return %c0_i32, %c0_i32_0 : i32, i32
  }
  func.func @transform_6(%arg0: i32) -> (i32, i32, i32) {
    %c0_i32 = arith.constant 0 : i32
    %c0_i32_0 = arith.constant 0 : i32
    %c0_i32_1 = arith.constant 0 : i32
    %c0_i32_2 = arith.constant 0 : i32
    return %c0_i32, %c0_i32_0, %c0_i32_1 : i32, i32, i32
  }
  func.func @transform_7(%arg0: i32) -> (i32, i32, i32) {
    %c0_i32 = arith.constant 0 : i32
    %c0_i32_0 = arith.constant 0 : i32
    %c0_i32_1 = arith.constant 0 : i32
    %c0_i32_2 = arith.constant 0 : i32
    return %c0_i32, %c0_i32_0, %c0_i32_1 : i32, i32, i32
  }
  func.func @transform_8(%arg0: i32) -> (i32, i32) {
    %c0_i32 = arith.constant 0 : i32
    %c0_i32_0 = arith.constant 0 : i32
    %c0_i32_1 = arith.constant 0 : i32
    return %c0_i32, %c0_i32_0 : i32, i32
  }
  func.func @transform_9(%arg0: i32) -> (i32, i32, i32) {
    %c0_i32 = arith.constant 0 : i32
    %c0_i32_0 = arith.constant 0 : i32
    %c0_i32_1 = arith.constant 0 : i32
    %c0_i32_2 = arith.constant 0 : i32
    return %c0_i32, %c0_i32_0, %c0_i32_1 : i32, i32, i32
  }
  func.func @transform_10(%arg0: i32) -> (i32, i32, i32) {
    %c0_i32 = arith.constant 0 : i32
    %c0_i32_0 = arith.constant 0 : i32
    %c0_i32_1 = arith.constant 0 : i32
    %c0_i32_2 = arith.constant 0 : i32
    return %c0_i32, %c0_i32_0, %c0_i32_1 : i32, i32, i32
  }
  func.func @transform_11(%arg0: i32) -> (i32, i32) {
    %c0_i32 = arith.constant 0 : i32
    %c0_i32_0 = arith.constant 0 : i32
    %c0_i32_1 = arith.constant 0 : i32
    return %c0_i32, %c0_i32_0 : i32, i32
  }
  func.func @transform_12(%arg0: i32) -> (i32, i32, i32) {
    %c0_i32 = arith.constant 0 : i32
    %c0_i32_0 = arith.constant 0 : i32
    %c0_i32_1 = arith.constant 0 : i32
    %c0_i32_2 = arith.constant 0 : i32
    return %c0_i32, %c0_i32_0, %c0_i32_1 : i32, i32, i32
  }
  func.func @transform_13(%arg0: i32) -> (i32, i32, i32) {
    %c0_i32 = arith.constant 0 : i32
    %c0_i32_0 = arith.constant 0 : i32
    %c0_i32_1 = arith.constant 0 : i32
    %c0_i32_2 = arith.constant 0 : i32
    return %c0_i32, %c0_i32_0, %c0_i32_1 : i32, i32, i32
  }
  func.func @transform_14(%arg0: i32) -> (i32, i32) {
    %c0_i32 = arith.constant 0 : i32
    %c0_i32_0 = arith.constant 0 : i32
    %c0_i32_1 = arith.constant 0 : i32
    return %c0_i32, %c0_i32_0 : i32, i32
  }
  func.func @transform_15(%arg0: i32) -> (i32, i32, i32) {
    %c0_i32 = arith.constant 0 : i32
    %c0_i32_0 = arith.constant 0 : i32
    %c0_i32_1 = arith.constant 0 : i32
    %c0_i32_2 = arith.constant 0 : i32
    return %c0_i32, %c0_i32_0, %c0_i32_1 : i32, i32, i32
  }
  func.func @transform_16(%arg0: i32) -> (i32, i32, i32) {
    %c0_i32 = arith.constant 0 : i32
    %c0_i32_0 = arith.constant 0 : i32
    %c0_i32_1 = arith.constant 0 : i32
    %c0_i32_2 = arith.constant 0 : i32
    return %c0_i32, %c0_i32_0, %c0_i32_1 : i32, i32, i32
  }
  func.func @transform_17(%arg0: i32) -> (i32, i32) {
    %c0_i32 = arith.constant 0 : i32
    %c0_i32_0 = arith.constant 0 : i32
    %c0_i32_1 = arith.constant 0 : i32
    return %c0_i32, %c0_i32_0 : i32, i32
  }
  func.func @transform_18(%arg0: i32) -> (i32, i32, i32) {
    %c0_i32 = arith.constant 0 : i32
    %c0_i32_0 = arith.constant 0 : i32
    %c0_i32_1 = arith.constant 0 : i32
    %c0_i32_2 = arith.constant 0 : i32
    return %c0_i32, %c0_i32_0, %c0_i32_1 : i32, i32, i32
  }
  func.func @transform_19(%arg0: i32) -> (i32, i32, i32) {
    %c0_i32 = arith.constant 0 : i32
    %c0_i32_0 = arith.constant 0 : i32
    %c0_i32_1 = arith.constant 0 : i32
    %c0_i32_2 = arith.constant 0 : i32
    return %c0_i32, %c0_i32_0, %c0_i32_1 : i32, i32, i32
  }
  func.func @transform_20(%arg0: i32) -> (i32, i32) {
    %c0_i32 = arith.constant 0 : i32
    %c0_i32_0 = arith.constant 0 : i32
    %c0_i32_1 = arith.constant 0 : i32
    return %c0_i32, %c0_i32_0 : i32, i32
  }
  func.func @transform_21(%arg0: i32) -> (i32, i32, i32) {
    %c0_i32 = arith.constant 0 : i32
    %c0_i32_0 = arith.constant 0 : i32
    %c0_i32_1 = arith.constant 0 : i32
    %c0_i32_2 = arith.constant 0 : i32
    return %c0_i32, %c0_i32_0, %c0_i32_1 : i32, i32, i32
  }
  func.func @transform_22(%arg0: i32) -> (i32, i32, i32) {
    %c0_i32 = arith.constant 0 : i32
    %c0_i32_0 = arith.constant 0 : i32
    %c0_i32_1 = arith.constant 0 : i32
    %c0_i32_2 = arith.constant 0 : i32
    return %c0_i32, %c0_i32_0, %c0_i32_1 : i32, i32, i32
  }
  func.func @transform_23(%arg0: i32) -> (i32, i32) {
    %c0_i32 = arith.constant 0 : i32
    %c0_i32_0 = arith.constant 0 : i32
    %c0_i32_1 = arith.constant 0 : i32
    return %c0_i32, %c0_i32_0 : i32, i32
  }
  func.func @transform_24(%arg0: i32) -> (i32, i32, i32) {
    %c0_i32 = arith.constant 0 : i32
    %c0_i32_0 = arith.constant 0 : i32
    %c0_i32_1 = arith.constant 0 : i32
    %c0_i32_2 = arith.constant 0 : i32
    return %c0_i32, %c0_i32_0, %c0_i32_1 : i32, i32, i32
  }
  func.func @transform_25(%arg0: i32) -> (i32, i32, i32) {
    %c0_i32 = arith.constant 0 : i32
    %c0_i32_0 = arith.constant 0 : i32
    %c0_i32_1 = arith.constant 0 : i32
    %c0_i32_2 = arith.constant 0 : i32
    return %c0_i32, %c0_i32_0, %c0_i32_1 : i32, i32, i32
  }
  func.func @transform_26(%arg0: i32) -> (i32, i32) {
    %c0_i32 = arith.constant 0 : i32
    %c0_i32_0 = arith.constant 0 : i32
    %c0_i32_1 = arith.constant 0 : i32
    return %c0_i32, %c0_i32_0 : i32, i32
  }
  func.func @transform_27(%arg0: i32) -> (i32, i32, i32) {
    %c0_i32 = arith.constant 0 : i32
    %c0_i32_0 = arith.constant 0 : i32
    %c0_i32_1 = arith.constant 0 : i32
    %c0_i32_2 = arith.constant 0 : i32
    return %c0_i32, %c0_i32_0, %c0_i32_1 : i32, i32, i32
  }
  func.func @transform_28(%arg0: i32) -> (i32, i32, i32) {
    %c0_i32 = arith.constant 0 : i32
    %c0_i32_0 = arith.constant 0 : i32
    %c0_i32_1 = arith.constant 0 : i32
    %c0_i32_2 = arith.constant 0 : i32
    return %c0_i32, %c0_i32_0, %c0_i32_1 : i32, i32, i32
  }
  func.func @transform_29(%arg0: i32) -> (i32, i32) {
    %c0_i32 = arith.constant 0 : i32
    %c0_i32_0 = arith.constant 0 : i32
    %c0_i32_1 = arith.constant 0 : i32
    return %c0_i32, %c0_i32_0 : i32, i32
  }
  func.func @transform_30(%arg0: i32) -> (i32, i32) {
    %c0_i32 = arith.constant 0 : i32
    %c0_i32_0 = arith.constant 0 : i32
    %c0_i32_1 = arith.constant 0 : i32
    return %c0_i32, %c0_i32_0 : i32, i32
  }
  func.func @transform_31(%arg0: i32) -> (i32, i32) {
    %c0_i32 = arith.constant 0 : i32
    %c0_i32_0 = arith.constant 0 : i32
    %c0_i32_1 = arith.constant 0 : i32
    return %c0_i32, %c0_i32_0 : i32, i32
  }
  func.func @transform_32(%arg0: i32) -> (i32, i32) {
    %c0_i32 = arith.constant 0 : i32
    %c0_i32_0 = arith.constant 0 : i32
    %c0_i32_1 = arith.constant 0 : i32
    return %c0_i32, %c0_i32_0 : i32, i32
  }
}

</mosaic_0001>

<llo_original>
// kernel: planner_forward.1
$region0: #{planner_forward.1}
  #allocation0 [shape = 'u32[]', space=smem, size = 0x4, offset = 0x4, fixed_abs, tag = 'smem constant byte address 0x4 - core index']
  #allocation1 [shape = 'u32[144,128]{1,0:T(1,128)}', space=vmem, size = 0x12000, scoped, tag = 'internal scratch']
  %s0 = inlined_call_operand.smem [shape: u32[33], index: -1, kind: input, shape index: {}]
  %s1 = sld [smem:[%s0]]
  %s2 = scalar_lea.smem %s0, 1
  %s3 = sld [smem:[%s2]]
  %s4 = scalar_lea.smem %s0, 2
  %s5 = sld [smem:[%s4]]
  %s6 = scalar_lea.smem %s0, 3
  %s7 = sld [smem:[%s6]]
  %s8 = scalar_lea.smem %s0, 4
  %s9 = sld [smem:[%s8]]
  %s10 = scalar_lea.smem %s0, 5
  %s11 = sld [smem:[%s10]]
  %s12 = scalar_lea.smem %s0, 6
  %s13 = sld [smem:[%s12]]
  %s14 = scalar_lea.smem %s0, 7
  %s15 = sld [smem:[%s14]]
  %s16 = scalar_lea.smem %s0, 8
  %s17 = sld [smem:[%s16]]
  %s18 = scalar_lea.smem %s0, 9
  %s19 = sld [smem:[%s18]]
  %s20 = scalar_lea.smem %s0, 10
  %s21 = sld [smem:[%s20]]
  %s22 = scalar_lea.smem %s0, 11
  %s23 = sld [smem:[%s22]]
  %s24 = scalar_lea.smem %s0, 12
  %s25 = sld [smem:[%s24]]
  %s26 = scalar_lea.smem %s0, 13
  %s27 = sld [smem:[%s26]]
  %s28 = scalar_lea.smem %s0, 14
  %s29 = sld [smem:[%s28]]
  %s30 = scalar_lea.smem %s0, 15
  %s31 = sld [smem:[%s30]]
  %s32 = scalar_lea.smem %s0, 16
  %s33 = sld [smem:[%s32]]
  %s34 = scalar_lea.smem %s0, 17
  %s35 = sld [smem:[%s34]]
  %s36 = scalar_lea.smem %s0, 18
  %s37 = sld [smem:[%s36]]
  %s38 = scalar_lea.smem %s0, 19
  %s39 = sld [smem:[%s38]]
  %s40 = scalar_lea.smem %s0, 20
  %s41 = sld [smem:[%s40]]
  %s42 = scalar_lea.smem %s0, 21
  %s43 = sld [smem:[%s42]]
  %s44 = scalar_lea.smem %s0, 22
  %s45 = sld [smem:[%s44]]
  %s46 = scalar_lea.smem %s0, 23
  %s47 = sld [smem:[%s46]]
  %s48 = scalar_lea.smem %s0, 24
  %s49 = sld [smem:[%s48]]
  %s50 = scalar_lea.smem %s0, 25
  %s51 = sld [smem:[%s50]]
  %s52 = scalar_lea.smem %s0, 26
  %s53 = sld [smem:[%s52]]
  %s54 = scalar_lea.smem %s0, 27
  %s55 = sld [smem:[%s54]]
  %s56 = scalar_lea.smem %s0, 28
  %s57 = sld [smem:[%s56]]
  %s58 = scalar_lea.smem %s0, 29
  %s59 = sld [smem:[%s58]]
  %s60 = scalar_lea.smem %s0, 30
  %s61 = sld [smem:[%s60]]
  %s62 = scalar_lea.smem %s0, 31
  %s63 = sld [smem:[%s62]]
  %s64 = scalar_lea.smem %s0, 32
  %s65 = sld [smem:[%s64]]
  %s66 = sld [smem:[#allocation0]]
  $region138: #{planner_forward.1} parent=0
    _
  %s68 = ssub.s32 1, %s66
  %s69 = scalar_select 0, %s68, %s66
  $region1: #{planner_forward.1} parent=0
    #allocation2 [shape = 'u8[1024]{0}', space=vmem, size = 0x400, scoped, tag = 'output window, operand 0, single buffered']
    #allocation3 [shape = 's32[1]{0}', space=sflag, size = 0x4, scoped, tag = 'scoped memory for planner_forward.1']
    %70 = vsyncpa [#allocation3], 0
    // Predicated region
    $region2: #{planner_forward.1} parent=1 // pred_check
      _
    $region3: #{planner_forward.1} parent=1 // pred_check_branch
      %72 = sbr.rel (0) target = $region5
    $region4: #{planner_forward.1} parent=1 // pred_region
      _
    $region5: #{planner_forward.1} parent=1 // pred_fallthru
      _
    // Predicated region
    $region6: #{planner_forward.1} parent=1 // pred_check
      _
    $region7: #{planner_forward.1} parent=1 // pred_check_branch
      %74 = sbr.rel (0) target = $region9
    $region8: #{planner_forward.1} parent=1 // pred_region
      _
    $region9: #{planner_forward.1} parent=1 // pred_fallthru
      _
    // Predicated region
    $region10: #{planner_forward.1} parent=1 // pred_check
      _
    $region11: #{planner_forward.1} parent=1 // pred_check_branch
      %76 = sbr.rel (0) target = $region13
    $region12: #{planner_forward.1} parent=1 // pred_region
      _
    $region13: #{planner_forward.1} parent=1 // pred_fallthru
      _
    // Predicated region
    $region14: #{planner_forward.1} parent=1 // pred_check
      _
    $region15: #{planner_forward.1} parent=1 // pred_check_branch
      %78 = sbr.rel (0) target = $region17
    $region16: #{planner_forward.1} parent=1 // pred_region
      _
    $region17: #{planner_forward.1} parent=1 // pred_fallthru
      _
    // Predicated region
    $region18: #{planner_forward.1} parent=1 // pred_check
      _
    $region19: #{planner_forward.1} parent=1 // pred_check_branch
      %80 = sbr.rel (0) target = $region21
    $region20: #{planner_forward.1} parent=1 // pred_region
      _
    $region21: #{planner_forward.1} parent=1 // pred_fallthru
      _
    // Predicated region
    $region22: #{planner_forward.1} parent=1 // pred_check
      _
    $region23: #{planner_forward.1} parent=1 // pred_check_branch
      %82 = sbr.rel (0) target = $region25
    $region24: #{planner_forward.1} parent=1 // pred_region
      _
    $region25: #{planner_forward.1} parent=1 // pred_fallthru
      _
    // Predicated region
    $region26: #{planner_forward.1} parent=1 // pred_check
      _
    $region27: #{planner_forward.1} parent=1 // pred_check_branch
      %84 = sbr.rel (0) target = $region29
    $region28: #{planner_forward.1} parent=1 // pred_region
      _
    $region29: #{planner_forward.1} parent=1 // pred_fallthru
      _
    // Predicated region
    $region30: #{planner_forward.1} parent=1 // pred_check
      _
    $region31: #{planner_forward.1} parent=1 // pred_check_branch
      %86 = sbr.rel (0) target = $region33
    $region32: #{planner_forward.1} parent=1 // pred_region
      _
    $region33: #{planner_forward.1} parent=1 // pred_fallthru
      _
    // Predicated region
    $region34: #{planner_forward.1} parent=1 // pred_check
      _
    $region35: #{planner_forward.1} parent=1 // pred_check_branch
      %88 = sbr.rel (0) target = $region37
    $region36: #{planner_forward.1} parent=1 // pred_region
      _
    $region37: #{planner_forward.1} parent=1 // pred_fallthru
      _
    // Predicated region
    $region38: #{planner_forward.1} parent=1 // pred_check
      _
    $region39: #{planner_forward.1} parent=1 // pred_check_branch
      %90 = sbr.rel (0) target = $region41
    $region40: #{planner_forward.1} parent=1 // pred_region
      _
    $region41: #{planner_forward.1} parent=1 // pred_fallthru
      _
    // Predicated region
    $region42: #{planner_forward.1} parent=1 // pred_check
      _
    $region43: #{planner_forward.1} parent=1 // pred_check_branch
      %92 = sbr.rel (0) target = $region45
    $region44: #{planner_forward.1} parent=1 // pred_region
      _
    $region45: #{planner_forward.1} parent=1 // pred_fallthru
      _
    // Predicated region
    $region46: #{planner_forward.1} parent=1 // pred_check
      _
    $region47: #{planner_forward.1} parent=1 // pred_check_branch
      %94 = sbr.rel (0) target = $region49
    $region48: #{planner_forward.1} parent=1 // pred_region
      _
    $region49: #{planner_forward.1} parent=1 // pred_fallthru
      _
    // Predicated region
    $region50: #{planner_forward.1} parent=1 // pred_check
      _
    $region51: #{planner_forward.1} parent=1 // pred_check_branch
      %96 = sbr.rel (0) target = $region53
    $region52: #{planner_forward.1} parent=1 // pred_region
      _
    $region53: #{planner_forward.1} parent=1 // pred_fallthru
      _
    // Predicated region
    $region54: #{planner_forward.1} parent=1 // pred_check
      _
    $region55: #{planner_forward.1} parent=1 // pred_check_branch
      %98 = sbr.rel (0) target = $region57
    $region56: #{planner_forward.1} parent=1 // pred_region
      _
    $region57: #{planner_forward.1} parent=1 // pred_fallthru
      _
    // Predicated region
    $region58: #{planner_forward.1} parent=1 // pred_check
      _
    $region59: #{planner_forward.1} parent=1 // pred_check_branch
      %100 = sbr.rel (0) target = $region61
    $region60: #{planner_forward.1} parent=1 // pred_region
      _
    $region61: #{planner_forward.1} parent=1 // pred_fallthru
      _
    // Predicated region
    $region62: #{planner_forward.1} parent=1 // pred_check
      _
    $region63: #{planner_forward.1} parent=1 // pred_check_branch
      %102 = sbr.rel (0) target = $region65
    $region64: #{planner_forward.1} parent=1 // pred_region
      _
    $region65: #{planner_forward.1} parent=1 // pred_fallthru
      _
    // Predicated region
    $region66: #{planner_forward.1} parent=1 // pred_check
      _
    $region67: #{planner_forward.1} parent=1 // pred_check_branch
      %104 = sbr.rel (0) target = $region69
    $region68: #{planner_forward.1} parent=1 // pred_region
      _
    $region69: #{planner_forward.1} parent=1 // pred_fallthru
      _
    // Predicated region
    $region70: #{planner_forward.1} parent=1 // pred_check
      _
    $region71: #{planner_forward.1} parent=1 // pred_check_branch
      %106 = sbr.rel (0) target = $region73
    $region72: #{planner_forward.1} parent=1 // pred_region
      _
    $region73: #{planner_forward.1} parent=1 // pred_fallthru
      _
    // Predicated region
    $region74: #{planner_forward.1} parent=1 // pred_check
      _
    $region75: #{planner_forward.1} parent=1 // pred_check_branch
      %108 = sbr.rel (0) target = $region77
    $region76: #{planner_forward.1} parent=1 // pred_region
      _
    $region77: #{planner_forward.1} parent=1 // pred_fallthru
      _
    // Predicated region
    $region78: #{planner_forward.1} parent=1 // pred_check
      _
    $region79: #{planner_forward.1} parent=1 // pred_check_branch
      %110 = sbr.rel (0) target = $region81
    $region80: #{planner_forward.1} parent=1 // pred_region
      _
    $region81: #{planner_forward.1} parent=1 // pred_fallthru
      _
    // Predicated region
    $region82: #{planner_forward.1} parent=1 // pred_check
      _
    $region83: #{planner_forward.1} parent=1 // pred_check_branch
      %112 = sbr.rel (0) target = $region85
    $region84: #{planner_forward.1} parent=1 // pred_region
      _
    $region85: #{planner_forward.1} parent=1 // pred_fallthru
      _
    // Predicated region
    $region86: #{planner_forward.1} parent=1 // pred_check
      _
    $region87: #{planner_forward.1} parent=1 // pred_check_branch
      %114 = sbr.rel (0) target = $region89
    $region88: #{planner_forward.1} parent=1 // pred_region
      _
    $region89: #{planner_forward.1} parent=1 // pred_fallthru
      _
    // Predicated region
    $region90: #{planner_forward.1} parent=1 // pred_check
      _
    $region91: #{planner_forward.1} parent=1 // pred_check_branch
      %116 = sbr.rel (0) target = $region93
    $region92: #{planner_forward.1} parent=1 // pred_region
      _
    $region93: #{planner_forward.1} parent=1 // pred_fallthru
      _
    // Predicated region
    $region94: #{planner_forward.1} parent=1 // pred_check
      _
    $region95: #{planner_forward.1} parent=1 // pred_check_branch
      %118 = sbr.rel (0) target = $region97
    $region96: #{planner_forward.1} parent=1 // pred_region
      _
    $region97: #{planner_forward.1} parent=1 // pred_fallthru
      _
    // Predicated region
    $region98: #{planner_forward.1} parent=1 // pred_check
      _
    $region99: #{planner_forward.1} parent=1 // pred_check_branch
      %120 = sbr.rel (0) target = $region101
    $region100: #{planner_forward.1} parent=1 // pred_region
      _
    $region101: #{planner_forward.1} parent=1 // pred_fallthru
      _
    // Predicated region
    $region102: #{planner_forward.1} parent=1 // pred_check
      _
    $region103: #{planner_forward.1} parent=1 // pred_check_branch
      %122 = sbr.rel (0) target = $region105
    $region104: #{planner_forward.1} parent=1 // pred_region
      _
    $region105: #{planner_forward.1} parent=1 // pred_fallthru
      _
    // Predicated region
    $region106: #{planner_forward.1} parent=1 // pred_check
      _
    $region107: #{planner_forward.1} parent=1 // pred_check_branch
      %124 = sbr.rel (0) target = $region109
    $region108: #{planner_forward.1} parent=1 // pred_region
      _
    $region109: #{planner_forward.1} parent=1 // pred_fallthru
      _
    // Predicated region
    $region110: #{planner_forward.1} parent=1 // pred_check
      _
    $region111: #{planner_forward.1} parent=1 // pred_check_branch
      %126 = sbr.rel (0) target = $region113
    $region112: #{planner_forward.1} parent=1 // pred_region
      _
    $region113: #{planner_forward.1} parent=1 // pred_fallthru
      _
    // Predicated region
    $region114: #{planner_forward.1} parent=1 // pred_check
      _
    $region115: #{planner_forward.1} parent=1 // pred_check_branch
      %128 = sbr.rel (0) target = $region117
    $region116: #{planner_forward.1} parent=1 // pred_region
      _
    $region117: #{planner_forward.1} parent=1 // pred_fallthru
      _
    // Predicated region
    $region118: #{planner_forward.1} parent=1 // pred_check
      _
    $region119: #{planner_forward.1} parent=1 // pred_check_branch
      %130 = sbr.rel (0) target = $region121
    $region120: #{planner_forward.1} parent=1 // pred_region
      _
    $region121: #{planner_forward.1} parent=1 // pred_fallthru
      _
    // Predicated region
    $region122: #{planner_forward.1} parent=1 // pred_check
      _
    $region123: #{planner_forward.1} parent=1 // pred_check_branch
      %132 = sbr.rel (0) target = $region125
    $region124: #{planner_forward.1} parent=1 // pred_region
      _
    $region125: #{planner_forward.1} parent=1 // pred_fallthru
      _
    // Predicated region
    $region126: #{planner_forward.1} parent=1 // pred_check
      _
    $region127: #{planner_forward.1} parent=1 // pred_check_branch
      %134 = sbr.rel (0) target = $region129
    $region128: #{planner_forward.1} parent=1 // pred_region
      _
    $region129: #{planner_forward.1} parent=1 // pred_fallthru
      _
    %v135 = vld [vmem:[%s1] sm:$0xff]
    %v136 = vld [vmem:[%s1 + $0x8] sm:$0xff]
    %v137 = vld [vmem:[%s1 + $0x10] sm:$0xff]
    %v138 = vld [vmem:[%s1 + $0x18] sm:$0xff]
    %v139 = vld [vmem:[%s1 + $0x20] sm:$0xff]
    %v140 = vld [vmem:[%s1 + $0x28] sm:$0xff]
    %v141 = vld [vmem:[%s1 + $0x30] sm:$0xff]
    %v142 = vld [vmem:[%s1 + $0x38] sm:$0xff]
    %v143 = vld [vmem:[%s3] sm:$0x1]
    %v145 = vlaneseq
    %v146 = vshrl.u32 %v145, 7
    %v147 = vsub.s32 0, %v146
    %v148 = vrot.slane %v143, %v147
    %v150 = vmul.f32 %v135, %v148
    %v151 = vmul.f32 %v136, %v148
    %v152 = vmul.f32 %v137, %v148
    %v153 = vmul.f32 %v138, %v148
    %v154 = vmul.f32 %v139, %v148
    %v155 = vmul.f32 %v140, %v148
    %v156 = vmul.f32 %v141, %v148
    %v157 = vmul.f32 %v142, %v148
    %v158 = vld [vmem:[%s5] sm:$0x1]
    %v160 = vlaneseq
    %v161 = vshrl.u32 %v160, 7
    %v162 = vsub.s32 0, %v161
    %v163 = vrot.slane %v158, %v162
    %v165 = vadd.f32 %v150, %v163
    %v166 = vadd.f32 %v151, %v163
    %v167 = vadd.f32 %v152, %v163
    %v168 = vadd.f32 %v153, %v163
    %v169 = vadd.f32 %v154, %v163
    %v170 = vadd.f32 %v155, %v163
    %v171 = vadd.f32 %v156, %v163
    %v172 = vadd.f32 %v157, %v163
    %v173 = vld [vmem:[%s9] sm:$0xff]
    %v174 = vld [vmem:[%s9 + $0x8] sm:$0xff]
    %v175 = vld [vmem:[%s9 + $0x10] sm:$0xff]
    %v176 = vld [vmem:[%s9 + $0x18] sm:$0xff]
    %v177 = vld [vmem:[%s9 + $0x20] sm:$0xff]
    %v178 = vld [vmem:[%s9 + $0x28] sm:$0xff]
    %v179 = vld [vmem:[%s9 + $0x30] sm:$0xff]
    %v180 = vld [vmem:[%s9 + $0x38] sm:$0xff]
    %v181 = vld [vmem:[%s9 + $0x40] sm:$0xff]
    %v182 = vld [vmem:[%s9 + $0x48] sm:$0xff]
    %v183 = vld [vmem:[%s9 + $0x50] sm:$0xff]
    %v184 = vld [vmem:[%s9 + $0x58] sm:$0xff]
    %v185 = vld [vmem:[%s9 + $0x60] sm:$0xff]
    %v186 = vld [vmem:[%s9 + $0x68] sm:$0xff]
    %v187 = vld [vmem:[%s9 + $0x70] sm:$0xff]
    %v188 = vld [vmem:[%s9 + $0x78] sm:$0xff]
    %189 = vmatprep.subr.mxu0 0.0
    %190 = vmatpush1.msra.mxu0 %v173
    %191 = vmatprep.subr.mxu0 0.0
    %192 = vmatpush1.msra.mxu0 %v174
    %193 = vmatprep.subr.mxu0 0.0
    %194 = vmatpush1.msra.mxu0 %v175
    %195 = vmatprep.subr.mxu0 0.0
    %196 = vmatpush1.msra.mxu0 %v176
    %197 = vmatprep.subr.mxu0 0.0
    %198 = vmatpush1.msra.mxu0 %v177
    %199 = vmatprep.subr.mxu0 0.0
    %200 = vmatpush1.msra.mxu0 %v178
    %201 = vmatprep.subr.mxu0 0.0
    %202 = vmatpush1.msra.mxu0 %v179
    %203 = vmatprep.subr.mxu0 0.0
    %204 = vmatpush1.msra.mxu0 %v180
    %205 = vmatprep.subr.mxu0 0.0
    %206 = vmatpush1.msra.mxu0 %v181
    %207 = vmatprep.subr.mxu0 0.0
    %208 = vmatpush1.msra.mxu0 %v182
    %209 = vmatprep.subr.mxu0 0.0
    %210 = vmatpush1.msra.mxu0 %v183
    %211 = vmatprep.subr.mxu0 0.0
    %212 = vmatpush1.msra.mxu0 %v184
    %213 = vmatprep.subr.mxu0 0.0
    %214 = vmatpush1.msra.mxu0 %v185
    %215 = vmatprep.subr.mxu0 0.0
    %216 = vmatpush1.msra.mxu0 %v186
    %217 = vmatprep.subr.mxu0 0.0
    %218 = vmatpush1.msra.mxu0 %v187
    %219 = vmatprep.subr.mxu0 0.0
    %220 = vmatpush1.msra.mxu0 %v188
    %221 = vmatprep.subr.mxu0 0.0
    %222 = vmatpush1.msra.mxu0 0.0
    %223 = vmatprep.subr.mxu0 0.0
    %224 = vmatpush1.msra.mxu0 0.0
    %225 = vmatprep.subr.mxu0 0.0
    %226 = vmatpush1.msra.mxu0 0.0
    %227 = vmatprep.subr.mxu0 0.0
    %228 = vmatpush1.msra.mxu0 0.0
    %229 = vmatprep.subr.mxu0 0.0
    %230 = vmatpush1.msra.mxu0 0.0
    %231 = vmatprep.subr.mxu0 0.0
    %232 = vmatpush1.msra.mxu0 0.0
    %233 = vmatprep.subr.mxu0 0.0
    %234 = vmatpush1.msra.mxu0 0.0
    %235 = vmatprep.subr.mxu0 0.0
    %236 = vmatpush1.msra.mxu0 0.0
    %237 = vmatprep.subr.mxu0 0.0
    %238 = vmatpush1.msra.mxu0 0.0
    %239 = vmatprep.subr.mxu0 0.0
    %240 = vmatpush1.msra.mxu0 0.0
    %241 = vmatprep.subr.mxu0 0.0
    %242 = vmatpush1.msra.mxu0 0.0
    %243 = vmatprep.subr.mxu0 0.0
    %244 = vmatpush1.msra.mxu0 0.0
    %245 = vmatprep.subr.mxu0 0.0
    %246 = vmatpush1.msra.mxu0 0.0
    %247 = vmatprep.subr.mxu0 0.0
    %248 = vmatpush1.msra.mxu0 0.0
    %249 = vmatprep.subr.mxu0 0.0
    %250 = vmatpush1.msra.mxu0 0.0
    %251 = vmatprep.subr.mxu0 0.0
    %252 = vmatpush1.msra.mxu0 0.0
    %253 = vmatprep.mubr.f32.mxu0 0.0
    %254 = vmatmul.mubr.f32.gmra.mrb[0].mxu0 %v165
    %v255 = vpop.f32.mrb[0].mxu0
    %v256 = vadd.f32 0.0, %v255
    %v257 = vpop.f32.mrb[0].mxu0
    %258 = vmatprep.mubr.f32.mxu0 0.0
    %259 = vmatmul.mubr.f32.gmra.mrb[0].mxu0 %v166
    %v260 = vpop.f32.mrb[0].mxu0
    %v261 = vadd.f32 0.0, %v260
    %v262 = vpop.f32.mrb[0].mxu0
    %263 = vmatprep.mubr.f32.mxu0 0.0
    %264 = vmatmul.mubr.f32.gmra.mrb[0].mxu0 %v167
    %v265 = vpop.f32.mrb[0].mxu0
    %v266 = vadd.f32 0.0, %v265
    %v267 = vpop.f32.mrb[0].mxu0
    %268 = vmatprep.mubr.f32.mxu0 0.0
    %269 = vmatmul.mubr.f32.gmra.mrb[0].mxu0 %v168
    %v270 = vpop.f32.mrb[0].mxu0
    %v271 = vadd.f32 0.0, %v270
    %v272 = vpop.f32.mrb[0].mxu0
    %273 = vmatprep.mubr.f32.mxu0 0.0
    %274 = vmatmul.mubr.f32.gmra.mrb[0].mxu0 %v169
    %v275 = vpop.f32.mrb[0].mxu0
    %v276 = vadd.f32 0.0, %v275
    %v277 = vpop.f32.mrb[0].mxu0
    %278 = vmatprep.mubr.f32.mxu0 0.0
    %279 = vmatmul.mubr.f32.gmra.mrb[0].mxu0 %v170
    %v280 = vpop.f32.mrb[0].mxu0
    %v281 = vadd.f32 0.0, %v280
    %v282 = vpop.f32.mrb[0].mxu0
    %283 = vmatprep.mubr.f32.mxu0 0.0
    %284 = vmatmul.mubr.f32.gmra.mrb[0].mxu0 %v171
    %v285 = vpop.f32.mrb[0].mxu0
    %v286 = vadd.f32 0.0, %v285
    %v287 = vpop.f32.mrb[0].mxu0
    %288 = vmatprep.mubr.f32.mxu0 0.0
    %289 = vmatmul.mubr.f32.gmra.mrb[0].mxu0 %v172
    %v290 = vpop.f32.mrb[0].mxu0
    %v291 = vadd.f32 0.0, %v290
    %v292 = vpop.f32.mrb[0].mxu0
    %293 = vdwg.mxu0
    %v294 = vld [vmem:[%s7] sm:$0xff]
    %v295 = vld [vmem:[%s7 + $0x8] sm:$0xff]
    %v296 = vld [vmem:[%s7 + $0x10] sm:$0xff]
    %v297 = vld [vmem:[%s7 + $0x18] sm:$0xff]
    %s298 = scalar_lea.vmem %s9, 128
    %v299 = vld [vmem:[%s298] sm:$0xff]
    %v300 = vld [vmem:[%s298 + $0x8] sm:$0xff]
    %v301 = vld [vmem:[%s298 + $0x10] sm:$0xff]
    %v302 = vld [vmem:[%s298 + $0x18] sm:$0xff]
    %v303 = vld [vmem:[%s298 + $0x20] sm:$0xff]
    %v304 = vld [vmem:[%s298 + $0x28] sm:$0xff]
    %v305 = vld [vmem:[%s298 + $0x30] sm:$0xff]
    %v306 = vld [vmem:[%s298 + $0x38] sm:$0xff]
    %v307 = vld [vmem:[%s298 + $0x40] sm:$0xff]
    %v308 = vld [vmem:[%s298 + $0x48] sm:$0xff]
    %v309 = vld [vmem:[%s298 + $0x50] sm:$0xff]
    %v310 = vld [vmem:[%s298 + $0x58] sm:$0xff]
    %v311 = vld [vmem:[%s298 + $0x60] sm:$0xff]
    %v312 = vld [vmem:[%s298 + $0x68] sm:$0xff]
    %v313 = vld [vmem:[%s298 + $0x70] sm:$0xff]
    %v314 = vld [vmem:[%s298 + $0x78] sm:$0xff]
    %315 = vmatprep.subr.mxu0 0.0
    %316 = vmatpush1.msra.mxu0 %v299
    %317 = vmatprep.subr.mxu0 0.0
    %318 = vmatpush1.msra.mxu0 %v300
    %319 = vmatprep.subr.mxu0 0.0
    %320 = vmatpush1.msra.mxu0 %v301
    %321 = vmatprep.subr.mxu0 0.0
    %322 = vmatpush1.msra.mxu0 %v302
    %323 = vmatprep.subr.mxu0 0.0
    %324 = vmatpush1.msra.mxu0 %v303
    %325 = vmatprep.subr.mxu0 0.0
    %326 = vmatpush1.msra.mxu0 %v304
    %327 = vmatprep.subr.mxu0 0.0
    %328 = vmatpush1.msra.mxu0 %v305
    %329 = vmatprep.subr.mxu0 0.0
    %330 = vmatpush1.msra.mxu0 %v306
    %331 = vmatprep.subr.mxu0 0.0
    %332 = vmatpush1.msra.mxu0 %v307
    %333 = vmatprep.subr.mxu0 0.0
    %334 = vmatpush1.msra.mxu0 %v308
    %335 = vmatprep.subr.mxu0 0.0
    %336 = vmatpush1.msra.mxu0 %v309
    %337 = vmatprep.subr.mxu0 0.0
    %338 = vmatpush1.msra.mxu0 %v310
    %339 = vmatprep.subr.mxu0 0.0
    %340 = vmatpush1.msra.mxu0 %v311
    %341 = vmatprep.subr.mxu0 0.0
    %342 = vmatpush1.msra.mxu0 %v312
    %343 = vmatprep.subr.mxu0 0.0
    %344 = vmatpush1.msra.mxu0 %v313
    %345 = vmatprep.subr.mxu0 0.0
    %346 = vmatpush1.msra.mxu0 %v314
    %347 = vmatprep.subr.mxu0 0.0
    %348 = vmatpush1.msra.mxu0 0.0
    %349 = vmatprep.subr.mxu0 0.0
    %350 = vmatpush1.msra.mxu0 0.0
    %351 = vmatprep.subr.mxu0 0.0
    %352 = vmatpush1.msra.mxu0 0.0
    %353 = vmatprep.subr.mxu0 0.0
    %354 = vmatpush1.msra.mxu0 0.0
    %355 = vmatprep.subr.mxu0 0.0
    %356 = vmatpush1.msra.mxu0 0.0
    %357 = vmatprep.subr.mxu0 0.0
    %358 = vmatpush1.msra.mxu0 0.0
    %359 = vmatprep.subr.mxu0 0.0
    %360 = vmatpush1.msra.mxu0 0.0
    %361 = vmatprep.subr.mxu0 0.0
    %362 = vmatpush1.msra.mxu0 0.0
    %363 = vmatprep.subr.mxu0 0.0
    %364 = vmatpush1.msra.mxu0 0.0
    %365 = vmatprep.subr.mxu0 0.0
    %366 = vmatpush1.msra.mxu0 0.0
    %367 = vmatprep.subr.mxu0 0.0
    %368 = vmatpush1.msra.mxu0 0.0
    %369 = vmatprep.subr.mxu0 0.0
    %370 = vmatpush1.msra.mxu0 0.0
    %371 = vmatprep.subr.mxu0 0.0
    %372 = vmatpush1.msra.mxu0 0.0
    %373 = vmatprep.subr.mxu0 0.0
    %374 = vmatpush1.msra.mxu0 0.0
    %375 = vmatprep.subr.mxu0 0.0
    %376 = vmatpush1.msra.mxu0 0.0
    %377 = vmatprep.subr.mxu0 0.0
    %378 = vmatpush1.msra.mxu0 0.0
    %379 = vmatprep.mubr.f32.mxu0 0.0
    %380 = vmatmul.mubr.f32.gmra.mrb[0].mxu0 %v165
    %v381 = vpop.f32.mrb[0].mxu0
    %v382 = vadd.f32 0.0, %v381
    %v383 = vpop.f32.mrb[0].mxu0
    %384 = vmatprep.mubr.f32.mxu0 0.0
    %385 = vmatmul.mubr.f32.gmra.mrb[0].mxu0 %v166
    %v386 = vpop.f32.mrb[0].mxu0
    %v387 = vadd.f32 0.0, %v386
    %v388 = vpop.f32.mrb[0].mxu0
    %389 = vmatprep.mubr.f32.mxu0 0.0
    %390 = vmatmul.mubr.f32.gmra.mrb[0].mxu0 %v167
    %v391 = vpop.f32.mrb[0].mxu0
    %v392 = vadd.f32 0.0, %v391
    %v393 = vpop.f32.mrb[0].mxu0
    %394 = vmatprep.mubr.f32.mxu0 0.0
    %395 = vmatmul.mubr.f32.gmra.mrb[0].mxu0 %v168
    %v396 = vpop.f32.mrb[0].mxu0
    %v397 = vadd.f32 0.0, %v396
    %v398 = vpop.f32.mrb[0].mxu0
    %399 = vmatprep.mubr.f32.mxu0 0.0
    %400 = vmatmul.mubr.f32.gmra.mrb[0].mxu0 %v169
    %v401 = vpop.f32.mrb[0].mxu0
    %v402 = vadd.f32 0.0, %v401
    %v403 = vpop.f32.mrb[0].mxu0
    %404 = vmatprep.mubr.f32.mxu0 0.0
    %405 = vmatmul.mubr.f32.gmra.mrb[0].mxu0 %v170
    %v406 = vpop.f32.mrb[0].mxu0
    %v407 = vadd.f32 0.0, %v406
    %v408 = vpop.f32.mrb[0].mxu0
    %409 = vmatprep.mubr.f32.mxu0 0.0
    %410 = vmatmul.mubr.f32.gmra.mrb[0].mxu0 %v171
    %v411 = vpop.f32.mrb[0].mxu0
    %v412 = vadd.f32 0.0, %v411
    %v413 = vpop.f32.mrb[0].mxu0
    %414 = vmatprep.mubr.f32.mxu0 0.0
    %415 = vmatmul.mubr.f32.gmra.mrb[0].mxu0 %v172
    %v416 = vpop.f32.mrb[0].mxu0
    %v417 = vadd.f32 0.0, %v416
    %v418 = vpop.f32.mrb[0].mxu0
    %419 = vdwg.mxu0
    %s420 = scalar_lea.vmem %s7, 32
    %v421 = vld [vmem:[%s420] sm:$0xff]
    %v422 = vld [vmem:[%s420 + $0x8] sm:$0xff]
    %v423 = vld [vmem:[%s420 + $0x10] sm:$0xff]
    %v424 = vld [vmem:[%s420 + $0x18] sm:$0xff]
    %vm425 = vcmask 523264
    %v427 = vsel %vm425, %v421, 0
    %v430 = vsel %vm425, %v422, 0
    %v433 = vsel %vm425, %v423, 0
    %v436 = vsel %vm425, %v424, 0
    %438 = vmatprep.subr.mxu0 0.0
    %439 = vmatpush1.msra.mxu0 %v382
    %440 = vmatprep.subr.mxu0 0.0
    %441 = vmatpush1.msra.mxu0 %v387
    %442 = vmatprep.subr.mxu0 0.0
    %443 = vmatpush1.msra.mxu0 %v392
    %444 = vmatprep.subr.mxu0 0.0
    %445 = vmatpush1.msra.mxu0 %v397
    %446 = vmatprep.subr.mxu0 0.0
    %447 = vmatpush1.msra.mxu0 %v402
    %448 = vmatprep.subr.mxu0 0.0
    %449 = vmatpush1.msra.mxu0 %v407
    %450 = vmatprep.subr.mxu0 0.0
    %451 = vmatpush1.msra.mxu0 %v412
    %452 = vmatprep.subr.mxu0 0.0
    %453 = vmatpush1.msra.mxu0 %v417
    %454 = vmatprep.subr.mxu0 0.0
    %455 = vmatpush1.msra.mxu0 0.0
    %456 = vmatprep.subr.mxu0 0.0
    %457 = vmatpush1.msra.mxu0 0.0
    %458 = vmatprep.subr.mxu0 0.0
    %459 = vmatpush1.msra.mxu0 0.0
    %460 = vmatprep.subr.mxu0 0.0
    %461 = vmatpush1.msra.mxu0 0.0
    %462 = vmatprep.subr.mxu0 0.0
    %463 = vmatpush1.msra.mxu0 0.0
    %464 = vmatprep.subr.mxu0 0.0
    %465 = vmatpush1.msra.mxu0 0.0
    %466 = vmatprep.subr.mxu0 0.0
    %467 = vmatpush1.msra.mxu0 0.0
    %468 = vmatprep.subr.mxu0 0.0
    %469 = vmatpush1.msra.mxu0 0.0
    %470 = vmatprep.subr.mxu0 0.0
    %471 = vmatpush1.msra.mxu0 0.0
    %472 = vmatprep.subr.mxu0 0.0
    %473 = vmatpush1.msra.mxu0 0.0
    %474 = vmatprep.subr.mxu0 0.0
    %475 = vmatpush1.msra.mxu0 0.0
    %476 = vmatprep.subr.mxu0 0.0
    %477 = vmatpush1.msra.mxu0 0.0
    %478 = vmatprep.subr.mxu0 0.0
    %479 = vmatpush1.msra.mxu0 0.0
    %480 = vmatprep.subr.mxu0 0.0
    %481 = vmatpush1.msra.mxu0 0.0
    %482 = vmatprep.subr.mxu0 0.0
    %483 = vmatpush1.msra.mxu0 0.0
    %484 = vmatprep.subr.mxu0 0.0
    %485 = vmatpush1.msra.mxu0 0.0
    %486 = vmatprep.subr.mxu0 0.0
    %487 = vmatpush1.msra.mxu0 0.0
    %488 = vmatprep.subr.mxu0 0.0
    %489 = vmatpush1.msra.mxu0 0.0
    %490 = vmatprep.subr.mxu0 0.0
    %491 = vmatpush1.msra.mxu0 0.0
    %492 = vmatprep.subr.mxu0 0.0
    %493 = vmatpush1.msra.mxu0 0.0
    %494 = vmatprep.subr.mxu0 0.0
    %495 = vmatpush1.msra.mxu0 0.0
    %496 = vmatprep.subr.mxu0 0.0
    %497 = vmatpush1.msra.mxu0 0.0
    %498 = vmatprep.subr.mxu0 0.0
    %499 = vmatpush1.msra.mxu0 0.0
    %500 = vmatprep.subr.mxu0 0.0
    %501 = vmatpush1.msra.mxu0 0.0
    %502 = vmatprep.mubr.f32.mxu0 0.0
    %503 = vmatmul.mubr.f32.gmra.mrb[0].mxu0 %v427
    %v504 = vpop.f32.mrb[0].mxu0
    %v505 = vadd.f32 0.0, %v504
    %v506 = vpop.f32.mrb[0].mxu0
    %507 = vmatprep.mubr.f32.mxu0 0.0
    %508 = vmatmul.mubr.f32.gmra.mrb[0].mxu0 %v430
    %v509 = vpop.f32.mrb[0].mxu0
    %v510 = vadd.f32 0.0, %v509
    %v511 = vpop.f32.mrb[0].mxu0
    %512 = vmatprep.mubr.f32.mxu0 0.0
    %513 = vmatmul.mubr.f32.gmra.mrb[0].mxu0 %v433
    %v514 = vpop.f32.mrb[0].mxu0
    %v515 = vadd.f32 0.0, %v514
    %v516 = vpop.f32.mrb[0].mxu0
    %517 = vmatprep.mubr.f32.mxu0 0.0
    %518 = vmatmul.mubr.f32.gmra.mrb[0].mxu0 %v436
    %v519 = vpop.f32.mrb[0].mxu0
    %v520 = vadd.f32 0.0, %v519
    %v521 = vpop.f32.mrb[0].mxu0
    %522 = vdwg.mxu0
    %v524 = vsel %vm425, %v294, 0
    %v527 = vsel %vm425, %v295, 0
    %v530 = vsel %vm425, %v296, 0
    %v533 = vsel %vm425, %v297, 0
    %535 = vmatprep.subr.mxu0 0.0
    %536 = vmatpush1.msra.mxu0 %v256
    %537 = vmatprep.subr.mxu0 0.0
    %538 = vmatpush1.msra.mxu0 %v261
    %539 = vmatprep.subr.mxu0 0.0
    %540 = vmatpush1.msra.mxu0 %v266
    %541 = vmatprep.subr.mxu0 0.0
    %542 = vmatpush1.msra.mxu0 %v271
    %543 = vmatprep.subr.mxu0 0.0
    %544 = vmatpush1.msra.mxu0 %v276
    %545 = vmatprep.subr.mxu0 0.0
    %546 = vmatpush1.msra.mxu0 %v281
    %547 = vmatprep.subr.mxu0 0.0
    %548 = vmatpush1.msra.mxu0 %v286
    %549 = vmatprep.subr.mxu0 0.0
    %550 = vmatpush1.msra.mxu0 %v291
    %551 = vmatprep.subr.mxu0 0.0
    %552 = vmatpush1.msra.mxu0 0.0
    %553 = vmatprep.subr.mxu0 0.0
    %554 = vmatpush1.msra.mxu0 0.0
    %555 = vmatprep.subr.mxu0 0.0
    %556 = vmatpush1.msra.mxu0 0.0
    %557 = vmatprep.subr.mxu0 0.0
    %558 = vmatpush1.msra.mxu0 0.0
    %559 = vmatprep.subr.mxu0 0.0
    %560 = vmatpush1.msra.mxu0 0.0
    %561 = vmatprep.subr.mxu0 0.0
    %562 = vmatpush1.msra.mxu0 0.0
    %563 = vmatprep.subr.mxu0 0.0
    %564 = vmatpush1.msra.mxu0 0.0
    %565 = vmatprep.subr.mxu0 0.0
    %566 = vmatpush1.msra.mxu0 0.0
    %567 = vmatprep.subr.mxu0 0.0
    %568 = vmatpush1.msra.mxu0 0.0
    %569 = vmatprep.subr.mxu0 0.0
    %570 = vmatpush1.msra.mxu0 0.0
    %571 = vmatprep.subr.mxu0 0.0
    %572 = vmatpush1.msra.mxu0 0.0
    %573 = vmatprep.subr.mxu0 0.0
    %574 = vmatpush1.msra.mxu0 0.0
    %575 = vmatprep.subr.mxu0 0.0
    %576 = vmatpush1.msra.mxu0 0.0
    %577 = vmatprep.subr.mxu0 0.0
    %578 = vmatpush1.msra.mxu0 0.0
    %579 = vmatprep.subr.mxu0 0.0
    %580 = vmatpush1.msra.mxu0 0.0
    %581 = vmatprep.subr.mxu0 0.0
    %582 = vmatpush1.msra.mxu0 0.0
    %583 = vmatprep.subr.mxu0 0.0
    %584 = vmatpush1.msra.mxu0 0.0
    %585 = vmatprep.subr.mxu0 0.0
    %586 = vmatpush1.msra.mxu0 0.0
    %587 = vmatprep.subr.mxu0 0.0
    %588 = vmatpush1.msra.mxu0 0.0
    %589 = vmatprep.subr.mxu0 0.0
    %590 = vmatpush1.msra.mxu0 0.0
    %591 = vmatprep.subr.mxu0 0.0
    %592 = vmatpush1.msra.mxu0 0.0
    %593 = vmatprep.subr.mxu0 0.0
    %594 = vmatpush1.msra.mxu0 0.0
    %595 = vmatprep.subr.mxu0 0.0
    %596 = vmatpush1.msra.mxu0 0.0
    %597 = vmatprep.subr.mxu0 0.0
    %598 = vmatpush1.msra.mxu0 0.0
    %599 = vmatprep.mubr.f32.mxu0 0.0
    %600 = vmatmul.mubr.f32.gmra.mrb[0].mxu0 %v524
    %v601 = vpop.f32.mrb[0].mxu0
    %v602 = vadd.f32 %v505, %v601
    %v603 = vpop.f32.mrb[0].mxu0
    %604 = vmatprep.mubr.f32.mxu0 0.0
    %605 = vmatmul.mubr.f32.gmra.mrb[0].mxu0 %v527
    %v606 = vpop.f32.mrb[0].mxu0
    %v607 = vadd.f32 %v510, %v606
    %v608 = vpop.f32.mrb[0].mxu0
    %609 = vmatprep.mubr.f32.mxu0 0.0
    %610 = vmatmul.mubr.f32.gmra.mrb[0].mxu0 %v530
    %v611 = vpop.f32.mrb[0].mxu0
    %v612 = vadd.f32 %v515, %v611
    %v613 = vpop.f32.mrb[0].mxu0
    %614 = vmatprep.mubr.f32.mxu0 0.0
    %615 = vmatmul.mubr.f32.gmra.mrb[0].mxu0 %v533
    %v616 = vpop.f32.mrb[0].mxu0
    %v617 = vadd.f32 %v520, %v616
    %v618 = vpop.f32.mrb[0].mxu0
    %619 = vdwg.mxu0
    %s620 = scalar_lea.vmem %s9, 256
    %v621 = vld [vmem:[%s620] sm:$0xff]
    %v622 = vld [vmem:[%s620 + $0x8] sm:$0xff]
    %v623 = vld [vmem:[%s620 + $0x10] sm:$0xff]
    %v624 = vld [vmem:[%s620 + $0x18] sm:$0xff]
    %v625 = vld [vmem:[%s620 + $0x20] sm:$0xff]
    %v626 = vld [vmem:[%s620 + $0x28] sm:$0xff]
    %v627 = vld [vmem:[%s620 + $0x30] sm:$0xff]
    %v628 = vld [vmem:[%s620 + $0x38] sm:$0xff]
    %v629 = vld [vmem:[%s620 + $0x40] sm:$0xff]
    %v630 = vld [vmem:[%s620 + $0x48] sm:$0xff]
    %v631 = vld [vmem:[%s620 + $0x50] sm:$0xff]
    %v632 = vld [vmem:[%s620 + $0x58] sm:$0xff]
    %v633 = vld [vmem:[%s620 + $0x60] sm:$0xff]
    %v634 = vld [vmem:[%s620 + $0x68] sm:$0xff]
    %v635 = vld [vmem:[%s620 + $0x70] sm:$0xff]
    %v636 = vld [vmem:[%s620 + $0x78] sm:$0xff]
    %637 = vmatprep.subr.mxu0 0.0
    %638 = vmatpush1.msra.mxu0 %v621
    %639 = vmatprep.subr.mxu0 0.0
    %640 = vmatpush1.msra.mxu0 %v622
    %641 = vmatprep.subr.mxu0 0.0
    %642 = vmatpush1.msra.mxu0 %v623
    %643 = vmatprep.subr.mxu0 0.0
    %644 = vmatpush1.msra.mxu0 %v624
    %645 = vmatprep.subr.mxu0 0.0
    %646 = vmatpush1.msra.mxu0 %v625
    %647 = vmatprep.subr.mxu0 0.0
    %648 = vmatpush1.msra.mxu0 %v626
    %649 = vmatprep.subr.mxu0 0.0
    %650 = vmatpush1.msra.mxu0 %v627
    %651 = vmatprep.subr.mxu0 0.0
    %652 = vmatpush1.msra.mxu0 %v628
    %653 = vmatprep.subr.mxu0 0.0
    %654 = vmatpush1.msra.mxu0 %v629
    %655 = vmatprep.subr.mxu0 0.0
    %656 = vmatpush1.msra.mxu0 %v630
    %657 = vmatprep.subr.mxu0 0.0
    %658 = vmatpush1.msra.mxu0 %v631
    %659 = vmatprep.subr.mxu0 0.0
    %660 = vmatpush1.msra.mxu0 %v632
    %661 = vmatprep.subr.mxu0 0.0
    %662 = vmatpush1.msra.mxu0 %v633
    %663 = vmatprep.subr.mxu0 0.0
    %664 = vmatpush1.msra.mxu0 %v634
    %665 = vmatprep.subr.mxu0 0.0
    %666 = vmatpush1.msra.mxu0 %v635
    %667 = vmatprep.subr.mxu0 0.0
    %668 = vmatpush1.msra.mxu0 %v636
    %669 = vmatprep.subr.mxu0 0.0
    %670 = vmatpush1.msra.mxu0 0.0
    %671 = vmatprep.subr.mxu0 0.0
    %672 = vmatpush1.msra.mxu0 0.0
    %673 = vmatprep.subr.mxu0 0.0
    %674 = vmatpush1.msra.mxu0 0.0
    %675 = vmatprep.subr.mxu0 0.0
    %676 = vmatpush1.msra.mxu0 0.0
    %677 = vmatprep.subr.mxu0 0.0
    %678 = vmatpush1.msra.mxu0 0.0
    %679 = vmatprep.subr.mxu0 0.0
    %680 = vmatpush1.msra.mxu0 0.0
    %681 = vmatprep.subr.mxu0 0.0
    %682 = vmatpush1.msra.mxu0 0.0
    %683 = vmatprep.subr.mxu0 0.0
    %684 = vmatpush1.msra.mxu0 0.0
    %685 = vmatprep.subr.mxu0 0.0
    %686 = vmatpush1.msra.mxu0 0.0
    %687 = vmatprep.subr.mxu0 0.0
    %688 = vmatpush1.msra.mxu0 0.0
    %689 = vmatprep.subr.mxu0 0.0
    %690 = vmatpush1.msra.mxu0 0.0
    %691 = vmatprep.subr.mxu0 0.0
    %692 = vmatpush1.msra.mxu0 0.0
    %693 = vmatprep.subr.mxu0 0.0
    %694 = vmatpush1.msra.mxu0 0.0
    %695 = vmatprep.subr.mxu0 0.0
    %696 = vmatpush1.msra.mxu0 0.0
    %697 = vmatprep.subr.mxu0 0.0
    %698 = vmatpush1.msra.mxu0 0.0
    %699 = vmatprep.subr.mxu0 0.0
    %700 = vmatpush1.msra.mxu0 0.0
    %701 = vmatprep.mubr.f32.mxu0 0.0
    %702 = vmatmul.mubr.f32.gmra.mrb[0].mxu0 %v165
    %v703 = vpop.f32.mrb[0].mxu0
    %v704 = vadd.f32 0.0, %v703
    %v705 = vpop.f32.mrb[0].mxu0
    %706 = vmatprep.mubr.f32.mxu0 0.0
    %707 = vmatmul.mubr.f32.gmra.mrb[0].mxu0 %v166
    %v708 = vpop.f32.mrb[0].mxu0
    %v709 = vadd.f32 0.0, %v708
    %v710 = vpop.f32.mrb[0].mxu0
    %711 = vmatprep.mubr.f32.mxu0 0.0
    %712 = vmatmul.mubr.f32.gmra.mrb[0].mxu0 %v167
    %v713 = vpop.f32.mrb[0].mxu0
    %v714 = vadd.f32 0.0, %v713
    %v715 = vpop.f32.mrb[0].mxu0
    %716 = vmatprep.mubr.f32.mxu0 0.0
    %717 = vmatmul.mubr.f32.gmra.mrb[0].mxu0 %v168
    %v718 = vpop.f32.mrb[0].mxu0
    %v719 = vadd.f32 0.0, %v718
    %v720 = vpop.f32.mrb[0].mxu0
    %721 = vmatprep.mubr.f32.mxu0 0.0
    %722 = vmatmul.mubr.f32.gmra.mrb[0].mxu0 %v169
    %v723 = vpop.f32.mrb[0].mxu0
    %v724 = vadd.f32 0.0, %v723
    %v725 = vpop.f32.mrb[0].mxu0
    %726 = vmatprep.mubr.f32.mxu0 0.0
    %727 = vmatmul.mubr.f32.gmra.mrb[0].mxu0 %v170
    %v728 = vpop.f32.mrb[0].mxu0
    %v729 = vadd.f32 0.0, %v728
    %v730 = vpop.f32.mrb[0].mxu0
    %731 = vmatprep.mubr.f32.mxu0 0.0
    %732 = vmatmul.mubr.f32.gmra.mrb[0].mxu0 %v171
    %v733 = vpop.f32.mrb[0].mxu0
    %v734 = vadd.f32 0.0, %v733
    %v735 = vpop.f32.mrb[0].mxu0
    %736 = vmatprep.mubr.f32.mxu0 0.0
    %737 = vmatmul.mubr.f32.gmra.mrb[0].mxu0 %v172
    %v738 = vpop.f32.mrb[0].mxu0
    %v739 = vadd.f32 0.0, %v738
    %v740 = vpop.f32.mrb[0].mxu0
    %741 = vdwg.mxu0
    %s742 = scalar_lea.vmem %s7, 64
    %v743 = vld [vmem:[%s742] sm:$0xff]
    %v744 = vld [vmem:[%s742 + $0x8] sm:$0xff]
    %v745 = vld [vmem:[%s742 + $0x10] sm:$0xff]
    %v746 = vld [vmem:[%s742 + $0x18] sm:$0xff]
    %v748 = vsel %vm425, %v743, 0
    %v751 = vsel %vm425, %v744, 0
    %v754 = vsel %vm425, %v745, 0
    %v757 = vsel %vm425, %v746, 0
    %759 = vmatprep.subr.mxu0 0.0
    %760 = vmatpush1.msra.mxu0 %v704
    %761 = vmatprep.subr.mxu0 0.0
    %762 = vmatpush1.msra.mxu0 %v709
    %763 = vmatprep.subr.mxu0 0.0
    %764 = vmatpush1.msra.mxu0 %v714
    %765 = vmatprep.subr.mxu0 0.0
    %766 = vmatpush1.msra.mxu0 %v719
    %767 = vmatprep.subr.mxu0 0.0
    %768 = vmatpush1.msra.mxu0 %v724
    %769 = vmatprep.subr.mxu0 0.0
    %770 = vmatpush1.msra.mxu0 %v729
    %771 = vmatprep.subr.mxu0 0.0
    %772 = vmatpush1.msra.mxu0 %v734
    %773 = vmatprep.subr.mxu0 0.0
    %774 = vmatpush1.msra.mxu0 %v739
    %775 = vmatprep.subr.mxu0 0.0
    %776 = vmatpush1.msra.mxu0 0.0
    %777 = vmatprep.subr.mxu0 0.0
    %778 = vmatpush1.msra.mxu0 0.0
    %779 = vmatprep.subr.mxu0 0.0
    %780 = vmatpush1.msra.mxu0 0.0
    %781 = vmatprep.subr.mxu0 0.0
    %782 = vmatpush1.msra.mxu0 0.0
    %783 = vmatprep.subr.mxu0 0.0
    %784 = vmatpush1.msra.mxu0 0.0
    %785 = vmatprep.subr.mxu0 0.0
    %786 = vmatpush1.msra.mxu0 0.0
    %787 = vmatprep.subr.mxu0 0.0
    %788 = vmatpush1.msra.mxu0 0.0
    %789 = vmatprep.subr.mxu0 0.0
    %790 = vmatpush1.msra.mxu0 0.0
    %791 = vmatprep.subr.mxu0 0.0
    %792 = vmatpush1.msra.mxu0 0.0
    %793 = vmatprep.subr.mxu0 0.0
    %794 = vmatpush1.msra.mxu0 0.0
    %795 = vmatprep.subr.mxu0 0.0
    %796 = vmatpush1.msra.mxu0 0.0
    %797 = vmatprep.subr.mxu0 0.0
    %798 = vmatpush1.msra.mxu0 0.0
    %799 = vmatprep.subr.mxu0 0.0
    %800 = vmatpush1.msra.mxu0 0.0
    %801 = vmatprep.subr.mxu0 0.0
    %802 = vmatpush1.msra.mxu0 0.0
    %803 = vmatprep.subr.mxu0 0.0
    %804 = vmatpush1.msra.mxu0 0.0
    %805 = vmatprep.subr.mxu0 0.0
    %806 = vmatpush1.msra.mxu0 0.0
    %807 = vmatprep.subr.mxu0 0.0
    %808 = vmatpush1.msra.mxu0 0.0
    %809 = vmatprep.subr.mxu0 0.0
    %810 = vmatpush1.msra.mxu0 0.0
    %811 = vmatprep.subr.mxu0 0.0
    %812 = vmatpush1.msra.mxu0 0.0
    %813 = vmatprep.subr.mxu0 0.0
    %814 = vmatpush1.msra.mxu0 0.0
    %815 = vmatprep.subr.mxu0 0.0
    %816 = vmatpush1.msra.mxu0 0.0
    %817 = vmatprep.subr.mxu0 0.0
    %818 = vmatpush1.msra.mxu0 0.0
    %819 = vmatprep.subr.mxu0 0.0
    %820 = vmatpush1.msra.mxu0 0.0
    %821 = vmatprep.subr.mxu0 0.0
    %822 = vmatpush1.msra.mxu0 0.0
    %823 = vmatprep.mubr.f32.mxu0 0.0
    %824 = vmatmul.mubr.f32.gmra.mrb[0].mxu0 %v748
    %v825 = vpop.f32.mrb[0].mxu0
    %v826 = vadd.f32 0.0, %v825
    %v827 = vpop.f32.mrb[0].mxu0
    %828 = vmatprep.mubr.f32.mxu0 0.0
    %829 = vmatmul.mubr.f32.gmra.mrb[0].mxu0 %v751
    %v830 = vpop.f32.mrb[0].mxu0
    %v831 = vadd.f32 0.0, %v830
    %v832 = vpop.f32.mrb[0].mxu0
    %833 = vmatprep.mubr.f32.mxu0 0.0
    %834 = vmatmul.mubr.f32.gmra.mrb[0].mxu0 %v754
    %v835 = vpop.f32.mrb[0].mxu0
    %v836 = vadd.f32 0.0, %v835
    %v837 = vpop.f32.mrb[0].mxu0
    %838 = vmatprep.mubr.f32.mxu0 0.0
    %839 = vmatmul.mubr.f32.gmra.mrb[0].mxu0 %v757
    %v840 = vpop.f32.mrb[0].mxu0
    %v841 = vadd.f32 0.0, %v840
    %v842 = vpop.f32.mrb[0].mxu0
    %843 = vdwg.mxu0
    %v844 = vadd.f32 %v602, %v826
    %v845 = vadd.f32 %v607, %v831
    %v846 = vadd.f32 %v612, %v836
    %v847 = vadd.f32 %v617, %v841
    %s848 = scalar_lea.vmem %s9, 384
    %v849 = vld [vmem:[%s848] sm:$0xff]
    %v850 = vld [vmem:[%s848 + $0x8] sm:$0xff]
    %v851 = vld [vmem:[%s848 + $0x10] sm:$0xff]
    %v852 = vld [vmem:[%s848 + $0x18] sm:$0xff]
    %v853 = vld [vmem:[%s848 + $0x20] sm:$0xff]
    %v854 = vld [vmem:[%s848 + $0x28] sm:$0xff]
    %v855 = vld [vmem:[%s848 + $0x30] sm:$0xff]
    %v856 = vld [vmem:[%s848 + $0x38] sm:$0xff]
    %v857 = vld [vmem:[%s848 + $0x40] sm:$0xff]
    %v858 = vld [vmem:[%s848 + $0x48] sm:$0xff]
    %v859 = vld [vmem:[%s848 + $0x50] sm:$0xff]
    %v860 = vld [vmem:[%s848 + $0x58] sm:$0xff]
    %v861 = vld [vmem:[%s848 + $0x60] sm:$0xff]
    %v862 = vld [vmem:[%s848 + $0x68] sm:$0xff]
    %v863 = vld [vmem:[%s848 + $0x70] sm:$0xff]
    %v864 = vld [vmem:[%s848 + $0x78] sm:$0xff]
    %865 = vmatprep.subr.mxu0 0.0
    %866 = vmatpush1.msra.mxu0 %v849
    %867 = vmatprep.subr.mxu0 0.0
    %868 = vmatpush1.msra.mxu0 %v850
    %869 = vmatprep.subr.mxu0 0.0
    %870 = vmatpush1.msra.mxu0 %v851
    %871 = vmatprep.subr.mxu0 0.0
    %872 = vmatpush1.msra.mxu0 %v852
    %873 = vmatprep.subr.mxu0 0.0
    %874 = vmatpush1.msra.mxu0 %v853
    %875 = vmatprep.subr.mxu0 0.0
    %876 = vmatpush1.msra.mxu0 %v854
    %877 = vmatprep.subr.mxu0 0.0
    %878 = vmatpush1.msra.mxu0 %v855
    %879 = vmatprep.subr.mxu0 0.0
    %880 = vmatpush1.msra.mxu0 %v856
    %881 = vmatprep.subr.mxu0 0.0
    %882 = vmatpush1.msra.mxu0 %v857
    %883 = vmatprep.subr.mxu0 0.0
    %884 = vmatpush1.msra.mxu0 %v858
    %885 = vmatprep.subr.mxu0 0.0
    %886 = vmatpush1.msra.mxu0 %v859
    %887 = vmatprep.subr.mxu0 0.0
    %888 = vmatpush1.msra.mxu0 %v860
    %889 = vmatprep.subr.mxu0 0.0
    %890 = vmatpush1.msra.mxu0 %v861
    %891 = vmatprep.subr.mxu0 0.0
    %892 = vmatpush1.msra.mxu0 %v862
    %893 = vmatprep.subr.mxu0 0.0
    %894 = vmatpush1.msra.mxu0 %v863
    %895 = vmatprep.subr.mxu0 0.0
    %896 = vmatpush1.msra.mxu0 %v864
    %897 = vmatprep.subr.mxu0 0.0
    %898 = vmatpush1.msra.mxu0 0.0
    %899 = vmatprep.subr.mxu0 0.0
    %900 = vmatpush1.msra.mxu0 0.0
    %901 = vmatprep.subr.mxu0 0.0
    %902 = vmatpush1.msra.mxu0 0.0
    %903 = vmatprep.subr.mxu0 0.0
    %904 = vmatpush1.msra.mxu0 0.0
    %905 = vmatprep.subr.mxu0 0.0
    %906 = vmatpush1.msra.mxu0 0.0
    %907 = vmatprep.subr.mxu0 0.0
    %908 = vmatpush1.msra.mxu0 0.0
    %909 = vmatprep.subr.mxu0 0.0
    %910 = vmatpush1.msra.mxu0 0.0
    %911 = vmatprep.subr.mxu0 0.0
    %912 = vmatpush1.msra.mxu0 0.0
    %913 = vmatprep.subr.mxu0 0.0
    %914 = vmatpush1.msra.mxu0 0.0
    %915 = vmatprep.subr.mxu0 0.0
    %916 = vmatpush1.msra.mxu0 0.0
    %917 = vmatprep.subr.mxu0 0.0
    %918 = vmatpush1.msra.mxu0 0.0
    %919 = vmatprep.subr.mxu0 0.0
    %920 = vmatpush1.msra.mxu0 0.0
    %921 = vmatprep.subr.mxu0 0.0
    %922 = vmatpush1.msra.mxu0 0.0
    %923 = vmatprep.subr.mxu0 0.0
    %924 = vmatpush1.msra.mxu0 0.0
    %925 = vmatprep.subr.mxu0 0.0
    %926 = vmatpush1.msra.mxu0 0.0
    %927 = vmatprep.subr.mxu0 0.0
    %928 = vmatpush1.msra.mxu0 0.0
    %929 = vmatprep.mubr.f32.mxu0 0.0
    %930 = vmatmul.mubr.f32.gmra.mrb[0].mxu0 %v165
    %v931 = vpop.f32.mrb[0].mxu0
    %v932 = vadd.f32 0.0, %v931
    %v933 = vpop.f32.mrb[0].mxu0
    %934 = vmatprep.mubr.f32.mxu0 0.0
    %935 = vmatmul.mubr.f32.gmra.mrb[0].mxu0 %v166
    %v936 = vpop.f32.mrb[0].mxu0
    %v937 = vadd.f32 0.0, %v936
    %v938 = vpop.f32.mrb[0].mxu0
    %939 = vmatprep.mubr.f32.mxu0 0.0
    %940 = vmatmul.mubr.f32.gmra.mrb[0].mxu0 %v167
    %v941 = vpop.f32.mrb[0].mxu0
    %v942 = vadd.f32 0.0, %v941
    %v943 = vpop.f32.mrb[0].mxu0
    %944 = vmatprep.mubr.f32.mxu0 0.0
    %945 = vmatmul.mubr.f32.gmra.mrb[0].mxu0 %v168
    %v946 = vpop.f32.mrb[0].mxu0
    %v947 = vadd.f32 0.0, %v946
    %v948 = vpop.f32.mrb[0].mxu0
    %949 = vmatprep.mubr.f32.mxu0 0.0
    %950 = vmatmul.mubr.f32.gmra.mrb[0].mxu0 %v169
    %v951 = vpop.f32.mrb[0].mxu0
    %v952 = vadd.f32 0.0, %v951
    %v953 = vpop.f32.mrb[0].mxu0
    %954 = vmatprep.mubr.f32.mxu0 0.0
    %955 = vmatmul.mubr.f32.gmra.mrb[0].mxu0 %v170
    %v956 = vpop.f32.mrb[0].mxu0
    %v957 = vadd.f32 0.0, %v956
    %v958 = vpop.f32.mrb[0].mxu0
    %959 = vmatprep.mubr.f32.mxu0 0.0
    %960 = vmatmul.mubr.f32.gmra.mrb[0].mxu0 %v171
    %v961 = vpop.f32.mrb[0].mxu0
    %v962 = vadd.f32 0.0, %v961
    %v963 = vpop.f32.mrb[0].mxu0
    %964 = vmatprep.mubr.f32.mxu0 0.0
    %965 = vmatmul.mubr.f32.gmra.mrb[0].mxu0 %v172
    %v966 = vpop.f32.mrb[0].mxu0
    %v967 = vadd.f32 0.0, %v966
    %v968 = vpop.f32.mrb[0].mxu0
    %969 = vdwg.mxu0
    %s970 = scalar_lea.vmem %s7, 96
    %v971 = vld [vmem:[%s970] sm:$0xff]
    %v972 = vld [vmem:[%s970 + $0x8] sm:$0xff]
    %v973 = vld [vmem:[%s970 + $0x10] sm:$0xff]
    %v974 = vld [vmem:[%s970 + $0x18] sm:$0xff]
    %v976 = vsel %vm425, %v971, 0
    %v979 = vsel %vm425, %v972, 0
    %v982 = vsel %vm425, %v973, 0
    %v985 = vsel %vm425, %v974, 0
    %987 = vmatprep.subr.mxu0 0.0
    %988 = vmatpush1.msra.mxu0 %v932
    %989 = vmatprep.subr.mxu0 0.0
    %990 = vmatpush1.msra.mxu0 %v937
    %991 = vmatprep.subr.mxu0 0.0
    %992 = vmatpush1.msra.mxu0 %v942
    %993 = vmatprep.subr.mxu0 0.0
    %994 = vmatpush1.msra.mxu0 %v947
    %995 = vmatprep.subr.mxu0 0.0
    %996 = vmatpush1.msra.mxu0 %v952
    %997 = vmatprep.subr.mxu0 0.0
    %998 = vmatpush1.msra.mxu0 %v957
    %999 = vmatprep.subr.mxu0 0.0
    %1000 = vmatpush1.msra.mxu0 %v962
    %1001 = vmatprep.subr.mxu0 0.0
    %1002 = vmatpush1.msra.mxu0 %v967
    %1003 = vmatprep.subr.mxu0 0.0
    %1004 = vmatpush1.msra.mxu0 0.0
    %1005 = vmatprep.subr.mxu0 0.0
    %1006 = vmatpush1.msra.mxu0 0.0
    %1007 = vmatprep.subr.mxu0 0.0
    %1008 = vmatpush1.msra.mxu0 0.0
    %1009 = vmatprep.subr.mxu0 0.0
    %1010 = vmatpush1.msra.mxu0 0.0
    %1011 = vmatprep.subr.mxu0 0.0
    %1012 = vmatpush1.msra.mxu0 0.0
    %1013 = vmatprep.subr.mxu0 0.0
    %1014 = vmatpush1.msra.mxu0 0.0
    %1015 = vmatprep.subr.mxu0 0.0
    %1016 = vmatpush1.msra.mxu0 0.0
    %1017 = vmatprep.subr.mxu0 0.0
    %1018 = vmatpush1.msra.mxu0 0.0
    %1019 = vmatprep.subr.mxu0 0.0
    %1020 = vmatpush1.msra.mxu0 0.0
    %1021 = vmatprep.subr.mxu0 0.0
    %1022 = vmatpush1.msra.mxu0 0.0
    %1023 = vmatprep.subr.mxu0 0.0
    %1024 = vmatpush1.msra.mxu0 0.0
    %1025 = vmatprep.subr.mxu0 0.0
    %1026 = vmatpush1.msra.mxu0 0.0
    %1027 = vmatprep.subr.mxu0 0.0
    %1028 = vmatpush1.msra.mxu0 0.0
    %1029 = vmatprep.subr.mxu0 0.0
    %1030 = vmatpush1.msra.mxu0 0.0
    %1031 = vmatprep.subr.mxu0 0.0
    %1032 = vmatpush1.msra.mxu0 0.0
    %1033 = vmatprep.subr.mxu0 0.0
    %1034 = vmatpush1.msra.mxu0 0.0
    %1035 = vmatprep.subr.mxu0 0.0
    %1036 = vmatpush1.msra.mxu0 0.0
    %1037 = vmatprep.subr.mxu0 0.0
    %1038 = vmatpush1.msra.mxu0 0.0
    %1039 = vmatprep.subr.mxu0 0.0
    %1040 = vmatpush1.msra.mxu0 0.0
    %1041 = vmatprep.subr.mxu0 0.0
    %1042 = vmatpush1.msra.mxu0 0.0
    %1043 = vmatprep.subr.mxu0 0.0
    %1044 = vmatpush1.msra.mxu0 0.0
    %1045 = vmatprep.subr.mxu0 0.0
    %1046 = vmatpush1.msra.mxu0 0.0
    %1047 = vmatprep.subr.mxu0 0.0
    %1048 = vmatpush1.msra.mxu0 0.0
    %1049 = vmatprep.subr.mxu0 0.0
    %1050 = vmatpush1.msra.mxu0 0.0
    %1051 = vmatprep.mubr.f32.mxu0 0.0
    %1052 = vmatmul.mubr.f32.gmra.mrb[0].mxu0 %v976
    %v1053 = vpop.f32.mrb[0].mxu0
    %v1054 = vadd.f32 0.0, %v1053
    %v1055 = vpop.f32.mrb[0].mxu0
    %1056 = vmatprep.mubr.f32.mxu0 0.0
    %1057 = vmatmul.mubr.f32.gmra.mrb[0].mxu0 %v979
    %v1058 = vpop.f32.mrb[0].mxu0
    %v1059 = vadd.f32 0.0, %v1058
    %v1060 = vpop.f32.mrb[0].mxu0
    %1061 = vmatprep.mubr.f32.mxu0 0.0
    %1062 = vmatmul.mubr.f32.gmra.mrb[0].mxu0 %v982
    %v1063 = vpop.f32.mrb[0].mxu0
    %v1064 = vadd.f32 0.0, %v1063
    %v1065 = vpop.f32.mrb[0].mxu0
    %1066 = vmatprep.mubr.f32.mxu0 0.0
    %1067 = vmatmul.mubr.f32.gmra.mrb[0].mxu0 %v985
    %v1068 = vpop.f32.mrb[0].mxu0
    %v1069 = vadd.f32 0.0, %v1068
    %v1070 = vpop.f32.mrb[0].mxu0
    %1071 = vdwg.mxu0
    %v1072 = vadd.f32 %v844, %v1054
    %v1073 = vadd.f32 %v845, %v1059
    %v1074 = vadd.f32 %v846, %v1064
    %v1075 = vadd.f32 %v847, %v1069
    %s1076 = scalar_lea.vmem %s9, 512
    %v1077 = vld [vmem:[%s1076] sm:$0xff]
    %v1078 = vld [vmem:[%s1076 + $0x8] sm:$0xff]
    %v1079 = vld [vmem:[%s1076 + $0x10] sm:$0xff]
    %v1080 = vld [vmem:[%s1076 + $0x18] sm:$0xff]
    %v1081 = vld [vmem:[%s1076 + $0x20] sm:$0xff]
    %v1082 = vld [vmem:[%s1076 + $0x28] sm:$0xff]
    %v1083 = vld [vmem:[%s1076 + $0x30] sm:$0xff]
    %v1084 = vld [vmem:[%s1076 + $0x38] sm:$0xff]
    %v1085 = vld [vmem:[%s1076 + $0x40] sm:$0xff]
    %v1086 = vld [vmem:[%s1076 + $0x48] sm:$0xff]
    %v1087 = vld [vmem:[%s1076 + $0x50] sm:$0xff]
    %v1088 = vld [vmem:[%s1076 + $0x58] sm:$0xff]
    %v1089 = vld [vmem:[%s1076 + $0x60] sm:$0xff]
    %v1090 = vld [vmem:[%s1076 + $0x68] sm:$0xff]
    %v1091 = vld [vmem:[%s1076 + $0x70] sm:$0xff]
    %v1092 = vld [vmem:[%s1076 + $0x78] sm:$0xff]
    %1093 = vmatprep.subr.mxu0 0.0
    %1094 = vmatpush1.msra.mxu0 %v1077
    %1095 = vmatprep.subr.mxu0 0.0
    %1096 = vmatpush1.msra.mxu0 %v1078
    %1097 = vmatprep.subr.mxu0 0.0
    %1098 = vmatpush1.msra.mxu0 %v1079
    %1099 = vmatprep.subr.mxu0 0.0
    %1100 = vmatpush1.msra.mxu0 %v1080
    %1101 = vmatprep.subr.mxu0 0.0
    %1102 = vmatpush1.msra.mxu0 %v1081
    %1103 = vmatprep.subr.mxu0 0.0
    %1104 = vmatpush1.msra.mxu0 %v1082
    %1105 = vmatprep.subr.mxu0 0.0
    %1106 = vmatpush1.msra.mxu0 %v1083
    %1107 = vmatprep.subr.mxu0 0.0
    %1108 = vmatpush1.msra.mxu0 %v1084
    %1109 = vmatprep.subr.mxu0 0.0
    %1110 = vmatpush1.msra.mxu0 %v1085
    %1111 = vmatprep.subr.mxu0 0.0
    %1112 = vmatpush1.msra.mxu0 %v1086
    %1113 = vmatprep.subr.mxu0 0.0
    %1114 = vmatpush1.msra.mxu0 %v1087
    %1115 = vmatprep.subr.mxu0 0.0
    %1116 = vmatpush1.msra.mxu0 %v1088
    %1117 = vmatprep.subr.mxu0 0.0
    %1118 = vmatpush1.msra.mxu0 %v1089
    %1119 = vmatprep.subr.mxu0 0.0
    %1120 = vmatpush1.msra.mxu0 %v1090
    %1121 = vmatprep.subr.mxu0 0.0
    %1122 = vmatpush1.msra.mxu0 %v1091
    %1123 = vmatprep.subr.mxu0 0.0
    %1124 = vmatpush1.msra.mxu0 %v1092
    %1125 = vmatprep.subr.mxu0 0.0
    %1126 = vmatpush1.msra.mxu0 0.0
    %1127 = vmatprep.subr.mxu0 0.0
    %1128 = vmatpush1.msra.mxu0 0.0
    %1129 = vmatprep.subr.mxu0 0.0
    %1130 = vmatpush1.msra.mxu0 0.0
    %1131 = vmatprep.subr.mxu0 0.0
    %1132 = vmatpush1.msra.mxu0 0.0
    %1133 = vmatprep.subr.mxu0 0.0
    %1134 = vmatpush1.msra.mxu0 0.0
    %1135 = vmatprep.subr.mxu0 0.0
    %1136 = vmatpush1.msra.mxu0 0.0
    %1137 = vmatprep.subr.mxu0 0.0
    %1138 = vmatpush1.msra.mxu0 0.0
    %1139 = vmatprep.subr.mxu0 0.0
    %1140 = vmatpush1.msra.mxu0 0.0
    %1141 = vmatprep.subr.mxu0 0.0
    %1142 = vmatpush1.msra.mxu0 0.0
    %1143 = vmatprep.subr.mxu0 0.0
    %1144 = vmatpush1.msra.mxu0 0.0
    %1145 = vmatprep.subr.mxu0 0.0
    %1146 = vmatpush1.msra.mxu0 0.0
    %1147 = vmatprep.subr.mxu0 0.0
    %1148 = vmatpush1.msra.mxu0 0.0
    %1149 = vmatprep.subr.mxu0 0.0
    %1150 = vmatpush1.msra.mxu0 0.0
    %1151 = vmatprep.subr.mxu0 0.0
    %1152 = vmatpush1.msra.mxu0 0.0
    %1153 = vmatprep.subr.mxu0 0.0
    %1154 = vmatpush1.msra.mxu0 0.0
    %1155 = vmatprep.subr.mxu0 0.0
    %1156 = vmatpush1.msra.mxu0 0.0
    %1157 = vmatprep.mubr.f32.mxu0 0.0
    %1158 = vmatmul.mubr.f32.gmra.mrb[0].mxu0 %v165
    %v1159 = vpop.f32.mrb[0].mxu0
    %v1160 = vadd.f32 0.0, %v1159
    %v1161 = vpop.f32.mrb[0].mxu0
    %1162 = vmatprep.mubr.f32.mxu0 0.0
    %1163 = vmatmul.mubr.f32.gmra.mrb[0].mxu0 %v166
    %v1164 = vpop.f32.mrb[0].mxu0
    %v1165 = vadd.f32 0.0, %v1164
    %v1166 = vpop.f32.mrb[0].mxu0
    %1167 = vmatprep.mubr.f32.mxu0 0.0
    %1168 = vmatmul.mubr.f32.gmra.mrb[0].mxu0 %v167
    %v1169 = vpop.f32.mrb[0].mxu0
    %v1170 = vadd.f32 0.0, %v1169
    %v1171 = vpop.f32.mrb[0].mxu0
    %1172 = vmatprep.mubr.f32.mxu0 0.0
    %1173 = vmatmul.mubr.f32.gmra.mrb[0].mxu0 %v168
    %v1174 = vpop.f32.mrb[0].mxu0
    %v1175 = vadd.f32 0.0, %v1174
    %v1176 = vpop.f32.mrb[0].mxu0
    %1177 = vmatprep.mubr.f32.mxu0 0.0
    %1178 = vmatmul.mubr.f32.gmra.mrb[0].mxu0 %v169
    %v1179 = vpop.f32.mrb[0].mxu0
    %v1180 = vadd.f32 0.0, %v1179
    %v1181 = vpop.f32.mrb[0].mxu0
    %1182 = vmatprep.mubr.f32.mxu0 0.0
    %1183 = vmatmul.mubr.f32.gmra.mrb[0].mxu0 %v170
    %v1184 = vpop.f32.mrb[0].mxu0
    %v1185 = vadd.f32 0.0, %v1184
    %v1186 = vpop.f32.mrb[0].mxu0
    %1187 = vmatprep.mubr.f32.mxu0 0.0
    %1188 = vmatmul.mubr.f32.gmra.mrb[0].mxu0 %v171
    %v1189 = vpop.f32.mrb[0].mxu0
    %v1190 = vadd.f32 0.0, %v1189
    %v1191 = vpop.f32.mrb[0].mxu0
    %1192 = vmatprep.mubr.f32.mxu0 0.0
    %1193 = vmatmul.mubr.f32.gmra.mrb[0].mxu0 %v172
    %v1194 = vpop.f32.mrb[0].mxu0
    %v1195 = vadd.f32 0.0, %v1194
    %v1196 = vpop.f32.mrb[0].mxu0
    %1197 = vdwg.mxu0
    %s1198 = scalar_lea.vmem %s7, 128
    %v1199 = vld [vmem:[%s1198] sm:$0xff]
    %v1200 = vld [vmem:[%s1198 + $0x8] sm:$0xff]
    %v1201 = vld [vmem:[%s1198 + $0x10] sm:$0xff]
    %v1202 = vld [vmem:[%s1198 + $0x18] sm:$0xff]
    %v1204 = vsel %vm425, %v1199, 0
    %v1207 = vsel %vm425, %v1200, 0
    %v1210 = vsel %vm425, %v1201, 0
    %v1213 = vsel %vm425, %v1202, 0
    %1215 = vmatprep.subr.mxu0 0.0
    %1216 = vmatpush1.msra.mxu0 %v1160
    %1217 = vmatprep.subr.mxu0 0.0
    %1218 = vmatpush1.msra.mxu0 %v1165
    %1219 = vmatprep.subr.mxu0 0.0
    %1220 = vmatpush1.msra.mxu0 %v1170
    %1221 = vmatprep.subr.mxu0 0.0
    %1222 = vmatpush1.msra.mxu0 %v1175
    %1223 = vmatprep.subr.mxu0 0.0
    %1224 = vmatpush1.msra.mxu0 %v1180
    %1225 = vmatprep.subr.mxu0 0.0
    %1226 = vmatpush1.msra.mxu0 %v1185
    %1227 = vmatprep.subr.mxu0 0.0
    %1228 = vmatpush1.msra.mxu0 %v1190
    %1229 = vmatprep.subr.mxu0 0.0
    %1230 = vmatpush1.msra.mxu0 %v1195
    %1231 = vmatprep.subr.mxu0 0.0
    %1232 = vmatpush1.msra.mxu0 0.0
    %1233 = vmatprep.subr.mxu0 0.0
    %1234 = vmatpush1.msra.mxu0 0.0
    %1235 = vmatprep.subr.mxu0 0.0
    %1236 = vmatpush1.msra.mxu0 0.0
    %1237 = vmatprep.subr.mxu0 0.0
    %1238 = vmatpush1.msra.mxu0 0.0
    %1239 = vmatprep.subr.mxu0 0.0
    %1240 = vmatpush1.msra.mxu0 0.0
    %1241 = vmatprep.subr.mxu0 0.0
    %1242 = vmatpush1.msra.mxu0 0.0
    %1243 = vmatprep.subr.mxu0 0.0
    %1244 = vmatpush1.msra.mxu0 0.0
    %1245 = vmatprep.subr.mxu0 0.0
    %1246 = vmatpush1.msra.mxu0 0.0
    %1247 = vmatprep.subr.mxu0 0.0
    %1248 = vmatpush1.msra.mxu0 0.0
    %1249 = vmatprep.subr.mxu0 0.0
    %1250 = vmatpush1.msra.mxu0 0.0
    %1251 = vmatprep.subr.mxu0 0.0
    %1252 = vmatpush1.msra.mxu0 0.0
    %1253 = vmatprep.subr.mxu0 0.0
    %1254 = vmatpush1.msra.mxu0 0.0
    %1255 = vmatprep.subr.mxu0 0.0
    %1256 = vmatpush1.msra.mxu0 0.0
    %1257 = vmatprep.subr.mxu0 0.0
    %1258 = vmatpush1.msra.mxu0 0.0
    %1259 = vmatprep.subr.mxu0 0.0
    %1260 = vmatpush1.msra.mxu0 0.0
    %1261 = vmatprep.subr.mxu0 0.0
    %1262 = vmatpush1.msra.mxu0 0.0
    %1263 = vmatprep.subr.mxu0 0.0
    %1264 = vmatpush1.msra.mxu0 0.0
    %1265 = vmatprep.subr.mxu0 0.0
    %1266 = vmatpush1.msra.mxu0 0.0
    %1267 = vmatprep.subr.mxu0 0.0
    %1268 = vmatpush1.msra.mxu0 0.0
    %1269 = vmatprep.subr.mxu0 0.0
    %1270 = vmatpush1.msra.mxu0 0.0
    %1271 = vmatprep.subr.mxu0 0.0
    %1272 = vmatpush1.msra.mxu0 0.0
    %1273 = vmatprep.subr.mxu0 0.0
    %1274 = vmatpush1.msra.mxu0 0.0
    %1275 = vmatprep.subr.mxu0 0.0
    %1276 = vmatpush1.msra.mxu0 0.0
    %1277 = vmatprep.subr.mxu0 0.0
    %1278 = vmatpush1.msra.mxu0 0.0
    %1279 = vmatprep.mubr.f32.mxu0 0.0
    %1280 = vmatmul.mubr.f32.gmra.mrb[0].mxu0 %v1204
    %v1281 = vpop.f32.mrb[0].mxu0
    %v1282 = vadd.f32 0.0, %v1281
    %v1283 = vpop.f32.mrb[0].mxu0
    %1284 = vmatprep.mubr.f32.mxu0 0.0
    %1285 = vmatmul.mubr.f32.gmra.mrb[0].mxu0 %v1207
    %v1286 = vpop.f32.mrb[0].mxu0
    %v1287 = vadd.f32 0.0, %v1286
    %v1288 = vpop.f32.mrb[0].mxu0
    %1289 = vmatprep.mubr.f32.mxu0 0.0
    %1290 = vmatmul.mubr.f32.gmra.mrb[0].mxu0 %v1210
    %v1291 = vpop.f32.mrb[0].mxu0
    %v1292 = vadd.f32 0.0, %v1291
    %v1293 = vpop.f32.mrb[0].mxu0
    %1294 = vmatprep.mubr.f32.mxu0 0.0
    %1295 = vmatmul.mubr.f32.gmra.mrb[0].mxu0 %v1213
    %v1296 = vpop.f32.mrb[0].mxu0
    %v1297 = vadd.f32 0.0, %v1296
    %v1298 = vpop.f32.mrb[0].mxu0
    %1299 = vdwg.mxu0
    %v1300 = vadd.f32 %v1072, %v1282
    %v1301 = vadd.f32 %v1073, %v1287
    %v1302 = vadd.f32 %v1074, %v1292
    %v1303 = vadd.f32 %v1075, %v1297
    %s1304 = scalar_lea.vmem %s9, 640
    %v1305 = vld [vmem:[%s1304] sm:$0xff]
    %v1306 = vld [vmem:[%s1304 + $0x8] sm:$0xff]
    %v1307 = vld [vmem:[%s1304 + $0x10] sm:$0xff]
    %v1308 = vld [vmem:[%s1304 + $0x18] sm:$0xff]
    %v1309 = vld [vmem:[%s1304 + $0x20] sm:$0xff]
    %v1310 = vld [vmem:[%s1304 + $0x28] sm:$0xff]
    %v1311 = vld [vmem:[%s1304 + $0x30] sm:$0xff]
    %v1312 = vld [vmem:[%s1304 + $0x38] sm:$0xff]
    %v1313 = vld [vmem:[%s1304 + $0x40] sm:$0xff]
    %v1314 = vld [vmem:[%s1304 + $0x48] sm:$0xff]
    %v1315 = vld [vmem:[%s1304 + $0x50] sm:$0xff]
    %v1316 = vld [vmem:[%s1304 + $0x58] sm:$0xff]
    %v1317 = vld [vmem:[%s1304 + $0x60] sm:$0xff]
    %v1318 = vld [vmem:[%s1304 + $0x68] sm:$0xff]
    %v1319 = vld [vmem:[%s1304 + $0x70] sm:$0xff]
    %v1320 = vld [vmem:[%s1304 + $0x78] sm:$0xff]
    %1321 = vmatprep.subr.mxu0 0.0
    %1322 = vmatpush1.msra.mxu0 %v1305
    %1323 = vmatprep.subr.mxu0 0.0
    %1324 = vmatpush1.msra.mxu0 %v1306
    %1325 = vmatprep.subr.mxu0 0.0
    %1326 = vmatpush1.msra.mxu0 %v1307
    %1327 = vmatprep.subr.mxu0 0.0
    %1328 = vmatpush1.msra.mxu0 %v1308
    %1329 = vmatprep.subr.mxu0 0.0
    %1330 = vmatpush1.msra.mxu0 %v1309
    %1331 = vmatprep.subr.mxu0 0.0
    %1332 = vmatpush1.msra.mxu0 %v1310
    %1333 = vmatprep.subr.mxu0 0.0
    %1334 = vmatpush1.msra.mxu0 %v1311
    %1335 = vmatprep.subr.mxu0 0.0
    %1336 = vmatpush1.msra.mxu0 %v1312
    %1337 = vmatprep.subr.mxu0 0.0
    %1338 = vmatpush1.msra.mxu0 %v1313
    %1339 = vmatprep.subr.mxu0 0.0
    %1340 = vmatpush1.msra.mxu0 %v1314
    %1341 = vmatprep.subr.mxu0 0.0
    %1342 = vmatpush1.msra.mxu0 %v1315
    %1343 = vmatprep.subr.mxu0 0.0
    %1344 = vmatpush1.msra.mxu0 %v1316
    %1345 = vmatprep.subr.mxu0 0.0
    %1346 = vmatpush1.msra.mxu0 %v1317
    %1347 = vmatprep.subr.mxu0 0.0
    %1348 = vmatpush1.msra.mxu0 %v1318
    %1349 = vmatprep.subr.mxu0 0.0
    %1350 = vmatpush1.msra.mxu0 %v1319
    %1351 = vmatprep.subr.mxu0 0.0
    %1352 = vmatpush1.msra.mxu0 %v1320
    %1353 = vmatprep.subr.mxu0 0.0
    %1354 = vmatpush1.msra.mxu0 0.0
    %1355 = vmatprep.subr.mxu0 0.0
    %1356 = vmatpush1.msra.mxu0 0.0
    %1357 = vmatprep.subr.mxu0 0.0
    %1358 = vmatpush1.msra.mxu0 0.0
    %1359 = vmatprep.subr.mxu0 0.0
    %1360 = vmatpush1.msra.mxu0 0.0
    %1361 = vmatprep.subr.mxu0 0.0
    %1362 = vmatpush1.msra.mxu0 0.0
    %1363 = vmatprep.subr.mxu0 0.0
    %1364 = vmatpush1.msra.mxu0 0.0
    %1365 = vmatprep.subr.mxu0 0.0
    %1366 = vmatpush1.msra.mxu0 0.0
    %1367 = vmatprep.subr.mxu0 0.0
    %1368 = vmatpush1.msra.mxu0 0.0
    %1369 = vmatprep.subr.mxu0 0.0
    %1370 = vmatpush1.msra.mxu0 0.0
    %1371 = vmatprep.subr.mxu0 0.0
    %1372 = vmatpush1.msra.mxu0 0.0
    %1373 = vmatprep.subr.mxu0 0.0
    %1374 = vmatpush1.msra.mxu0 0.0
    %1375 = vmatprep.subr.mxu0 0.0
    %1376 = vmatpush1.msra.mxu0 0.0
    %1377 = vmatprep.subr.mxu0 0.0
    %1378 = vmatpush1.msra.mxu0 0.0
    %1379 = vmatprep.subr.mxu0 0.0
    %1380 = vmatpush1.msra.mxu0 0.0
    %1381 = vmatprep.subr.mxu0 0.0
    %1382 = vmatpush1.msra.mxu0 0.0
    %1383 = vmatprep.subr.mxu0 0.0
    %1384 = vmatpush1.msra.mxu0 0.0
    %1385 = vmatprep.mubr.f32.mxu0 0.0
    %1386 = vmatmul.mubr.f32.gmra.mrb[0].mxu0 %v165
    %v1387 = vpop.f32.mrb[0].mxu0
    %v1388 = vadd.f32 0.0, %v1387
    %v1389 = vpop.f32.mrb[0].mxu0
    %1390 = vmatprep.mubr.f32.mxu0 0.0
    %1391 = vmatmul.mubr.f32.gmra.mrb[0].mxu0 %v166
    %v1392 = vpop.f32.mrb[0].mxu0
    %v1393 = vadd.f32 0.0, %v1392
    %v1394 = vpop.f32.mrb[0].mxu0
    %1395 = vmatprep.mubr.f32.mxu0 0.0
    %1396 = vmatmul.mubr.f32.gmra.mrb[0].mxu0 %v167
    %v1397 = vpop.f32.mrb[0].mxu0
    %v1398 = vadd.f32 0.0, %v1397
    %v1399 = vpop.f32.mrb[0].mxu0
    %1400 = vmatprep.mubr.f32.mxu0 0.0
    %1401 = vmatmul.mubr.f32.gmra.mrb[0].mxu0 %v168
    %v1402 = vpop.f32.mrb[0].mxu0
    %v1403 = vadd.f32 0.0, %v1402
    %v1404 = vpop.f32.mrb[0].mxu0
    %1405 = vmatprep.mubr.f32.mxu0 0.0
    %1406 = vmatmul.mubr.f32.gmra.mrb[0].mxu0 %v169
    %v1407 = vpop.f32.mrb[0].mxu0
    %v1408 = vadd.f32 0.0, %v1407
    %v1409 = vpop.f32.mrb[0].mxu0
    %1410 = vmatprep.mubr.f32.mxu0 0.0
    %1411 = vmatmul.mubr.f32.gmra.mrb[0].mxu0 %v170
    %v1412 = vpop.f32.mrb[0].mxu0
    %v1413 = vadd.f32 0.0, %v1412
    %v1414 = vpop.f32.mrb[0].mxu0
    %1415 = vmatprep.mubr.f32.mxu0 0.0
    %1416 = vmatmul.mubr.f32.gmra.mrb[0].mxu0 %v171
    %v1417 = vpop.f32.mrb[0].mxu0
    %v1418 = vadd.f32 0.0, %v1417
    %v1419 = vpop.f32.mrb[0].mxu0
    %1420 = vmatprep.mubr.f32.mxu0 0.0
    %1421 = vmatmul.mubr.f32.gmra.mrb[0].mxu0 %v172
    %v1422 = vpop.f32.mrb[0].mxu0
    %v1423 = vadd.f32 0.0, %v1422
    %v1424 = vpop.f32.mrb[0].mxu0
    %1425 = vdwg.mxu0
    %s1426 = scalar_lea.vmem %s7, 160
    %v1427 = vld [vmem:[%s1426] sm:$0xff]
    %v1428 = vld [vmem:[%s1426 + $0x8] sm:$0xff]
    %v1429 = vld [vmem:[%s1426 + $0x10] sm:$0xff]
    %v1430 = vld [vmem:[%s1426 + $0x18] sm:$0xff]
    %v1432 = vsel %vm425, %v1427, 0
    %v1435 = vsel %vm425, %v1428, 0
    %v1438 = vsel %vm425, %v1429, 0
    %v1441 = vsel %vm425, %v1430, 0
    %1443 = vmatprep.subr.mxu0 0.0
    %1444 = vmatpush1.msra.mxu0 %v1388
    %1445 = vmatprep.subr.mxu0 0.0
    %1446 = vmatpush1.msra.mxu0 %v1393
    %1447 = vmatprep.subr.mxu0 0.0
    %1448 = vmatpush1.msra.mxu0 %v1398
    %1449 = vmatprep.subr.mxu0 0.0
    %1450 = vmatpush1.msra.mxu0 %v1403
    %1451 = vmatprep.subr.mxu0 0.0
    %1452 = vmatpush1.msra.mxu0 %v1408
    %1453 = vmatprep.subr.mxu0 0.0
    %1454 = vmatpush1.msra.mxu0 %v1413
    %1455 = vmatprep.subr.mxu0 0.0
    %1456 = vmatpush1.msra.mxu0 %v1418
    %1457 = vmatprep.subr.mxu0 0.0
    %1458 = vmatpush1.msra.mxu0 %v1423
    %1459 = vmatprep.subr.mxu0 0.0
    %1460 = vmatpush1.msra.mxu0 0.0
    %1461 = vmatprep.subr.mxu0 0.0
    %1462 = vmatpush1.msra.mxu0 0.0
    %1463 = vmatprep.subr.mxu0 0.0
    %1464 = vmatpush1.msra.mxu0 0.0
    %1465 = vmatprep.subr.mxu0 0.0
    %1466 = vmatpush1.msra.mxu0 0.0
    %1467 = vmatprep.subr.mxu0 0.0
    %1468 = vmatpush1.msra.mxu0 0.0
    %1469 = vmatprep.subr.mxu0 0.0
    %1470 = vmatpush1.msra.mxu0 0.0
    %1471 = vmatprep.subr.mxu0 0.0
    %1472 = vmatpush1.msra.mxu0 0.0
    %1473 = vmatprep.subr.mxu0 0.0
    %1474 = vmatpush1.msra.mxu0 0.0
    %1475 = vmatprep.subr.mxu0 0.0
    %1476 = vmatpush1.msra.mxu0 0.0
    %1477 = vmatprep.subr.mxu0 0.0
    %1478 = vmatpush1.msra.mxu0 0.0
    %1479 = vmatprep.subr.mxu0 0.0
    %1480 = vmatpush1.msra.mxu0 0.0
    %1481 = vmatprep.subr.mxu0 0.0
    %1482 = vmatpush1.msra.mxu0 0.0
    %1483 = vmatprep.subr.mxu0 0.0
    %1484 = vmatpush1.msra.mxu0 0.0
    %1485 = vmatprep.subr.mxu0 0.0
    %1486 = vmatpush1.msra.mxu0 0.0
    %1487 = vmatprep.subr.mxu0 0.0
    %1488 = vmatpush1.msra.mxu0 0.0
    %1489 = vmatprep.subr.mxu0 0.0
    %1490 = vmatpush1.msra.mxu0 0.0
    %1491 = vmatprep.subr.mxu0 0.0
    %1492 = vmatpush1.msra.mxu0 0.0
    %1493 = vmatprep.subr.mxu0 0.0
    %1494 = vmatpush1.msra.mxu0 0.0
    %1495 = vmatprep.subr.mxu0 0.0
    %1496 = vmatpush1.msra.mxu0 0.0
    %1497 = vmatprep.subr.mxu0 0.0
    %1498 = vmatpush1.msra.mxu0 0.0
    %1499 = vmatprep.subr.mxu0 0.0
    %1500 = vmatpush1.msra.mxu0 0.0
    %1501 = vmatprep.subr.mxu0 0.0
    %1502 = vmatpush1.msra.mxu0 0.0
    %1503 = vmatprep.subr.mxu0 0.0
    %1504 = vmatpush1.msra.mxu0 0.0
    %1505 = vmatprep.subr.mxu0 0.0
    %1506 = vmatpush1.msra.mxu0 0.0
    %1507 = vmatprep.mubr.f32.mxu0 0.0
    %1508 = vmatmul.mubr.f32.gmra.mrb[0].mxu0 %v1432
    %v1509 = vpop.f32.mrb[0].mxu0
    %v1510 = vadd.f32 0.0, %v1509
    %v1511 = vpop.f32.mrb[0].mxu0
    %1512 = vmatprep.mubr.f32.mxu0 0.0
    %1513 = vmatmul.mubr.f32.gmra.mrb[0].mxu0 %v1435
    %v1514 = vpop.f32.mrb[0].mxu0
    %v1515 = vadd.f32 0.0, %v1514
    %v1516 = vpop.f32.mrb[0].mxu0
    %1517 = vmatprep.mubr.f32.mxu0 0.0
    %1518 = vmatmul.mubr.f32.gmra.mrb[0].mxu0 %v1438
    %v1519 = vpop.f32.mrb[0].mxu0
    %v1520 = vadd.f32 0.0, %v1519
    %v1521 = vpop.f32.mrb[0].mxu0
    %1522 = vmatprep.mubr.f32.mxu0 0.0
    %1523 = vmatmul.mubr.f32.gmra.mrb[0].mxu0 %v1441
    %v1524 = vpop.f32.mrb[0].mxu0
    %v1525 = vadd.f32 0.0, %v1524
    %v1526 = vpop.f32.mrb[0].mxu0
    %1527 = vdwg.mxu0
    %v1528 = vadd.f32 %v1300, %v1510
    %v1529 = vadd.f32 %v1301, %v1515
    %v1530 = vadd.f32 %v1302, %v1520
    %v1531 = vadd.f32 %v1303, %v1525
    %s1532 = scalar_lea.vmem %s9, 768
    %v1533 = vld [vmem:[%s1532] sm:$0xff]
    %v1534 = vld [vmem:[%s1532 + $0x8] sm:$0xff]
    %v1535 = vld [vmem:[%s1532 + $0x10] sm:$0xff]
    %v1536 = vld [vmem:[%s1532 + $0x18] sm:$0xff]
    %v1537 = vld [vmem:[%s1532 + $0x20] sm:$0xff]
    %v1538 = vld [vmem:[%s1532 + $0x28] sm:$0xff]
    %v1539 = vld [vmem:[%s1532 + $0x30] sm:$0xff]
    %v1540 = vld [vmem:[%s1532 + $0x38] sm:$0xff]
    %v1541 = vld [vmem:[%s1532 + $0x40] sm:$0xff]
    %v1542 = vld [vmem:[%s1532 + $0x48] sm:$0xff]
    %v1543 = vld [vmem:[%s1532 + $0x50] sm:$0xff]
    %v1544 = vld [vmem:[%s1532 + $0x58] sm:$0xff]
    %v1545 = vld [vmem:[%s1532 + $0x60] sm:$0xff]
    %v1546 = vld [vmem:[%s1532 + $0x68] sm:$0xff]
    %v1547 = vld [vmem:[%s1532 + $0x70] sm:$0xff]
    %v1548 = vld [vmem:[%s1532 + $0x78] sm:$0xff]
    %1549 = vmatprep.subr.mxu0 0.0
    %1550 = vmatpush1.msra.mxu0 %v1533
    %1551 = vmatprep.subr.mxu0 0.0
    %1552 = vmatpush1.msra.mxu0 %v1534
    %1553 = vmatprep.subr.mxu0 0.0
    %1554 = vmatpush1.msra.mxu0 %v1535
    %1555 = vmatprep.subr.mxu0 0.0
    %1556 = vmatpush1.msra.mxu0 %v1536
    %1557 = vmatprep.subr.mxu0 0.0
    %1558 = vmatpush1.msra.mxu0 %v1537
    %1559 = vmatprep.subr.mxu0 0.0
    %1560 = vmatpush1.msra.mxu0 %v1538
    %1561 = vmatprep.subr.mxu0 0.0
    %1562 = vmatpush1.msra.mxu0 %v1539
    %1563 = vmatprep.subr.mxu0 0.0
    %1564 = vmatpush1.msra.mxu0 %v1540
    %1565 = vmatprep.subr.mxu0 0.0
    %1566 = vmatpush1.msra.mxu0 %v1541
    %1567 = vmatprep.subr.mxu0 0.0
    %1568 = vmatpush1.msra.mxu0 %v1542
    %1569 = vmatprep.subr.mxu0 0.0
    %1570 = vmatpush1.msra.mxu0 %v1543
    %1571 = vmatprep.subr.mxu0 0.0
    %1572 = vmatpush1.msra.mxu0 %v1544
    %1573 = vmatprep.subr.mxu0 0.0
    %1574 = vmatpush1.msra.mxu0 %v1545
    %1575 = vmatprep.subr.mxu0 0.0
    %1576 = vmatpush1.msra.mxu0 %v1546
    %1577 = vmatprep.subr.mxu0 0.0
    %1578 = vmatpush1.msra.mxu0 %v1547
    %1579 = vmatprep.subr.mxu0 0.0
    %1580 = vmatpush1.msra.mxu0 %v1548
    %1581 = vmatprep.subr.mxu0 0.0
    %1582 = vmatpush1.msra.mxu0 0.0
    %1583 = vmatprep.subr.mxu0 0.0
    %1584 = vmatpush1.msra.mxu0 0.0
    %1585 = vmatprep.subr.mxu0 0.0
    %1586 = vmatpush1.msra.mxu0 0.0
    %1587 = vmatprep.subr.mxu0 0.0
    %1588 = vmatpush1.msra.mxu0 0.0
    %1589 = vmatprep.subr.mxu0 0.0
    %1590 = vmatpush1.msra.mxu0 0.0
    %1591 = vmatprep.subr.mxu0 0.0
    %1592 = vmatpush1.msra.mxu0 0.0
    %1593 = vmatprep.subr.mxu0 0.0
    %1594 = vmatpush1.msra.mxu0 0.0
    %1595 = vmatprep.subr.mxu0 0.0
    %1596 = vmatpush1.msra.mxu0 0.0
    %1597 = vmatprep.subr.mxu0 0.0
    %1598 = vmatpush1.msra.mxu0 0.0
    %1599 = vmatprep.subr.mxu0 0.0
    %1600 = vmatpush1.msra.mxu0 0.0
    %1601 = vmatprep.subr.mxu0 0.0
    %1602 = vmatpush1.msra.mxu0 0.0
    %1603 = vmatprep.subr.mxu0 0.0
    %1604 = vmatpush1.msra.mxu0 0.0
    %1605 = vmatprep.subr.mxu0 0.0
    %1606 = vmatpush1.msra.mxu0 0.0
    %1607 = vmatprep.subr.mxu0 0.0
    %1608 = vmatpush1.msra.mxu0 0.0
    %1609 = vmatprep.subr.mxu0 0.0
    %1610 = vmatpush1.msra.mxu0 0.0
    %1611 = vmatprep.subr.mxu0 0.0
    %1612 = vmatpush1.msra.mxu0 0.0
    %1613 = vmatprep.mubr.f32.mxu0 0.0
    %1614 = vmatmul.mubr.f32.gmra.mrb[0].mxu0 %v165
    %v1615 = vpop.f32.mrb[0].mxu0
    %v1616 = vadd.f32 0.0, %v1615
    %v1617 = vpop.f32.mrb[0].mxu0
    %1618 = vmatprep.mubr.f32.mxu0 0.0
    %1619 = vmatmul.mubr.f32.gmra.mrb[0].mxu0 %v166
    %v1620 = vpop.f32.mrb[0].mxu0
    %v1621 = vadd.f32 0.0, %v1620
    %v1622 = vpop.f32.mrb[0].mxu0
    %1623 = vmatprep.mubr.f32.mxu0 0.0
    %1624 = vmatmul.mubr.f32.gmra.mrb[0].mxu0 %v167
    %v1625 = vpop.f32.mrb[0].mxu0
    %v1626 = vadd.f32 0.0, %v1625
    %v1627 = vpop.f32.mrb[0].mxu0
    %1628 = vmatprep.mubr.f32.mxu0 0.0
    %1629 = vmatmul.mubr.f32.gmra.mrb[0].mxu0 %v168
    %v1630 = vpop.f32.mrb[0].mxu0
    %v1631 = vadd.f32 0.0, %v1630
    %v1632 = vpop.f32.mrb[0].mxu0
    %1633 = vmatprep.mubr.f32.mxu0 0.0
    %1634 = vmatmul.mubr.f32.gmra.mrb[0].mxu0 %v169
    %v1635 = vpop.f32.mrb[0].mxu0
    %v1636 = vadd.f32 0.0, %v1635
    %v1637 = vpop.f32.mrb[0].mxu0
    %1638 = vmatprep.mubr.f32.mxu0 0.0
    %1639 = vmatmul.mubr.f32.gmra.mrb[0].mxu0 %v170
    %v1640 = vpop.f32.mrb[0].mxu0
    %v1641 = vadd.f32 0.0, %v1640
    %v1642 = vpop.f32.mrb[0].mxu0
    %1643 = vmatprep.mubr.f32.mxu0 0.0
    %1644 = vmatmul.mubr.f32.gmra.mrb[0].mxu0 %v171
    %v1645 = vpop.f32.mrb[0].mxu0
    %v1646 = vadd.f32 0.0, %v1645
    %v1647 = vpop.f32.mrb[0].mxu0
    %1648 = vmatprep.mubr.f32.mxu0 0.0
    %1649 = vmatmul.mubr.f32.gmra.mrb[0].mxu0 %v172
    %v1650 = vpop.f32.mrb[0].mxu0
    %v1651 = vadd.f32 0.0, %v1650
    %v1652 = vpop.f32.mrb[0].mxu0
    %1653 = vdwg.mxu0
    %s1654 = scalar_lea.vmem %s7, 192
    %v1655 = vld [vmem:[%s1654] sm:$0xff]
    %v1656 = vld [vmem:[%s1654 + $0x8] sm:$0xff]
    %v1657 = vld [vmem:[%s1654 + $0x10] sm:$0xff]
    %v1658 = vld [vmem:[%s1654 + $0x18] sm:$0xff]
    %v1660 = vsel %vm425, %v1655, 0
    %v1663 = vsel %vm425, %v1656, 0
    %v1666 = vsel %vm425, %v1657, 0
    %v1669 = vsel %vm425, %v1658, 0
    %1671 = vmatprep.subr.mxu0 0.0
    %1672 = vmatpush1.msra.mxu0 %v1616
    %1673 = vmatprep.subr.mxu0 0.0
    %1674 = vmatpush1.msra.mxu0 %v1621
    %1675 = vmatprep.subr.mxu0 0.0
    %1676 = vmatpush1.msra.mxu0 %v1626
    %1677 = vmatprep.subr.mxu0 0.0
    %1678 = vmatpush1.msra.mxu0 %v1631
    %1679 = vmatprep.subr.mxu0 0.0
    %1680 = vmatpush1.msra.mxu0 %v1636
    %1681 = vmatprep.subr.mxu0 0.0
    %1682 = vmatpush1.msra.mxu0 %v1641
    %1683 = vmatprep.subr.mxu0 0.0
    %1684 = vmatpush1.msra.mxu0 %v1646
    %1685 = vmatprep.subr.mxu0 0.0
    %1686 = vmatpush1.msra.mxu0 %v1651
    %1687 = vmatprep.subr.mxu0 0.0
    %1688 = vmatpush1.msra.mxu0 0.0
    %1689 = vmatprep.subr.mxu0 0.0
    %1690 = vmatpush1.msra.mxu0 0.0
    %1691 = vmatprep.subr.mxu0 0.0
    %1692 = vmatpush1.msra.mxu0 0.0
    %1693 = vmatprep.subr.mxu0 0.0
    %1694 = vmatpush1.msra.mxu0 0.0
    %1695 = vmatprep.subr.mxu0 0.0
    %1696 = vmatpush1.msra.mxu0 0.0
    %1697 = vmatprep.subr.mxu0 0.0
    %1698 = vmatpush1.msra.mxu0 0.0
    %1699 = vmatprep.subr.mxu0 0.0
    %1700 = vmatpush1.msra.mxu0 0.0
    %1701 = vmatprep.subr.mxu0 0.0
    %1702 = vmatpush1.msra.mxu0 0.0
    %1703 = vmatprep.subr.mxu0 0.0
    %1704 = vmatpush1.msra.mxu0 0.0
    %1705 = vmatprep.subr.mxu0 0.0
    %1706 = vmatpush1.msra.mxu0 0.0
    %1707 = vmatprep.subr.mxu0 0.0
    %1708 = vmatpush1.msra.mxu0 0.0
    %1709 = vmatprep.subr.mxu0 0.0
    %1710 = vmatpush1.msra.mxu0 0.0
    %1711 = vmatprep.subr.mxu0 0.0
    %1712 = vmatpush1.msra.mxu0 0.0
    %1713 = vmatprep.subr.mxu0 0.0
    %1714 = vmatpush1.msra.mxu0 0.0
    %1715 = vmatprep.subr.mxu0 0.0
    %1716 = vmatpush1.msra.mxu0 0.0
    %1717 = vmatprep.subr.mxu0 0.0
    %1718 = vmatpush1.msra.mxu0 0.0
    %1719 = vmatprep.subr.mxu0 0.0
    %1720 = vmatpush1.msra.mxu0 0.0
    %1721 = vmatprep.subr.mxu0 0.0
    %1722 = vmatpush1.msra.mxu0 0.0
    %1723 = vmatprep.subr.mxu0 0.0
    %1724 = vmatpush1.msra.mxu0 0.0
    %1725 = vmatprep.subr.mxu0 0.0
    %1726 = vmatpush1.msra.mxu0 0.0
    %1727 = vmatprep.subr.mxu0 0.0
    %1728 = vmatpush1.msra.mxu0 0.0
    %1729 = vmatprep.subr.mxu0 0.0
    %1730 = vmatpush1.msra.mxu0 0.0
    %1731 = vmatprep.subr.mxu0 0.0
    %1732 = vmatpush1.msra.mxu0 0.0
    %1733 = vmatprep.subr.mxu0 0.0
    %1734 = vmatpush1.msra.mxu0 0.0
    %1735 = vmatprep.mubr.f32.mxu0 0.0
    %1736 = vmatmul.mubr.f32.gmra.mrb[0].mxu0 %v1660
    %v1737 = vpop.f32.mrb[0].mxu0
    %v1738 = vadd.f32 0.0, %v1737
    %v1739 = vpop.f32.mrb[0].mxu0
    %1740 = vmatprep.mubr.f32.mxu0 0.0
    %1741 = vmatmul.mubr.f32.gmra.mrb[0].mxu0 %v1663
    %v1742 = vpop.f32.mrb[0].mxu0
    %v1743 = vadd.f32 0.0, %v1742
    %v1744 = vpop.f32.mrb[0].mxu0
    %1745 = vmatprep.mubr.f32.mxu0 0.0
    %1746 = vmatmul.mubr.f32.gmra.mrb[0].mxu0 %v1666
    %v1747 = vpop.f32.mrb[0].mxu0
    %v1748 = vadd.f32 0.0, %v1747
    %v1749 = vpop.f32.mrb[0].mxu0
    %1750 = vmatprep.mubr.f32.mxu0 0.0
    %1751 = vmatmul.mubr.f32.gmra.mrb[0].mxu0 %v1669
    %v1752 = vpop.f32.mrb[0].mxu0
    %v1753 = vadd.f32 0.0, %v1752
    %v1754 = vpop.f32.mrb[0].mxu0
    %1755 = vdwg.mxu0
    %v1756 = vadd.f32 %v1528, %v1738
    %v1757 = vadd.f32 %v1529, %v1743
    %v1758 = vadd.f32 %v1530, %v1748
    %v1759 = vadd.f32 %v1531, %v1753
    %v1760 = vld [vmem:[%s11] sm:$0x1]
    %v1762 = vlaneseq
    %v1763 = vshrl.u32 %v1762, 7
    %v1764 = vsub.s32 0, %v1763
    %v1765 = vrot.slane %v1760, %v1764
    %v1767 = vadd.f32 %v1756, %v1765
    %v1768 = vadd.f32 %v1757, %v1765
    %v1769 = vadd.f32 %v1758, %v1765
    %v1770 = vadd.f32 %v1759, %v1765
    %v1771 = vmax.f32 %v1767, 0.0
    %v1772 = vmax.f32 %v1768, 0.0
    %v1773 = vmax.f32 %v1769, 0.0
    %v1774 = vmax.f32 %v1770, 0.0
    %v1775 = vld [vmem:[%s15] sm:$0xff]
    %v1776 = vld [vmem:[%s15 + $0x8] sm:$0xff]
    %v1777 = vld [vmem:[%s15 + $0x10] sm:$0xff]
    %v1778 = vld [vmem:[%s15 + $0x18] sm:$0xff]
    %v1779 = vld [vmem:[%s15 + $0x20] sm:$0xff]
    %v1780 = vld [vmem:[%s15 + $0x28] sm:$0xff]
    %v1781 = vld [vmem:[%s15 + $0x30] sm:$0xff]
    %v1782 = vld [vmem:[%s15 + $0x38] sm:$0xff]
    %v1784 = vsel %vm425, %v1771, 0
    %v1787 = vsel %vm425, %v1772, 0
    %v1790 = vsel %vm425, %v1773, 0
    %v1793 = vsel %vm425, %v1774, 0
    %1795 = vmatprep.subr.mxu0 0.0
    %1796 = vmatpush1.msra.mxu0 %v1775
    %1797 = vmatprep.subr.mxu0 0.0
    %1798 = vmatpush1.msra.mxu0 %v1776
    %1799 = vmatprep.subr.mxu0 0.0
    %1800 = vmatpush1.msra.mxu0 %v1777
    %1801 = vmatprep.subr.mxu0 0.0
    %1802 = vmatpush1.msra.mxu0 %v1778
    %1803 = vmatprep.subr.mxu0 0.0
    %1804 = vmatpush1.msra.mxu0 %v1779
    %1805 = vmatprep.subr.mxu0 0.0
    %1806 = vmatpush1.msra.mxu0 %v1780
    %1807 = vmatprep.subr.mxu0 0.0
    %1808 = vmatpush1.msra.mxu0 %v1781
    %1809 = vmatprep.subr.mxu0 0.0
    %1810 = vmatpush1.msra.mxu0 %v1782
    %1811 = vmatprep.subr.mxu0 0.0
    %1812 = vmatpush1.msra.mxu0 0.0
    %1813 = vmatprep.subr.mxu0 0.0
    %1814 = vmatpush1.msra.mxu0 0.0
    %1815 = vmatprep.subr.mxu0 0.0
    %1816 = vmatpush1.msra.mxu0 0.0
    %1817 = vmatprep.subr.mxu0 0.0
    %1818 = vmatpush1.msra.mxu0 0.0
    %1819 = vmatprep.subr.mxu0 0.0
    %1820 = vmatpush1.msra.mxu0 0.0
    %1821 = vmatprep.subr.mxu0 0.0
    %1822 = vmatpush1.msra.mxu0 0.0
    %1823 = vmatprep.subr.mxu0 0.0
    %1824 = vmatpush1.msra.mxu0 0.0
    %1825 = vmatprep.subr.mxu0 0.0
    %1826 = vmatpush1.msra.mxu0 0.0
    %1827 = vmatprep.subr.mxu0 0.0
    %1828 = vmatpush1.msra.mxu0 0.0
    %1829 = vmatprep.subr.mxu0 0.0
    %1830 = vmatpush1.msra.mxu0 0.0
    %1831 = vmatprep.subr.mxu0 0.0
    %1832 = vmatpush1.msra.mxu0 0.0
    %1833 = vmatprep.subr.mxu0 0.0
    %1834 = vmatpush1.msra.mxu0 0.0
    %1835 = vmatprep.subr.mxu0 0.0
    %1836 = vmatpush1.msra.mxu0 0.0
    %1837 = vmatprep.subr.mxu0 0.0
    %1838 = vmatpush1.msra.mxu0 0.0
    %1839 = vmatprep.subr.mxu0 0.0
    %1840 = vmatpush1.msra.mxu0 0.0
    %1841 = vmatprep.subr.mxu0 0.0
    %1842 = vmatpush1.msra.mxu0 0.0
    %1843 = vmatprep.subr.mxu0 0.0
    %1844 = vmatpush1.msra.mxu0 0.0
    %1845 = vmatprep.subr.mxu0 0.0
    %1846 = vmatpush1.msra.mxu0 0.0
    %1847 = vmatprep.subr.mxu0 0.0
    %1848 = vmatpush1.msra.mxu0 0.0
    %1849 = vmatprep.subr.mxu0 0.0
    %1850 = vmatpush1.msra.mxu0 0.0
    %1851 = vmatprep.subr.mxu0 0.0
    %1852 = vmatpush1.msra.mxu0 0.0
    %1853 = vmatprep.subr.mxu0 0.0
    %1854 = vmatpush1.msra.mxu0 0.0
    %1855 = vmatprep.subr.mxu0 0.0
    %1856 = vmatpush1.msra.mxu0 0.0
    %1857 = vmatprep.subr.mxu0 0.0
    %1858 = vmatpush1.msra.mxu0 0.0
    %1859 = vmatprep.mubr.f32.mxu0 0.0
    %1860 = vmatmul.mubr.f32.gmra.mrb[0].mxu0 %v1784
    %v1861 = vpop.f32.mrb[0].mxu0
    %v1862 = vadd.f32 0.0, %v1861
    %v1863 = vpop.f32.mrb[0].mxu0
    %1864 = vmatprep.mubr.f32.mxu0 0.0
    %1865 = vmatmul.mubr.f32.gmra.mrb[0].mxu0 %v1787
    %v1866 = vpop.f32.mrb[0].mxu0
    %v1867 = vadd.f32 0.0, %v1866
    %v1868 = vpop.f32.mrb[0].mxu0
    %1869 = vmatprep.mubr.f32.mxu0 0.0
    %1870 = vmatmul.mubr.f32.gmra.mrb[0].mxu0 %v1790
    %v1871 = vpop.f32.mrb[0].mxu0
    %v1872 = vadd.f32 0.0, %v1871
    %v1873 = vpop.f32.mrb[0].mxu0
    %1874 = vmatprep.mubr.f32.mxu0 0.0
    %1875 = vmatmul.mubr.f32.gmra.mrb[0].mxu0 %v1793
    %v1876 = vpop.f32.mrb[0].mxu0
    %v1877 = vadd.f32 0.0, %v1876
    %v1878 = vpop.f32.mrb[0].mxu0
    %1879 = vdwg.mxu0
    %v1880 = vld [vmem:[%s13] sm:$0xff]
    %v1881 = vld [vmem:[%s13 + $0x8] sm:$0xff]
    %v1882 = vld [vmem:[%s17] sm:$0x1]
    %v1884 = vlaneseq
    %v1885 = vshrl.u32 %v1884, 7
    %v1886 = vsub.s32 0, %v1885
    %v1887 = vrot.slane %v1882, %v1886
    %vm1889 = vcmask 261120
    %v1891 = vsel %vm1889, %v1880, 0
    %v1894 = vsel %vm1889, %v1881, 0
    %1896 = vmatprep.subr.mxu0 0.0
    %1897 = vmatpush1.msra.mxu0 %v1862
    %1898 = vmatprep.subr.mxu0 0.0
    %1899 = vmatpush1.msra.mxu0 %v1867
    %1900 = vmatprep.subr.mxu0 0.0
    %1901 = vmatpush1.msra.mxu0 %v1872
    %1902 = vmatprep.subr.mxu0 0.0
    %1903 = vmatpush1.msra.mxu0 %v1877
    %1904 = vmatprep.subr.mxu0 0.0
    %1905 = vmatpush1.msra.mxu0 0.0
    %1906 = vmatprep.subr.mxu0 0.0
    %1907 = vmatpush1.msra.mxu0 0.0
    %1908 = vmatprep.subr.mxu0 0.0
    %1909 = vmatpush1.msra.mxu0 0.0
    %1910 = vmatprep.subr.mxu0 0.0
    %1911 = vmatpush1.msra.mxu0 0.0
    %1912 = vmatprep.subr.mxu0 0.0
    %1913 = vmatpush1.msra.mxu0 0.0
    %1914 = vmatprep.subr.mxu0 0.0
    %1915 = vmatpush1.msra.mxu0 0.0
    %1916 = vmatprep.subr.mxu0 0.0
    %1917 = vmatpush1.msra.mxu0 0.0
    %1918 = vmatprep.subr.mxu0 0.0
    %1919 = vmatpush1.msra.mxu0 0.0
    %1920 = vmatprep.subr.mxu0 0.0
    %1921 = vmatpush1.msra.mxu0 0.0
    %1922 = vmatprep.subr.mxu0 0.0
    %1923 = vmatpush1.msra.mxu0 0.0
    %1924 = vmatprep.subr.mxu0 0.0
    %1925 = vmatpush1.msra.mxu0 0.0
    %1926 = vmatprep.subr.mxu0 0.0
    %1927 = vmatpush1.msra.mxu0 0.0
    %1928 = vmatprep.subr.mxu0 0.0
    %1929 = vmatpush1.msra.mxu0 0.0
    %1930 = vmatprep.subr.mxu0 0.0
    %1931 = vmatpush1.msra.mxu0 0.0
    %1932 = vmatprep.subr.mxu0 0.0
    %1933 = vmatpush1.msra.mxu0 0.0
    %1934 = vmatprep.subr.mxu0 0.0
    %1935 = vmatpush1.msra.mxu0 0.0
    %1936 = vmatprep.subr.mxu0 0.0
    %1937 = vmatpush1.msra.mxu0 0.0
    %1938 = vmatprep.subr.mxu0 0.0
    %1939 = vmatpush1.msra.mxu0 0.0
    %1940 = vmatprep.subr.mxu0 0.0
    %1941 = vmatpush1.msra.mxu0 0.0
    %1942 = vmatprep.subr.mxu0 0.0
    %1943 = vmatpush1.msra.mxu0 0.0
    %1944 = vmatprep.subr.mxu0 0.0
    %1945 = vmatpush1.msra.mxu0 0.0
    %1946 = vmatprep.subr.mxu0 0.0
    %1947 = vmatpush1.msra.mxu0 0.0
    %1948 = vmatprep.subr.mxu0 0.0
    %1949 = vmatpush1.msra.mxu0 0.0
    %1950 = vmatprep.subr.mxu0 0.0
    %1951 = vmatpush1.msra.mxu0 0.0
    %1952 = vmatprep.subr.mxu0 0.0
    %1953 = vmatpush1.msra.mxu0 0.0
    %1954 = vmatprep.subr.mxu0 0.0
    %1955 = vmatpush1.msra.mxu0 0.0
    %1956 = vmatprep.subr.mxu0 0.0
    %1957 = vmatpush1.msra.mxu0 0.0
    %1958 = vmatprep.subr.mxu0 0.0
    %1959 = vmatpush1.msra.mxu0 0.0
    %1960 = vmatprep.mubr.f32.mxu0 0.0
    %1961 = vmatmul.mubr.f32.gmra.mrb[0].mxu0 %v1891
    %v1962 = vpop.f32.mrb[0].mxu0
    %v1963 = vadd.f32 %v1887, %v1962
    %v1964 = vpop.f32.mrb[0].mxu0
    %1965 = vmatprep.mubr.f32.mxu0 0.0
    %1966 = vmatmul.mubr.f32.gmra.mrb[0].mxu0 %v1894
    %v1967 = vpop.f32.mrb[0].mxu0
    %v1968 = vadd.f32 %v1887, %v1967
    %v1969 = vpop.f32.mrb[0].mxu0
    %1970 = vdwg.mxu0
    %v1971 = vld [vmem:[%s21] sm:$0xff]
    %v1972 = vld [vmem:[%s21 + $0x8] sm:$0xff]
    %v1973 = vld [vmem:[%s21 + $0x10] sm:$0xff]
    %v1974 = vld [vmem:[%s21 + $0x18] sm:$0xff]
    %v1975 = vld [vmem:[%s21 + $0x20] sm:$0xff]
    %v1976 = vld [vmem:[%s21 + $0x28] sm:$0xff]
    %v1977 = vld [vmem:[%s21 + $0x30] sm:$0xff]
    %v1978 = vld [vmem:[%s21 + $0x38] sm:$0xff]
    %1979 = vmatprep.subr.mxu0 0.0
    %1980 = vmatpush1.msra.mxu0 %v1971
    %1981 = vmatprep.subr.mxu0 0.0
    %1982 = vmatpush1.msra.mxu0 %v1972
    %1983 = vmatprep.subr.mxu0 0.0
    %1984 = vmatpush1.msra.mxu0 %v1973
    %1985 = vmatprep.subr.mxu0 0.0
    %1986 = vmatpush1.msra.mxu0 %v1974
    %1987 = vmatprep.subr.mxu0 0.0
    %1988 = vmatpush1.msra.mxu0 %v1975
    %1989 = vmatprep.subr.mxu0 0.0
    %1990 = vmatpush1.msra.mxu0 %v1976
    %1991 = vmatprep.subr.mxu0 0.0
    %1992 = vmatpush1.msra.mxu0 %v1977
    %1993 = vmatprep.subr.mxu0 0.0
    %1994 = vmatpush1.msra.mxu0 %v1978
    %1995 = vmatprep.subr.mxu0 0.0
    %1996 = vmatpush1.msra.mxu0 0.0
    %1997 = vmatprep.subr.mxu0 0.0
    %1998 = vmatpush1.msra.mxu0 0.0
    %1999 = vmatprep.subr.mxu0 0.0
    %2000 = vmatpush1.msra.mxu0 0.0
    %2001 = vmatprep.subr.mxu0 0.0
    %2002 = vmatpush1.msra.mxu0 0.0
    %2003 = vmatprep.subr.mxu0 0.0
    %2004 = vmatpush1.msra.mxu0 0.0
    %2005 = vmatprep.subr.mxu0 0.0
    %2006 = vmatpush1.msra.mxu0 0.0
    %2007 = vmatprep.subr.mxu0 0.0
    %2008 = vmatpush1.msra.mxu0 0.0
    %2009 = vmatprep.subr.mxu0 0.0
    %2010 = vmatpush1.msra.mxu0 0.0
    %2011 = vmatprep.subr.mxu0 0.0
    %2012 = vmatpush1.msra.mxu0 0.0
    %2013 = vmatprep.subr.mxu0 0.0
    %2014 = vmatpush1.msra.mxu0 0.0
    %2015 = vmatprep.subr.mxu0 0.0
    %2016 = vmatpush1.msra.mxu0 0.0
    %2017 = vmatprep.subr.mxu0 0.0
    %2018 = vmatpush1.msra.mxu0 0.0
    %2019 = vmatprep.subr.mxu0 0.0
    %2020 = vmatpush1.msra.mxu0 0.0
    %2021 = vmatprep.subr.mxu0 0.0
    %2022 = vmatpush1.msra.mxu0 0.0
    %2023 = vmatprep.subr.mxu0 0.0
    %2024 = vmatpush1.msra.mxu0 0.0
    %2025 = vmatprep.subr.mxu0 0.0
    %2026 = vmatpush1.msra.mxu0 0.0
    %2027 = vmatprep.subr.mxu0 0.0
    %2028 = vmatpush1.msra.mxu0 0.0
    %2029 = vmatprep.subr.mxu0 0.0
    %2030 = vmatpush1.msra.mxu0 0.0
    %2031 = vmatprep.subr.mxu0 0.0
    %2032 = vmatpush1.msra.mxu0 0.0
    %2033 = vmatprep.subr.mxu0 0.0
    %2034 = vmatpush1.msra.mxu0 0.0
    %2035 = vmatprep.subr.mxu0 0.0
    %2036 = vmatpush1.msra.mxu0 0.0
    %2037 = vmatprep.subr.mxu0 0.0
    %2038 = vmatpush1.msra.mxu0 0.0
    %2039 = vmatprep.subr.mxu0 0.0
    %2040 = vmatpush1.msra.mxu0 0.0
    %2041 = vmatprep.subr.mxu0 0.0
    %2042 = vmatpush1.msra.mxu0 0.0
    %2043 = vmatprep.mubr.f32.mxu0 0.0
    %2044 = vmatmul.mubr.f32.gmra.mrb[0].mxu0 %v1784
    %v2045 = vpop.f32.mrb[0].mxu0
    %v2046 = vadd.f32 0.0, %v2045
    %v2047 = vpop.f32.mrb[0].mxu0
    %2048 = vmatprep.mubr.f32.mxu0 0.0
    %2049 = vmatmul.mubr.f32.gmra.mrb[0].mxu0 %v1787
    %v2050 = vpop.f32.mrb[0].mxu0
    %v2051 = vadd.f32 0.0, %v2050
    %v2052 = vpop.f32.mrb[0].mxu0
    %2053 = vmatprep.mubr.f32.mxu0 0.0
    %2054 = vmatmul.mubr.f32.gmra.mrb[0].mxu0 %v1790
    %v2055 = vpop.f32.mrb[0].mxu0
    %v2056 = vadd.f32 0.0, %v2055
    %v2057 = vpop.f32.mrb[0].mxu0
    %2058 = vmatprep.mubr.f32.mxu0 0.0
    %2059 = vmatmul.mubr.f32.gmra.mrb[0].mxu0 %v1793
    %v2060 = vpop.f32.mrb[0].mxu0
    %v2061 = vadd.f32 0.0, %v2060
    %v2062 = vpop.f32.mrb[0].mxu0
    %2063 = vdwg.mxu0
    %v2064 = vld [vmem:[%s19] sm:$0xff]
    %v2065 = vld [vmem:[%s19 + $0x8] sm:$0xff]
    %s2066 = scalar_lea.vmem %s21, 64
    %v2067 = vld [vmem:[%s2066] sm:$0xff]
    %v2068 = vld [vmem:[%s2066 + $0x8] sm:$0xff]
    %v2069 = vld [vmem:[%s2066 + $0x10] sm:$0xff]
    %v2070 = vld [vmem:[%s2066 + $0x18] sm:$0xff]
    %v2071 = vld [vmem:[%s2066 + $0x20] sm:$0xff]
    %v2072 = vld [vmem:[%s2066 + $0x28] sm:$0xff]
    %v2073 = vld [vmem:[%s2066 + $0x30] sm:$0xff]
    %v2074 = vld [vmem:[%s2066 + $0x38] sm:$0xff]
    %2075 = vmatprep.subr.mxu0 0.0
    %2076 = vmatpush1.msra.mxu0 %v2067
    %2077 = vmatprep.subr.mxu0 0.0
    %2078 = vmatpush1.msra.mxu0 %v2068
    %2079 = vmatprep.subr.mxu0 0.0
    %2080 = vmatpush1.msra.mxu0 %v2069
    %2081 = vmatprep.subr.mxu0 0.0
    %2082 = vmatpush1.msra.mxu0 %v2070
    %2083 = vmatprep.subr.mxu0 0.0
    %2084 = vmatpush1.msra.mxu0 %v2071
    %2085 = vmatprep.subr.mxu0 0.0
    %2086 = vmatpush1.msra.mxu0 %v2072
    %2087 = vmatprep.subr.mxu0 0.0
    %2088 = vmatpush1.msra.mxu0 %v2073
    %2089 = vmatprep.subr.mxu0 0.0
    %2090 = vmatpush1.msra.mxu0 %v2074
    %2091 = vmatprep.subr.mxu0 0.0
    %2092 = vmatpush1.msra.mxu0 0.0
    %2093 = vmatprep.subr.mxu0 0.0
    %2094 = vmatpush1.msra.mxu0 0.0
    %2095 = vmatprep.subr.mxu0 0.0
    %2096 = vmatpush1.msra.mxu0 0.0
    %2097 = vmatprep.subr.mxu0 0.0
    %2098 = vmatpush1.msra.mxu0 0.0
    %2099 = vmatprep.subr.mxu0 0.0
    %2100 = vmatpush1.msra.mxu0 0.0
    %2101 = vmatprep.subr.mxu0 0.0
    %2102 = vmatpush1.msra.mxu0 0.0
    %2103 = vmatprep.subr.mxu0 0.0
    %2104 = vmatpush1.msra.mxu0 0.0
    %2105 = vmatprep.subr.mxu0 0.0
    %2106 = vmatpush1.msra.mxu0 0.0
    %2107 = vmatprep.subr.mxu0 0.0
    %2108 = vmatpush1.msra.mxu0 0.0
    %2109 = vmatprep.subr.mxu0 0.0
    %2110 = vmatpush1.msra.mxu0 0.0
    %2111 = vmatprep.subr.mxu0 0.0
    %2112 = vmatpush1.msra.mxu0 0.0
    %2113 = vmatprep.subr.mxu0 0.0
    %2114 = vmatpush1.msra.mxu0 0.0
    %2115 = vmatprep.subr.mxu0 0.0
    %2116 = vmatpush1.msra.mxu0 0.0
    %2117 = vmatprep.subr.mxu0 0.0
    %2118 = vmatpush1.msra.mxu0 0.0
    %2119 = vmatprep.subr.mxu0 0.0
    %2120 = vmatpush1.msra.mxu0 0.0
    %2121 = vmatprep.subr.mxu0 0.0
    %2122 = vmatpush1.msra.mxu0 0.0
    %2123 = vmatprep.subr.mxu0 0.0
    %2124 = vmatpush1.msra.mxu0 0.0
    %2125 = vmatprep.subr.mxu0 0.0
    %2126 = vmatpush1.msra.mxu0 0.0
    %2127 = vmatprep.subr.mxu0 0.0
    %2128 = vmatpush1.msra.mxu0 0.0
    %2129 = vmatprep.subr.mxu0 0.0
    %2130 = vmatpush1.msra.mxu0 0.0
    %2131 = vmatprep.subr.mxu0 0.0
    %2132 = vmatpush1.msra.mxu0 0.0
    %2133 = vmatprep.subr.mxu0 0.0
    %2134 = vmatpush1.msra.mxu0 0.0
    %2135 = vmatprep.subr.mxu0 0.0
    %2136 = vmatpush1.msra.mxu0 0.0
    %2137 = vmatprep.subr.mxu0 0.0
    %2138 = vmatpush1.msra.mxu0 0.0
    %2139 = vmatprep.mubr.f32.mxu0 0.0
    %2140 = vmatmul.mubr.f32.gmra.mrb[0].mxu0 %v1784
    %v2141 = vpop.f32.mrb[0].mxu0
    %v2142 = vadd.f32 0.0, %v2141
    %v2143 = vpop.f32.mrb[0].mxu0
    %2144 = vmatprep.mubr.f32.mxu0 0.0
    %2145 = vmatmul.mubr.f32.gmra.mrb[0].mxu0 %v1787
    %v2146 = vpop.f32.mrb[0].mxu0
    %v2147 = vadd.f32 0.0, %v2146
    %v2148 = vpop.f32.mrb[0].mxu0
    %2149 = vmatprep.mubr.f32.mxu0 0.0
    %2150 = vmatmul.mubr.f32.gmra.mrb[0].mxu0 %v1790
    %v2151 = vpop.f32.mrb[0].mxu0
    %v2152 = vadd.f32 0.0, %v2151
    %v2153 = vpop.f32.mrb[0].mxu0
    %2154 = vmatprep.mubr.f32.mxu0 0.0
    %2155 = vmatmul.mubr.f32.gmra.mrb[0].mxu0 %v1793
    %v2156 = vpop.f32.mrb[0].mxu0
    %v2157 = vadd.f32 0.0, %v2156
    %v2158 = vpop.f32.mrb[0].mxu0
    %2159 = vdwg.mxu0
    %s2160 = scalar_lea.vmem %s19, 16
    %v2161 = vld [vmem:[%s2160] sm:$0xff]
    %v2162 = vld [vmem:[%s2160 + $0x8] sm:$0xff]
    %v2164 = vsel %vm1889, %v2161, 0
    %v2167 = vsel %vm1889, %v2162, 0
    %2169 = vmatprep.subr.mxu0 0.0
    %2170 = vmatpush1.msra.mxu0 %v2142
    %2171 = vmatprep.subr.mxu0 0.0
    %2172 = vmatpush1.msra.mxu0 %v2147
    %2173 = vmatprep.subr.mxu0 0.0
    %2174 = vmatpush1.msra.mxu0 %v2152
    %2175 = vmatprep.subr.mxu0 0.0
    %2176 = vmatpush1.msra.mxu0 %v2157
    %2177 = vmatprep.subr.mxu0 0.0
    %2178 = vmatpush1.msra.mxu0 0.0
    %2179 = vmatprep.subr.mxu0 0.0
    %2180 = vmatpush1.msra.mxu0 0.0
    %2181 = vmatprep.subr.mxu0 0.0
    %2182 = vmatpush1.msra.mxu0 0.0
    %2183 = vmatprep.subr.mxu0 0.0
    %2184 = vmatpush1.msra.mxu0 0.0
    %2185 = vmatprep.subr.mxu0 0.0
    %2186 = vmatpush1.msra.mxu0 0.0
    %2187 = vmatprep.subr.mxu0 0.0
    %2188 = vmatpush1.msra.mxu0 0.0
    %2189 = vmatprep.subr.mxu0 0.0
    %2190 = vmatpush1.msra.mxu0 0.0
    %2191 = vmatprep.subr.mxu0 0.0
    %2192 = vmatpush1.msra.mxu0 0.0
    %2193 = vmatprep.subr.mxu0 0.0
    %2194 = vmatpush1.msra.mxu0 0.0
    %2195 = vmatprep.subr.mxu0 0.0
    %2196 = vmatpush1.msra.mxu0 0.0
    %2197 = vmatprep.subr.mxu0 0.0
    %2198 = vmatpush1.msra.mxu0 0.0
    %2199 = vmatprep.subr.mxu0 0.0
    %2200 = vmatpush1.msra.mxu0 0.0
    %2201 = vmatprep.subr.mxu0 0.0
    %2202 = vmatpush1.msra.mxu0 0.0
    %2203 = vmatprep.subr.mxu0 0.0
    %2204 = vmatpush1.msra.mxu0 0.0
    %2205 = vmatprep.subr.mxu0 0.0
    %2206 = vmatpush1.msra.mxu0 0.0
    %2207 = vmatprep.subr.mxu0 0.0
    %2208 = vmatpush1.msra.mxu0 0.0
    %2209 = vmatprep.subr.mxu0 0.0
    %2210 = vmatpush1.msra.mxu0 0.0
    %2211 = vmatprep.subr.mxu0 0.0
    %2212 = vmatpush1.msra.mxu0 0.0
    %2213 = vmatprep.subr.mxu0 0.0
    %2214 = vmatpush1.msra.mxu0 0.0
    %2215 = vmatprep.subr.mxu0 0.0
    %2216 = vmatpush1.msra.mxu0 0.0
    %2217 = vmatprep.subr.mxu0 0.0
    %2218 = vmatpush1.msra.mxu0 0.0
    %2219 = vmatprep.subr.mxu0 0.0
    %2220 = vmatpush1.msra.mxu0 0.0
    %2221 = vmatprep.subr.mxu0 0.0
    %2222 = vmatpush1.msra.mxu0 0.0
    %2223 = vmatprep.subr.mxu0 0.0
    %2224 = vmatpush1.msra.mxu0 0.0
    %2225 = vmatprep.subr.mxu0 0.0
    %2226 = vmatpush1.msra.mxu0 0.0
    %2227 = vmatprep.subr.mxu0 0.0
    %2228 = vmatpush1.msra.mxu0 0.0
    %2229 = vmatprep.subr.mxu0 0.0
    %2230 = vmatpush1.msra.mxu0 0.0
    %2231 = vmatprep.subr.mxu0 0.0
    %2232 = vmatpush1.msra.mxu0 0.0
    %2233 = vmatprep.mubr.f32.mxu0 0.0
    %2234 = vmatmul.mubr.f32.gmra.mrb[0].mxu0 %v2164
    %v2235 = vpop.f32.mrb[0].mxu0
    %v2236 = vadd.f32 0.0, %v2235
    %v2237 = vpop.f32.mrb[0].mxu0
    %2238 = vmatprep.mubr.f32.mxu0 0.0
    %2239 = vmatmul.mubr.f32.gmra.mrb[0].mxu0 %v2167
    %v2240 = vpop.f32.mrb[0].mxu0
    %v2241 = vadd.f32 0.0, %v2240
    %v2242 = vpop.f32.mrb[0].mxu0
    %2243 = vdwg.mxu0
    %v2245 = vsel %vm1889, %v2064, 0
    %v2248 = vsel %vm1889, %v2065, 0
    %2250 = vmatprep.subr.mxu0 0.0
    %2251 = vmatpush1.msra.mxu0 %v2046
    %2252 = vmatprep.subr.mxu0 0.0
    %2253 = vmatpush1.msra.mxu0 %v2051
    %2254 = vmatprep.subr.mxu0 0.0
    %2255 = vmatpush1.msra.mxu0 %v2056
    %2256 = vmatprep.subr.mxu0 0.0
    %2257 = vmatpush1.msra.mxu0 %v2061
    %2258 = vmatprep.subr.mxu0 0.0
    %2259 = vmatpush1.msra.mxu0 0.0
    %2260 = vmatprep.subr.mxu0 0.0
    %2261 = vmatpush1.msra.mxu0 0.0
    %2262 = vmatprep.subr.mxu0 0.0
    %2263 = vmatpush1.msra.mxu0 0.0
    %2264 = vmatprep.subr.mxu0 0.0
    %2265 = vmatpush1.msra.mxu0 0.0
    %2266 = vmatprep.subr.mxu0 0.0
    %2267 = vmatpush1.msra.mxu0 0.0
    %2268 = vmatprep.subr.mxu0 0.0
    %2269 = vmatpush1.msra.mxu0 0.0
    %2270 = vmatprep.subr.mxu0 0.0
    %2271 = vmatpush1.msra.mxu0 0.0
    %2272 = vmatprep.subr.mxu0 0.0
    %2273 = vmatpush1.msra.mxu0 0.0
    %2274 = vmatprep.subr.mxu0 0.0
    %2275 = vmatpush1.msra.mxu0 0.0
    %2276 = vmatprep.subr.mxu0 0.0
    %2277 = vmatpush1.msra.mxu0 0.0
    %2278 = vmatprep.subr.mxu0 0.0
    %2279 = vmatpush1.msra.mxu0 0.0
    %2280 = vmatprep.subr.mxu0 0.0
    %2281 = vmatpush1.msra.mxu0 0.0
    %2282 = vmatprep.subr.mxu0 0.0
    %2283 = vmatpush1.msra.mxu0 0.0
    %2284 = vmatprep.subr.mxu0 0.0
    %2285 = vmatpush1.msra.mxu0 0.0
    %2286 = vmatprep.subr.mxu0 0.0
    %2287 = vmatpush1.msra.mxu0 0.0
    %2288 = vmatprep.subr.mxu0 0.0
    %2289 = vmatpush1.msra.mxu0 0.0
    %2290 = vmatprep.subr.mxu0 0.0
    %2291 = vmatpush1.msra.mxu0 0.0
    %2292 = vmatprep.subr.mxu0 0.0
    %2293 = vmatpush1.msra.mxu0 0.0
    %2294 = vmatprep.subr.mxu0 0.0
    %2295 = vmatpush1.msra.mxu0 0.0
    %2296 = vmatprep.subr.mxu0 0.0
    %2297 = vmatpush1.msra.mxu0 0.0
    %2298 = vmatprep.subr.mxu0 0.0
    %2299 = vmatpush1.msra.mxu0 0.0
    %2300 = vmatprep.subr.mxu0 0.0
    %2301 = vmatpush1.msra.mxu0 0.0
    %2302 = vmatprep.subr.mxu0 0.0
    %2303 = vmatpush1.msra.mxu0 0.0
    %2304 = vmatprep.subr.mxu0 0.0
    %2305 = vmatpush1.msra.mxu0 0.0
    %2306 = vmatprep.subr.mxu0 0.0
    %2307 = vmatpush1.msra.mxu0 0.0
    %2308 = vmatprep.subr.mxu0 0.0
    %2309 = vmatpush1.msra.mxu0 0.0
    %2310 = vmatprep.subr.mxu0 0.0
    %2311 = vmatpush1.msra.mxu0 0.0
    %2312 = vmatprep.subr.mxu0 0.0
    %2313 = vmatpush1.msra.mxu0 0.0
    %2314 = vmatprep.mubr.f32.mxu0 0.0
    %2315 = vmatmul.mubr.f32.gmra.mrb[0].mxu0 %v2245
    %v2316 = vpop.f32.mrb[0].mxu0
    %v2317 = vadd.f32 %v2236, %v2316
    %v2318 = vpop.f32.mrb[0].mxu0
    %2319 = vmatprep.mubr.f32.mxu0 0.0
    %2320 = vmatmul.mubr.f32.gmra.mrb[0].mxu0 %v2248
    %v2321 = vpop.f32.mrb[0].mxu0
    %v2322 = vadd.f32 %v2241, %v2321
    %v2323 = vpop.f32.mrb[0].mxu0
    %2324 = vdwg.mxu0
    %s2325 = scalar_lea.vmem %s21, 128
    %v2326 = vld [vmem:[%s2325] sm:$0xff]
    %v2327 = vld [vmem:[%s2325 + $0x8] sm:$0xff]
    %v2328 = vld [vmem:[%s2325 + $0x10] sm:$0xff]
    %v2329 = vld [vmem:[%s2325 + $0x18] sm:$0xff]
    %v2330 = vld [vmem:[%s2325 + $0x20] sm:$0xff]
    %v2331 = vld [vmem:[%s2325 + $0x28] sm:$0xff]
    %v2332 = vld [vmem:[%s2325 + $0x30] sm:$0xff]
    %v2333 = vld [vmem:[%s2325 + $0x38] sm:$0xff]
    %2334 = vmatprep.subr.mxu0 0.0
    %2335 = vmatpush1.msra.mxu0 %v2326
    %2336 = vmatprep.subr.mxu0 0.0
    %2337 = vmatpush1.msra.mxu0 %v2327
    %2338 = vmatprep.subr.mxu0 0.0
    %2339 = vmatpush1.msra.mxu0 %v2328
    %2340 = vmatprep.subr.mxu0 0.0
    %2341 = vmatpush1.msra.mxu0 %v2329
    %2342 = vmatprep.subr.mxu0 0.0
    %2343 = vmatpush1.msra.mxu0 %v2330
    %2344 = vmatprep.subr.mxu0 0.0
    %2345 = vmatpush1.msra.mxu0 %v2331
    %2346 = vmatprep.subr.mxu0 0.0
    %2347 = vmatpush1.msra.mxu0 %v2332
    %2348 = vmatprep.subr.mxu0 0.0
    %2349 = vmatpush1.msra.mxu0 %v2333
    %2350 = vmatprep.subr.mxu0 0.0
    %2351 = vmatpush1.msra.mxu0 0.0
    %2352 = vmatprep.subr.mxu0 0.0
    %2353 = vmatpush1.msra.mxu0 0.0
    %2354 = vmatprep.subr.mxu0 0.0
    %2355 = vmatpush1.msra.mxu0 0.0
    %2356 = vmatprep.subr.mxu0 0.0
    %2357 = vmatpush1.msra.mxu0 0.0
    %2358 = vmatprep.subr.mxu0 0.0
    %2359 = vmatpush1.msra.mxu0 0.0
    %2360 = vmatprep.subr.mxu0 0.0
    %2361 = vmatpush1.msra.mxu0 0.0
    %2362 = vmatprep.subr.mxu0 0.0
    %2363 = vmatpush1.msra.mxu0 0.0
    %2364 = vmatprep.subr.mxu0 0.0
    %2365 = vmatpush1.msra.mxu0 0.0
    %2366 = vmatprep.subr.mxu0 0.0
    %2367 = vmatpush1.msra.mxu0 0.0
    %2368 = vmatprep.subr.mxu0 0.0
    %2369 = vmatpush1.msra.mxu0 0.0
    %2370 = vmatprep.subr.mxu0 0.0
    %2371 = vmatpush1.msra.mxu0 0.0
    %2372 = vmatprep.subr.mxu0 0.0
    %2373 = vmatpush1.msra.mxu0 0.0
    %2374 = vmatprep.subr.mxu0 0.0
    %2375 = vmatpush1.msra.mxu0 0.0
    %2376 = vmatprep.subr.mxu0 0.0
    %2377 = vmatpush1.msra.mxu0 0.0
    %2378 = vmatprep.subr.mxu0 0.0
    %2379 = vmatpush1.msra.mxu0 0.0
    %2380 = vmatprep.subr.mxu0 0.0
    %2381 = vmatpush1.msra.mxu0 0.0
    %2382 = vmatprep.subr.mxu0 0.0
    %2383 = vmatpush1.msra.mxu0 0.0
    %2384 = vmatprep.subr.mxu0 0.0
    %2385 = vmatpush1.msra.mxu0 0.0
    %2386 = vmatprep.subr.mxu0 0.0
    %2387 = vmatpush1.msra.mxu0 0.0
    %2388 = vmatprep.subr.mxu0 0.0
    %2389 = vmatpush1.msra.mxu0 0.0
    %2390 = vmatprep.subr.mxu0 0.0
    %2391 = vmatpush1.msra.mxu0 0.0
    %2392 = vmatprep.subr.mxu0 0.0
    %2393 = vmatpush1.msra.mxu0 0.0
    %2394 = vmatprep.subr.mxu0 0.0
    %2395 = vmatpush1.msra.mxu0 0.0
    %2396 = vmatprep.subr.mxu0 0.0
    %2397 = vmatpush1.msra.mxu0 0.0
    %2398 = vmatprep.mubr.f32.mxu0 0.0
    %2399 = vmatmul.mubr.f32.gmra.mrb[0].mxu0 %v1784
    %v2400 = vpop.f32.mrb[0].mxu0
    %v2401 = vadd.f32 0.0, %v2400
    %v2402 = vpop.f32.mrb[0].mxu0
    %2403 = vmatprep.mubr.f32.mxu0 0.0
    %2404 = vmatmul.mubr.f32.gmra.mrb[0].mxu0 %v1787
    %v2405 = vpop.f32.mrb[0].mxu0
    %v2406 = vadd.f32 0.0, %v2405
    %v2407 = vpop.f32.mrb[0].mxu0
    %2408 = vmatprep.mubr.f32.mxu0 0.0
    %2409 = vmatmul.mubr.f32.gmra.mrb[0].mxu0 %v1790
    %v2410 = vpop.f32.mrb[0].mxu0
    %v2411 = vadd.f32 0.0, %v2410
    %v2412 = vpop.f32.mrb[0].mxu0
    %2413 = vmatprep.mubr.f32.mxu0 0.0
    %2414 = vmatmul.mubr.f32.gmra.mrb[0].mxu0 %v1793
    %v2415 = vpop.f32.mrb[0].mxu0
    %v2416 = vadd.f32 0.0, %v2415
    %v2417 = vpop.f32.mrb[0].mxu0
    %2418 = vdwg.mxu0
    %s2419 = scalar_lea.vmem %s19, 32
    %v2420 = vld [vmem:[%s2419] sm:$0xff]
    %v2421 = vld [vmem:[%s2419 + $0x8] sm:$0xff]
    %v2423 = vsel %vm1889, %v2420, 0
    %v2426 = vsel %vm1889, %v2421, 0
    %2428 = vmatprep.subr.mxu0 0.0
    %2429 = vmatpush1.msra.mxu0 %v2401
    %2430 = vmatprep.subr.mxu0 0.0
    %2431 = vmatpush1.msra.mxu0 %v2406
    %2432 = vmatprep.subr.mxu0 0.0
    %2433 = vmatpush1.msra.mxu0 %v2411
    %2434 = vmatprep.subr.mxu0 0.0
    %2435 = vmatpush1.msra.mxu0 %v2416
    %2436 = vmatprep.subr.mxu0 0.0
    %2437 = vmatpush1.msra.mxu0 0.0
    %2438 = vmatprep.subr.mxu0 0.0
    %2439 = vmatpush1.msra.mxu0 0.0
    %2440 = vmatprep.subr.mxu0 0.0
    %2441 = vmatpush1.msra.mxu0 0.0
    %2442 = vmatprep.subr.mxu0 0.0
    %2443 = vmatpush1.msra.mxu0 0.0
    %2444 = vmatprep.subr.mxu0 0.0
    %2445 = vmatpush1.msra.mxu0 0.0
    %2446 = vmatprep.subr.mxu0 0.0
    %2447 = vmatpush1.msra.mxu0 0.0
    %2448 = vmatprep.subr.mxu0 0.0
    %2449 = vmatpush1.msra.mxu0 0.0
    %2450 = vmatprep.subr.mxu0 0.0
    %2451 = vmatpush1.msra.mxu0 0.0
    %2452 = vmatprep.subr.mxu0 0.0
    %2453 = vmatpush1.msra.mxu0 0.0
    %2454 = vmatprep.subr.mxu0 0.0
    %2455 = vmatpush1.msra.mxu0 0.0
    %2456 = vmatprep.subr.mxu0 0.0
    %2457 = vmatpush1.msra.mxu0 0.0
    %2458 = vmatprep.subr.mxu0 0.0
    %2459 = vmatpush1.msra.mxu0 0.0
    %2460 = vmatprep.subr.mxu0 0.0
    %2461 = vmatpush1.msra.mxu0 0.0
    %2462 = vmatprep.subr.mxu0 0.0
    %2463 = vmatpush1.msra.mxu0 0.0
    %2464 = vmatprep.subr.mxu0 0.0
    %2465 = vmatpush1.msra.mxu0 0.0
    %2466 = vmatprep.subr.mxu0 0.0
    %2467 = vmatpush1.msra.mxu0 0.0
    %2468 = vmatprep.subr.mxu0 0.0
    %2469 = vmatpush1.msra.mxu0 0.0
    %2470 = vmatprep.subr.mxu0 0.0
    %2471 = vmatpush1.msra.mxu0 0.0
    %2472 = vmatprep.subr.mxu0 0.0
    %2473 = vmatpush1.msra.mxu0 0.0
    %2474 = vmatprep.subr.mxu0 0.0
    %2475 = vmatpush1.msra.mxu0 0.0
    %2476 = vmatprep.subr.mxu0 0.0
    %2477 = vmatpush1.msra.mxu0 0.0
    %2478 = vmatprep.subr.mxu0 0.0
    %2479 = vmatpush1.msra.mxu0 0.0
    %2480 = vmatprep.subr.mxu0 0.0
    %2481 = vmatpush1.msra.mxu0 0.0
    %2482 = vmatprep.subr.mxu0 0.0
    %2483 = vmatpush1.msra.mxu0 0.0
    %2484 = vmatprep.subr.mxu0 0.0
    %2485 = vmatpush1.msra.mxu0 0.0
    %2486 = vmatprep.subr.mxu0 0.0
    %2487 = vmatpush1.msra.mxu0 0.0
    %2488 = vmatprep.subr.mxu0 0.0
    %2489 = vmatpush1.msra.mxu0 0.0
    %2490 = vmatprep.subr.mxu0 0.0
    %2491 = vmatpush1.msra.mxu0 0.0
    %2492 = vmatprep.mubr.f32.mxu0 0.0
    %2493 = vmatmul.mubr.f32.gmra.mrb[0].mxu0 %v2423
    %v2494 = vpop.f32.mrb[0].mxu0
    %v2495 = vadd.f32 0.0, %v2494
    %v2496 = vpop.f32.mrb[0].mxu0
    %2497 = vmatprep.mubr.f32.mxu0 0.0
    %2498 = vmatmul.mubr.f32.gmra.mrb[0].mxu0 %v2426
    %v2499 = vpop.f32.mrb[0].mxu0
    %v2500 = vadd.f32 0.0, %v2499
    %v2501 = vpop.f32.mrb[0].mxu0
    %2502 = vdwg.mxu0
    %v2503 = vadd.f32 %v2317, %v2495
    %v2504 = vadd.f32 %v2322, %v2500
    %v2505 = vld [vmem:[%s23] sm:$0x1]
    %v2507 = vlaneseq
    %v2508 = vshrl.u32 %v2507, 7
    %v2509 = vsub.s32 0, %v2508
    %v2510 = vrot.slane %v2505, %v2509
    %v2512 = vadd.f32 %v2503, %v2510
    %v2513 = vadd.f32 %v2504, %v2510
    %v2514 = vmax.f32 %v2512, 0.0
    %v2515 = vmax.f32 %v2513, 0.0
    %v2516 = vld [vmem:[%s27] sm:$0xff]
    %v2517 = vld [vmem:[%s27 + $0x8] sm:$0xff]
    %v2518 = vld [vmem:[%s27 + $0x10] sm:$0xff]
    %v2519 = vld [vmem:[%s27 + $0x18] sm:$0xff]
    %v2521 = vsel %vm1889, %v2514, 0
    %v2524 = vsel %vm1889, %v2515, 0
    %2526 = vmatprep.subr.mxu0 0.0
    %2527 = vmatpush1.msra.mxu0 %v2516
    %2528 = vmatprep.subr.mxu0 0.0
    %2529 = vmatpush1.msra.mxu0 %v2517
    %2530 = vmatprep.subr.mxu0 0.0
    %2531 = vmatpush1.msra.mxu0 %v2518
    %2532 = vmatprep.subr.mxu0 0.0
    %2533 = vmatpush1.msra.mxu0 %v2519
    %2534 = vmatprep.subr.mxu0 0.0
    %2535 = vmatpush1.msra.mxu0 0.0
    %2536 = vmatprep.subr.mxu0 0.0
    %2537 = vmatpush1.msra.mxu0 0.0
    %2538 = vmatprep.subr.mxu0 0.0
    %2539 = vmatpush1.msra.mxu0 0.0
    %2540 = vmatprep.subr.mxu0 0.0
    %2541 = vmatpush1.msra.mxu0 0.0
    %2542 = vmatprep.subr.mxu0 0.0
    %2543 = vmatpush1.msra.mxu0 0.0
    %2544 = vmatprep.subr.mxu0 0.0
    %2545 = vmatpush1.msra.mxu0 0.0
    %2546 = vmatprep.subr.mxu0 0.0
    %2547 = vmatpush1.msra.mxu0 0.0
    %2548 = vmatprep.subr.mxu0 0.0
    %2549 = vmatpush1.msra.mxu0 0.0
    %2550 = vmatprep.subr.mxu0 0.0
    %2551 = vmatpush1.msra.mxu0 0.0
    %2552 = vmatprep.subr.mxu0 0.0
    %2553 = vmatpush1.msra.mxu0 0.0
    %2554 = vmatprep.subr.mxu0 0.0
    %2555 = vmatpush1.msra.mxu0 0.0
    %2556 = vmatprep.subr.mxu0 0.0
    %2557 = vmatpush1.msra.mxu0 0.0
    %2558 = vmatprep.subr.mxu0 0.0
    %2559 = vmatpush1.msra.mxu0 0.0
    %2560 = vmatprep.subr.mxu0 0.0
    %2561 = vmatpush1.msra.mxu0 0.0
    %2562 = vmatprep.subr.mxu0 0.0
    %2563 = vmatpush1.msra.mxu0 0.0
    %2564 = vmatprep.subr.mxu0 0.0
    %2565 = vmatpush1.msra.mxu0 0.0
    %2566 = vmatprep.subr.mxu0 0.0
    %2567 = vmatpush1.msra.mxu0 0.0
    %2568 = vmatprep.subr.mxu0 0.0
    %2569 = vmatpush1.msra.mxu0 0.0
    %2570 = vmatprep.subr.mxu0 0.0
    %2571 = vmatpush1.msra.mxu0 0.0
    %2572 = vmatprep.subr.mxu0 0.0
    %2573 = vmatpush1.msra.mxu0 0.0
    %2574 = vmatprep.subr.mxu0 0.0
    %2575 = vmatpush1.msra.mxu0 0.0
    %2576 = vmatprep.subr.mxu0 0.0
    %2577 = vmatpush1.msra.mxu0 0.0
    %2578 = vmatprep.subr.mxu0 0.0
    %2579 = vmatpush1.msra.mxu0 0.0
    %2580 = vmatprep.subr.mxu0 0.0
    %2581 = vmatpush1.msra.mxu0 0.0
    %2582 = vmatprep.subr.mxu0 0.0
    %2583 = vmatpush1.msra.mxu0 0.0
    %2584 = vmatprep.subr.mxu0 0.0
    %2585 = vmatpush1.msra.mxu0 0.0
    %2586 = vmatprep.subr.mxu0 0.0
    %2587 = vmatpush1.msra.mxu0 0.0
    %2588 = vmatprep.subr.mxu0 0.0
    %2589 = vmatpush1.msra.mxu0 0.0
    %2590 = vmatprep.mubr.f32.mxu0 0.0
    %2591 = vmatmul.mubr.f32.gmra.mrb[0].mxu0 %v2521
    %v2592 = vpop.f32.mrb[0].mxu0
    %v2593 = vadd.f32 0.0, %v2592
    %v2594 = vpop.f32.mrb[0].mxu0
    %2595 = vmatprep.mubr.f32.mxu0 0.0
    %2596 = vmatmul.mubr.f32.gmra.mrb[0].mxu0 %v2524
    %v2597 = vpop.f32.mrb[0].mxu0
    %v2598 = vadd.f32 0.0, %v2597
    %v2599 = vpop.f32.mrb[0].mxu0
    %2600 = vdwg.mxu0
    %v2601 = vld [vmem:[%s25] sm:$0xff]
    %v2602 = vld [vmem:[%s25 + $0x8] sm:$0xff]
    %s2603 = scalar_lea.vmem %s27, 32
    %v2604 = vld [vmem:[%s2603] sm:$0xff]
    %v2605 = vld [vmem:[%s2603 + $0x8] sm:$0xff]
    %v2606 = vld [vmem:[%s2603 + $0x10] sm:$0xff]
    %v2607 = vld [vmem:[%s2603 + $0x18] sm:$0xff]
    %2608 = vmatprep.subr.mxu0 0.0
    %2609 = vmatpush1.msra.mxu0 %v2604
    %2610 = vmatprep.subr.mxu0 0.0
    %2611 = vmatpush1.msra.mxu0 %v2605
    %2612 = vmatprep.subr.mxu0 0.0
    %2613 = vmatpush1.msra.mxu0 %v2606
    %2614 = vmatprep.subr.mxu0 0.0
    %2615 = vmatpush1.msra.mxu0 %v2607
    %2616 = vmatprep.subr.mxu0 0.0
    %2617 = vmatpush1.msra.mxu0 0.0
    %2618 = vmatprep.subr.mxu0 0.0
    %2619 = vmatpush1.msra.mxu0 0.0
    %2620 = vmatprep.subr.mxu0 0.0
    %2621 = vmatpush1.msra.mxu0 0.0
    %2622 = vmatprep.subr.mxu0 0.0
    %2623 = vmatpush1.msra.mxu0 0.0
    %2624 = vmatprep.subr.mxu0 0.0
    %2625 = vmatpush1.msra.mxu0 0.0
    %2626 = vmatprep.subr.mxu0 0.0
    %2627 = vmatpush1.msra.mxu0 0.0
    %2628 = vmatprep.subr.mxu0 0.0
    %2629 = vmatpush1.msra.mxu0 0.0
    %2630 = vmatprep.subr.mxu0 0.0
    %2631 = vmatpush1.msra.mxu0 0.0
    %2632 = vmatprep.subr.mxu0 0.0
    %2633 = vmatpush1.msra.mxu0 0.0
    %2634 = vmatprep.subr.mxu0 0.0
    %2635 = vmatpush1.msra.mxu0 0.0
    %2636 = vmatprep.subr.mxu0 0.0
    %2637 = vmatpush1.msra.mxu0 0.0
    %2638 = vmatprep.subr.mxu0 0.0
    %2639 = vmatpush1.msra.mxu0 0.0
    %2640 = vmatprep.subr.mxu0 0.0
    %2641 = vmatpush1.msra.mxu0 0.0
    %2642 = vmatprep.subr.mxu0 0.0
    %2643 = vmatpush1.msra.mxu0 0.0
    %2644 = vmatprep.subr.mxu0 0.0
    %2645 = vmatpush1.msra.mxu0 0.0
    %2646 = vmatprep.subr.mxu0 0.0
    %2647 = vmatpush1.msra.mxu0 0.0
    %2648 = vmatprep.subr.mxu0 0.0
    %2649 = vmatpush1.msra.mxu0 0.0
    %2650 = vmatprep.subr.mxu0 0.0
    %2651 = vmatpush1.msra.mxu0 0.0
    %2652 = vmatprep.subr.mxu0 0.0
    %2653 = vmatpush1.msra.mxu0 0.0
    %2654 = vmatprep.subr.mxu0 0.0
    %2655 = vmatpush1.msra.mxu0 0.0
    %2656 = vmatprep.subr.mxu0 0.0
    %2657 = vmatpush1.msra.mxu0 0.0
    %2658 = vmatprep.subr.mxu0 0.0
    %2659 = vmatpush1.msra.mxu0 0.0
    %2660 = vmatprep.subr.mxu0 0.0
    %2661 = vmatpush1.msra.mxu0 0.0
    %2662 = vmatprep.subr.mxu0 0.0
    %2663 = vmatpush1.msra.mxu0 0.0
    %2664 = vmatprep.subr.mxu0 0.0
    %2665 = vmatpush1.msra.mxu0 0.0
    %2666 = vmatprep.subr.mxu0 0.0
    %2667 = vmatpush1.msra.mxu0 0.0
    %2668 = vmatprep.subr.mxu0 0.0
    %2669 = vmatpush1.msra.mxu0 0.0
    %2670 = vmatprep.subr.mxu0 0.0
    %2671 = vmatpush1.msra.mxu0 0.0
    %2672 = vmatprep.mubr.f32.mxu0 0.0
    %2673 = vmatmul.mubr.f32.gmra.mrb[0].mxu0 %v2521
    %v2674 = vpop.f32.mrb[0].mxu0
    %v2675 = vadd.f32 0.0, %v2674
    %v2676 = vpop.f32.mrb[0].mxu0
    %2677 = vmatprep.mubr.f32.mxu0 0.0
    %2678 = vmatmul.mubr.f32.gmra.mrb[0].mxu0 %v2524
    %v2679 = vpop.f32.mrb[0].mxu0
    %v2680 = vadd.f32 0.0, %v2679
    %v2681 = vpop.f32.mrb[0].mxu0
    %2682 = vdwg.mxu0
    %s2683 = scalar_lea.vmem %s25, 16
    %v2684 = vld [vmem:[%s2683] sm:$0xff]
    %v2685 = vld [vmem:[%s2683 + $0x8] sm:$0xff]
    %vm2686 = vcmask 130048
    %v2688 = vsel %vm2686, %v2684, 0
    %v2691 = vsel %vm2686, %v2685, 0
    %2693 = vmatprep.subr.mxu0 0.0
    %2694 = vmatpush1.msra.mxu0 %v2675
    %2695 = vmatprep.subr.mxu0 0.0
    %2696 = vmatpush1.msra.mxu0 %v2680
    %2697 = vmatprep.subr.mxu0 0.0
    %2698 = vmatpush1.msra.mxu0 0.0
    %2699 = vmatprep.subr.mxu0 0.0
    %2700 = vmatpush1.msra.mxu0 0.0
    %2701 = vmatprep.subr.mxu0 0.0
    %2702 = vmatpush1.msra.mxu0 0.0
    %2703 = vmatprep.subr.mxu0 0.0
    %2704 = vmatpush1.msra.mxu0 0.0
    %2705 = vmatprep.subr.mxu0 0.0
    %2706 = vmatpush1.msra.mxu0 0.0
    %2707 = vmatprep.subr.mxu0 0.0
    %2708 = vmatpush1.msra.mxu0 0.0
    %2709 = vmatprep.subr.mxu0 0.0
    %2710 = vmatpush1.msra.mxu0 0.0
    %2711 = vmatprep.subr.mxu0 0.0
    %2712 = vmatpush1.msra.mxu0 0.0
    %2713 = vmatprep.subr.mxu0 0.0
    %2714 = vmatpush1.msra.mxu0 0.0
    %2715 = vmatprep.subr.mxu0 0.0
    %2716 = vmatpush1.msra.mxu0 0.0
    %2717 = vmatprep.subr.mxu0 0.0
    %2718 = vmatpush1.msra.mxu0 0.0
    %2719 = vmatprep.subr.mxu0 0.0
    %2720 = vmatpush1.msra.mxu0 0.0
    %2721 = vmatprep.subr.mxu0 0.0
    %2722 = vmatpush1.msra.mxu0 0.0
    %2723 = vmatprep.subr.mxu0 0.0
    %2724 = vmatpush1.msra.mxu0 0.0
    %2725 = vmatprep.subr.mxu0 0.0
    %2726 = vmatpush1.msra.mxu0 0.0
    %2727 = vmatprep.subr.mxu0 0.0
    %2728 = vmatpush1.msra.mxu0 0.0
    %2729 = vmatprep.subr.mxu0 0.0
    %2730 = vmatpush1.msra.mxu0 0.0
    %2731 = vmatprep.subr.mxu0 0.0
    %2732 = vmatpush1.msra.mxu0 0.0
    %2733 = vmatprep.subr.mxu0 0.0
    %2734 = vmatpush1.msra.mxu0 0.0
    %2735 = vmatprep.subr.mxu0 0.0
    %2736 = vmatpush1.msra.mxu0 0.0
    %2737 = vmatprep.subr.mxu0 0.0
    %2738 = vmatpush1.msra.mxu0 0.0
    %2739 = vmatprep.subr.mxu0 0.0
    %2740 = vmatpush1.msra.mxu0 0.0
    %2741 = vmatprep.subr.mxu0 0.0
    %2742 = vmatpush1.msra.mxu0 0.0
    %2743 = vmatprep.subr.mxu0 0.0
    %2744 = vmatpush1.msra.mxu0 0.0
    %2745 = vmatprep.subr.mxu0 0.0
    %2746 = vmatpush1.msra.mxu0 0.0
    %2747 = vmatprep.subr.mxu0 0.0
    %2748 = vmatpush1.msra.mxu0 0.0
    %2749 = vmatprep.subr.mxu0 0.0
    %2750 = vmatpush1.msra.mxu0 0.0
    %2751 = vmatprep.subr.mxu0 0.0
    %2752 = vmatpush1.msra.mxu0 0.0
    %2753 = vmatprep.subr.mxu0 0.0
    %2754 = vmatpush1.msra.mxu0 0.0
    %2755 = vmatprep.subr.mxu0 0.0
    %2756 = vmatpush1.msra.mxu0 0.0
    %2757 = vmatprep.mubr.f32.mxu0 0.0
    %2758 = vmatmul.mubr.f32.gmra.mrb[0].mxu0 %v2688
    %v2759 = vpop.f32.mrb[0].mxu0
    %v2760 = vadd.f32 0.0, %v2759
    %v2761 = vpop.f32.mrb[0].mxu0
    %2762 = vmatprep.mubr.f32.mxu0 0.0
    %2763 = vmatmul.mubr.f32.gmra.mrb[0].mxu0 %v2691
    %v2764 = vpop.f32.mrb[0].mxu0
    %v2765 = vadd.f32 0.0, %v2764
    %v2766 = vpop.f32.mrb[0].mxu0
    %2767 = vdwg.mxu0
    %v2769 = vsel %vm2686, %v2601, 0
    %v2772 = vsel %vm2686, %v2602, 0
    %2774 = vmatprep.subr.mxu0 0.0
    %2775 = vmatpush1.msra.mxu0 %v2593
    %2776 = vmatprep.subr.mxu0 0.0
    %2777 = vmatpush1.msra.mxu0 %v2598
    %2778 = vmatprep.subr.mxu0 0.0
    %2779 = vmatpush1.msra.mxu0 0.0
    %2780 = vmatprep.subr.mxu0 0.0
    %2781 = vmatpush1.msra.mxu0 0.0
    %2782 = vmatprep.subr.mxu0 0.0
    %2783 = vmatpush1.msra.mxu0 0.0
    %2784 = vmatprep.subr.mxu0 0.0
    %2785 = vmatpush1.msra.mxu0 0.0
    %2786 = vmatprep.subr.mxu0 0.0
    %2787 = vmatpush1.msra.mxu0 0.0
    %2788 = vmatprep.subr.mxu0 0.0
    %2789 = vmatpush1.msra.mxu0 0.0
    %2790 = vmatprep.subr.mxu0 0.0
    %2791 = vmatpush1.msra.mxu0 0.0
    %2792 = vmatprep.subr.mxu0 0.0
    %2793 = vmatpush1.msra.mxu0 0.0
    %2794 = vmatprep.subr.mxu0 0.0
    %2795 = vmatpush1.msra.mxu0 0.0
    %2796 = vmatprep.subr.mxu0 0.0
    %2797 = vmatpush1.msra.mxu0 0.0
    %2798 = vmatprep.subr.mxu0 0.0
    %2799 = vmatpush1.msra.mxu0 0.0
    %2800 = vmatprep.subr.mxu0 0.0
    %2801 = vmatpush1.msra.mxu0 0.0
    %2802 = vmatprep.subr.mxu0 0.0
    %2803 = vmatpush1.msra.mxu0 0.0
    %2804 = vmatprep.subr.mxu0 0.0
    %2805 = vmatpush1.msra.mxu0 0.0
    %2806 = vmatprep.subr.mxu0 0.0
    %2807 = vmatpush1.msra.mxu0 0.0
    %2808 = vmatprep.subr.mxu0 0.0
    %2809 = vmatpush1.msra.mxu0 0.0
    %2810 = vmatprep.subr.mxu0 0.0
    %2811 = vmatpush1.msra.mxu0 0.0
    %2812 = vmatprep.subr.mxu0 0.0
    %2813 = vmatpush1.msra.mxu0 0.0
    %2814 = vmatprep.subr.mxu0 0.0
    %2815 = vmatpush1.msra.mxu0 0.0
    %2816 = vmatprep.subr.mxu0 0.0
    %2817 = vmatpush1.msra.mxu0 0.0
    %2818 = vmatprep.subr.mxu0 0.0
    %2819 = vmatpush1.msra.mxu0 0.0
    %2820 = vmatprep.subr.mxu0 0.0
    %2821 = vmatpush1.msra.mxu0 0.0
    %2822 = vmatprep.subr.mxu0 0.0
    %2823 = vmatpush1.msra.mxu0 0.0
    %2824 = vmatprep.subr.mxu0 0.0
    %2825 = vmatpush1.msra.mxu0 0.0
    %2826 = vmatprep.subr.mxu0 0.0
    %2827 = vmatpush1.msra.mxu0 0.0
    %2828 = vmatprep.subr.mxu0 0.0
    %2829 = vmatpush1.msra.mxu0 0.0
    %2830 = vmatprep.subr.mxu0 0.0
    %2831 = vmatpush1.msra.mxu0 0.0
    %2832 = vmatprep.subr.mxu0 0.0
    %2833 = vmatpush1.msra.mxu0 0.0
    %2834 = vmatprep.subr.mxu0 0.0
    %2835 = vmatpush1.msra.mxu0 0.0
    %2836 = vmatprep.subr.mxu0 0.0
    %2837 = vmatpush1.msra.mxu0 0.0
    %2838 = vmatprep.mubr.f32.mxu0 0.0
    %2839 = vmatmul.mubr.f32.gmra.mrb[0].mxu0 %v2769
    %v2840 = vpop.f32.mrb[0].mxu0
    %v2841 = vadd.f32 %v2760, %v2840
    %v2842 = vpop.f32.mrb[0].mxu0
    %2843 = vmatprep.mubr.f32.mxu0 0.0
    %2844 = vmatmul.mubr.f32.gmra.mrb[0].mxu0 %v2772
    %v2845 = vpop.f32.mrb[0].mxu0
    %v2846 = vadd.f32 %v2765, %v2845
    %v2847 = vpop.f32.mrb[0].mxu0
    %2848 = vdwg.mxu0
    %s2849 = scalar_lea.vmem %s27, 64
    %v2850 = vld [vmem:[%s2849] sm:$0xff]
    %v2851 = vld [vmem:[%s2849 + $0x8] sm:$0xff]
    %v2852 = vld [vmem:[%s2849 + $0x10] sm:$0xff]
    %v2853 = vld [vmem:[%s2849 + $0x18] sm:$0xff]
    %2854 = vmatprep.subr.mxu0 0.0
    %2855 = vmatpush1.msra.mxu0 %v2850
    %2856 = vmatprep.subr.mxu0 0.0
    %2857 = vmatpush1.msra.mxu0 %v2851
    %2858 = vmatprep.subr.mxu0 0.0
    %2859 = vmatpush1.msra.mxu0 %v2852
    %2860 = vmatprep.subr.mxu0 0.0
    %2861 = vmatpush1.msra.mxu0 %v2853
    %2862 = vmatprep.subr.mxu0 0.0
    %2863 = vmatpush1.msra.mxu0 0.0
    %2864 = vmatprep.subr.mxu0 0.0
    %2865 = vmatpush1.msra.mxu0 0.0
    %2866 = vmatprep.subr.mxu0 0.0
    %2867 = vmatpush1.msra.mxu0 0.0
    %2868 = vmatprep.subr.mxu0 0.0
    %2869 = vmatpush1.msra.mxu0 0.0
    %2870 = vmatprep.subr.mxu0 0.0
    %2871 = vmatpush1.msra.mxu0 0.0
    %2872 = vmatprep.subr.mxu0 0.0
    %2873 = vmatpush1.msra.mxu0 0.0
    %2874 = vmatprep.subr.mxu0 0.0
    %2875 = vmatpush1.msra.mxu0 0.0
    %2876 = vmatprep.subr.mxu0 0.0
    %2877 = vmatpush1.msra.mxu0 0.0
    %2878 = vmatprep.subr.mxu0 0.0
    %2879 = vmatpush1.msra.mxu0 0.0
    %2880 = vmatprep.subr.mxu0 0.0
    %2881 = vmatpush1.msra.mxu0 0.0
    %2882 = vmatprep.subr.mxu0 0.0
    %2883 = vmatpush1.msra.mxu0 0.0
    %2884 = vmatprep.subr.mxu0 0.0
    %2885 = vmatpush1.msra.mxu0 0.0
    %2886 = vmatprep.subr.mxu0 0.0
    %2887 = vmatpush1.msra.mxu0 0.0
    %2888 = vmatprep.subr.mxu0 0.0
    %2889 = vmatpush1.msra.mxu0 0.0
    %2890 = vmatprep.subr.mxu0 0.0
    %2891 = vmatpush1.msra.mxu0 0.0
    %2892 = vmatprep.subr.mxu0 0.0
    %2893 = vmatpush1.msra.mxu0 0.0
    %2894 = vmatprep.subr.mxu0 0.0
    %2895 = vmatpush1.msra.mxu0 0.0
    %2896 = vmatprep.subr.mxu0 0.0
    %2897 = vmatpush1.msra.mxu0 0.0
    %2898 = vmatprep.subr.mxu0 0.0
    %2899 = vmatpush1.msra.mxu0 0.0
    %2900 = vmatprep.subr.mxu0 0.0
    %2901 = vmatpush1.msra.mxu0 0.0
    %2902 = vmatprep.subr.mxu0 0.0
    %2903 = vmatpush1.msra.mxu0 0.0
    %2904 = vmatprep.subr.mxu0 0.0
    %2905 = vmatpush1.msra.mxu0 0.0
    %2906 = vmatprep.subr.mxu0 0.0
    %2907 = vmatpush1.msra.mxu0 0.0
    %2908 = vmatprep.subr.mxu0 0.0
    %2909 = vmatpush1.msra.mxu0 0.0
    %2910 = vmatprep.subr.mxu0 0.0
    %2911 = vmatpush1.msra.mxu0 0.0
    %2912 = vmatprep.subr.mxu0 0.0
    %2913 = vmatpush1.msra.mxu0 0.0
    %2914 = vmatprep.subr.mxu0 0.0
    %2915 = vmatpush1.msra.mxu0 0.0
    %2916 = vmatprep.subr.mxu0 0.0
    %2917 = vmatpush1.msra.mxu0 0.0
    %2918 = vmatprep.mubr.f32.mxu0 0.0
    %2919 = vmatmul.mubr.f32.gmra.mrb[0].mxu0 %v2521
    %v2920 = vpop.f32.mrb[0].mxu0
    %v2921 = vadd.f32 0.0, %v2920
    %v2922 = vpop.f32.mrb[0].mxu0
    %2923 = vmatprep.mubr.f32.mxu0 0.0
    %2924 = vmatmul.mubr.f32.gmra.mrb[0].mxu0 %v2524
    %v2925 = vpop.f32.mrb[0].mxu0
    %v2926 = vadd.f32 0.0, %v2925
    %v2927 = vpop.f32.mrb[0].mxu0
    %2928 = vdwg.mxu0
    %s2929 = scalar_lea.vmem %s25, 32
    %v2930 = vld [vmem:[%s2929] sm:$0xff]
    %v2931 = vld [vmem:[%s2929 + $0x8] sm:$0xff]
    %v2933 = vsel %vm2686, %v2930, 0
    %v2936 = vsel %vm2686, %v2931, 0
    %2938 = vmatprep.subr.mxu0 0.0
    %2939 = vmatpush1.msra.mxu0 %v2921
    %2940 = vmatprep.subr.mxu0 0.0
    %2941 = vmatpush1.msra.mxu0 %v2926
    %2942 = vmatprep.subr.mxu0 0.0
    %2943 = vmatpush1.msra.mxu0 0.0
    %2944 = vmatprep.subr.mxu0 0.0
    %2945 = vmatpush1.msra.mxu0 0.0
    %2946 = vmatprep.subr.mxu0 0.0
    %2947 = vmatpush1.msra.mxu0 0.0
    %2948 = vmatprep.subr.mxu0 0.0
    %2949 = vmatpush1.msra.mxu0 0.0
    %2950 = vmatprep.subr.mxu0 0.0
    %2951 = vmatpush1.msra.mxu0 0.0
    %2952 = vmatprep.subr.mxu0 0.0
    %2953 = vmatpush1.msra.mxu0 0.0
    %2954 = vmatprep.subr.mxu0 0.0
    %2955 = vmatpush1.msra.mxu0 0.0
    %2956 = vmatprep.subr.mxu0 0.0
    %2957 = vmatpush1.msra.mxu0 0.0
    %2958 = vmatprep.subr.mxu0 0.0
    %2959 = vmatpush1.msra.mxu0 0.0
    %2960 = vmatprep.subr.mxu0 0.0
    %2961 = vmatpush1.msra.mxu0 0.0
    %2962 = vmatprep.subr.mxu0 0.0
    %2963 = vmatpush1.msra.mxu0 0.0
    %2964 = vmatprep.subr.mxu0 0.0
    %2965 = vmatpush1.msra.mxu0 0.0
    %2966 = vmatprep.subr.mxu0 0.0
    %2967 = vmatpush1.msra.mxu0 0.0
    %2968 = vmatprep.subr.mxu0 0.0
    %2969 = vmatpush1.msra.mxu0 0.0
    %2970 = vmatprep.subr.mxu0 0.0
    %2971 = vmatpush1.msra.mxu0 0.0
    %2972 = vmatprep.subr.mxu0 0.0
    %2973 = vmatpush1.msra.mxu0 0.0
    %2974 = vmatprep.subr.mxu0 0.0
    %2975 = vmatpush1.msra.mxu0 0.0
    %2976 = vmatprep.subr.mxu0 0.0
    %2977 = vmatpush1.msra.mxu0 0.0
    %2978 = vmatprep.subr.mxu0 0.0
    %2979 = vmatpush1.msra.mxu0 0.0
    %2980 = vmatprep.subr.mxu0 0.0
    %2981 = vmatpush1.msra.mxu0 0.0
    %2982 = vmatprep.subr.mxu0 0.0
    %2983 = vmatpush1.msra.mxu0 0.0
    %2984 = vmatprep.subr.mxu0 0.0
    %2985 = vmatpush1.msra.mxu0 0.0
    %2986 = vmatprep.subr.mxu0 0.0
    %2987 = vmatpush1.msra.mxu0 0.0
    %2988 = vmatprep.subr.mxu0 0.0
    %2989 = vmatpush1.msra.mxu0 0.0
    %2990 = vmatprep.subr.mxu0 0.0
    %2991 = vmatpush1.msra.mxu0 0.0
    %2992 = vmatprep.subr.mxu0 0.0
    %2993 = vmatpush1.msra.mxu0 0.0
    %2994 = vmatprep.subr.mxu0 0.0
    %2995 = vmatpush1.msra.mxu0 0.0
    %2996 = vmatprep.subr.mxu0 0.0
    %2997 = vmatpush1.msra.mxu0 0.0
    %2998 = vmatprep.subr.mxu0 0.0
    %2999 = vmatpush1.msra.mxu0 0.0
    %3000 = vmatprep.subr.mxu0 0.0
    %3001 = vmatpush1.msra.mxu0 0.0
    %3002 = vmatprep.mubr.f32.mxu0 0.0
    %3003 = vmatmul.mubr.f32.gmra.mrb[0].mxu0 %v2933
    %v3004 = vpop.f32.mrb[0].mxu0
    %v3005 = vadd.f32 0.0, %v3004
    %v3006 = vpop.f32.mrb[0].mxu0
    %3007 = vmatprep.mubr.f32.mxu0 0.0
    %3008 = vmatmul.mubr.f32.gmra.mrb[0].mxu0 %v2936
    %v3009 = vpop.f32.mrb[0].mxu0
    %v3010 = vadd.f32 0.0, %v3009
    %v3011 = vpop.f32.mrb[0].mxu0
    %3012 = vdwg.mxu0
    %v3013 = vadd.f32 %v2841, %v3005
    %v3014 = vadd.f32 %v2846, %v3010
    %v3015 = vld [vmem:[%s29] sm:$0x1]
    %v3017 = vlaneseq
    %v3018 = vshrl.u32 %v3017, 7
    %v3019 = vsub.s32 0, %v3018
    %v3020 = vrot.slane %v3015, %v3019
    %v3022 = vadd.f32 %v3013, %v3020
    %v3023 = vadd.f32 %v3014, %v3020
    %v3024 = vmax.f32 %v3022, 0.0
    %v3025 = vmax.f32 %v3023, 0.0
    %v3026 = vld [vmem:[%s33] sm:$0xff]
    %v3027 = vld [vmem:[%s33 + $0x8] sm:$0xff]
    %v3028 = vld [vmem:[%s33 + $0x10] sm:$0xff]
    %v3029 = vld [vmem:[%s33 + $0x18] sm:$0xff]
    %v3031 = vsel %vm1889, %v3024, 0
    %v3034 = vsel %vm1889, %v3025, 0
    %3036 = vmatprep.subr.mxu0 0.0
    %3037 = vmatpush1.msra.mxu0 %v3026
    %3038 = vmatprep.subr.mxu0 0.0
    %3039 = vmatpush1.msra.mxu0 %v3027
    %3040 = vmatprep.subr.mxu0 0.0
    %3041 = vmatpush1.msra.mxu0 %v3028
    %3042 = vmatprep.subr.mxu0 0.0
    %3043 = vmatpush1.msra.mxu0 %v3029
    %3044 = vmatprep.subr.mxu0 0.0
    %3045 = vmatpush1.msra.mxu0 0.0
    %3046 = vmatprep.subr.mxu0 0.0
    %3047 = vmatpush1.msra.mxu0 0.0
    %3048 = vmatprep.subr.mxu0 0.0
    %3049 = vmatpush1.msra.mxu0 0.0
    %3050 = vmatprep.subr.mxu0 0.0
    %3051 = vmatpush1.msra.mxu0 0.0
    %3052 = vmatprep.subr.mxu0 0.0
    %3053 = vmatpush1.msra.mxu0 0.0
    %3054 = vmatprep.subr.mxu0 0.0
    %3055 = vmatpush1.msra.mxu0 0.0
    %3056 = vmatprep.subr.mxu0 0.0
    %3057 = vmatpush1.msra.mxu0 0.0
    %3058 = vmatprep.subr.mxu0 0.0
    %3059 = vmatpush1.msra.mxu0 0.0
    %3060 = vmatprep.subr.mxu0 0.0
    %3061 = vmatpush1.msra.mxu0 0.0
    %3062 = vmatprep.subr.mxu0 0.0
    %3063 = vmatpush1.msra.mxu0 0.0
    %3064 = vmatprep.subr.mxu0 0.0
    %3065 = vmatpush1.msra.mxu0 0.0
    %3066 = vmatprep.subr.mxu0 0.0
    %3067 = vmatpush1.msra.mxu0 0.0
    %3068 = vmatprep.subr.mxu0 0.0
    %3069 = vmatpush1.msra.mxu0 0.0
    %3070 = vmatprep.subr.mxu0 0.0
    %3071 = vmatpush1.msra.mxu0 0.0
    %3072 = vmatprep.subr.mxu0 0.0
    %3073 = vmatpush1.msra.mxu0 0.0
    %3074 = vmatprep.subr.mxu0 0.0
    %3075 = vmatpush1.msra.mxu0 0.0
    %3076 = vmatprep.subr.mxu0 0.0
    %3077 = vmatpush1.msra.mxu0 0.0
    %3078 = vmatprep.subr.mxu0 0.0
    %3079 = vmatpush1.msra.mxu0 0.0
    %3080 = vmatprep.subr.mxu0 0.0
    %3081 = vmatpush1.msra.mxu0 0.0
    %3082 = vmatprep.subr.mxu0 0.0
    %3083 = vmatpush1.msra.mxu0 0.0
    %3084 = vmatprep.subr.mxu0 0.0
    %3085 = vmatpush1.msra.mxu0 0.0
    %3086 = vmatprep.subr.mxu0 0.0
    %3087 = vmatpush1.msra.mxu0 0.0
    %3088 = vmatprep.subr.mxu0 0.0
    %3089 = vmatpush1.msra.mxu0 0.0
    %3090 = vmatprep.subr.mxu0 0.0
    %3091 = vmatpush1.msra.mxu0 0.0
    %3092 = vmatprep.subr.mxu0 0.0
    %3093 = vmatpush1.msra.mxu0 0.0
    %3094 = vmatprep.subr.mxu0 0.0
    %3095 = vmatpush1.msra.mxu0 0.0
    %3096 = vmatprep.subr.mxu0 0.0
    %3097 = vmatpush1.msra.mxu0 0.0
    %3098 = vmatprep.subr.mxu0 0.0
    %3099 = vmatpush1.msra.mxu0 0.0
    %3100 = vmatprep.mubr.f32.mxu0 0.0
    %3101 = vmatmul.mubr.f32.gmra.mrb[0].mxu0 %v3031
    %v3102 = vpop.f32.mrb[0].mxu0
    %v3103 = vadd.f32 0.0, %v3102
    %v3104 = vpop.f32.mrb[0].mxu0
    %3105 = vmatprep.mubr.f32.mxu0 0.0
    %3106 = vmatmul.mubr.f32.gmra.mrb[0].mxu0 %v3034
    %v3107 = vpop.f32.mrb[0].mxu0
    %v3108 = vadd.f32 0.0, %v3107
    %v3109 = vpop.f32.mrb[0].mxu0
    %3110 = vdwg.mxu0
    %v3111 = vld [vmem:[%s31] sm:$0xff]
    %v3112 = vld [vmem:[%s31 + $0x8] sm:$0xff]
    %s3113 = scalar_lea.vmem %s33, 32
    %v3114 = vld [vmem:[%s3113] sm:$0xff]
    %v3115 = vld [vmem:[%s3113 + $0x8] sm:$0xff]
    %v3116 = vld [vmem:[%s3113 + $0x10] sm:$0xff]
    %v3117 = vld [vmem:[%s3113 + $0x18] sm:$0xff]
    %3118 = vmatprep.subr.mxu0 0.0
    %3119 = vmatpush1.msra.mxu0 %v3114
    %3120 = vmatprep.subr.mxu0 0.0
    %3121 = vmatpush1.msra.mxu0 %v3115
    %3122 = vmatprep.subr.mxu0 0.0
    %3123 = vmatpush1.msra.mxu0 %v3116
    %3124 = vmatprep.subr.mxu0 0.0
    %3125 = vmatpush1.msra.mxu0 %v3117
    %3126 = vmatprep.subr.mxu0 0.0
    %3127 = vmatpush1.msra.mxu0 0.0
    %3128 = vmatprep.subr.mxu0 0.0
    %3129 = vmatpush1.msra.mxu0 0.0
    %3130 = vmatprep.subr.mxu0 0.0
    %3131 = vmatpush1.msra.mxu0 0.0
    %3132 = vmatprep.subr.mxu0 0.0
    %3133 = vmatpush1.msra.mxu0 0.0
    %3134 = vmatprep.subr.mxu0 0.0
    %3135 = vmatpush1.msra.mxu0 0.0
    %3136 = vmatprep.subr.mxu0 0.0
    %3137 = vmatpush1.msra.mxu0 0.0
    %3138 = vmatprep.subr.mxu0 0.0
    %3139 = vmatpush1.msra.mxu0 0.0
    %3140 = vmatprep.subr.mxu0 0.0
    %3141 = vmatpush1.msra.mxu0 0.0
    %3142 = vmatprep.subr.mxu0 0.0
    %3143 = vmatpush1.msra.mxu0 0.0
    %3144 = vmatprep.subr.mxu0 0.0
    %3145 = vmatpush1.msra.mxu0 0.0
    %3146 = vmatprep.subr.mxu0 0.0
    %3147 = vmatpush1.msra.mxu0 0.0
    %3148 = vmatprep.subr.mxu0 0.0
    %3149 = vmatpush1.msra.mxu0 0.0
    %3150 = vmatprep.subr.mxu0 0.0
    %3151 = vmatpush1.msra.mxu0 0.0
    %3152 = vmatprep.subr.mxu0 0.0
    %3153 = vmatpush1.msra.mxu0 0.0
    %3154 = vmatprep.subr.mxu0 0.0
    %3155 = vmatpush1.msra.mxu0 0.0
    %3156 = vmatprep.subr.mxu0 0.0
    %3157 = vmatpush1.msra.mxu0 0.0
    %3158 = vmatprep.subr.mxu0 0.0
    %3159 = vmatpush1.msra.mxu0 0.0
    %3160 = vmatprep.subr.mxu0 0.0
    %3161 = vmatpush1.msra.mxu0 0.0
    %3162 = vmatprep.subr.mxu0 0.0
    %3163 = vmatpush1.msra.mxu0 0.0
    %3164 = vmatprep.subr.mxu0 0.0
    %3165 = vmatpush1.msra.mxu0 0.0
    %3166 = vmatprep.subr.mxu0 0.0
    %3167 = vmatpush1.msra.mxu0 0.0
    %3168 = vmatprep.subr.mxu0 0.0
    %3169 = vmatpush1.msra.mxu0 0.0
    %3170 = vmatprep.subr.mxu0 0.0
    %3171 = vmatpush1.msra.mxu0 0.0
    %3172 = vmatprep.subr.mxu0 0.0
    %3173 = vmatpush1.msra.mxu0 0.0
    %3174 = vmatprep.subr.mxu0 0.0
    %3175 = vmatpush1.msra.mxu0 0.0
    %3176 = vmatprep.subr.mxu0 0.0
    %3177 = vmatpush1.msra.mxu0 0.0
    %3178 = vmatprep.subr.mxu0 0.0
    %3179 = vmatpush1.msra.mxu0 0.0
    %3180 = vmatprep.subr.mxu0 0.0
    %3181 = vmatpush1.msra.mxu0 0.0
    %3182 = vmatprep.mubr.f32.mxu0 0.0
    %3183 = vmatmul.mubr.f32.gmra.mrb[0].mxu0 %v3031
    %v3184 = vpop.f32.mrb[0].mxu0
    %v3185 = vadd.f32 0.0, %v3184
    %v3186 = vpop.f32.mrb[0].mxu0
    %3187 = vmatprep.mubr.f32.mxu0 0.0
    %3188 = vmatmul.mubr.f32.gmra.mrb[0].mxu0 %v3034
    %v3189 = vpop.f32.mrb[0].mxu0
    %v3190 = vadd.f32 0.0, %v3189
    %v3191 = vpop.f32.mrb[0].mxu0
    %3192 = vdwg.mxu0
    %s3193 = scalar_lea.vmem %s31, 16
    %v3194 = vld [vmem:[%s3193] sm:$0xff]
    %v3195 = vld [vmem:[%s3193 + $0x8] sm:$0xff]
    %v3197 = vsel %vm2686, %v3194, 0
    %v3200 = vsel %vm2686, %v3195, 0
    %3202 = vmatprep.subr.mxu0 0.0
    %3203 = vmatpush1.msra.mxu0 %v3185
    %3204 = vmatprep.subr.mxu0 0.0
    %3205 = vmatpush1.msra.mxu0 %v3190
    %3206 = vmatprep.subr.mxu0 0.0
    %3207 = vmatpush1.msra.mxu0 0.0
    %3208 = vmatprep.subr.mxu0 0.0
    %3209 = vmatpush1.msra.mxu0 0.0
    %3210 = vmatprep.subr.mxu0 0.0
    %3211 = vmatpush1.msra.mxu0 0.0
    %3212 = vmatprep.subr.mxu0 0.0
    %3213 = vmatpush1.msra.mxu0 0.0
    %3214 = vmatprep.subr.mxu0 0.0
    %3215 = vmatpush1.msra.mxu0 0.0
    %3216 = vmatprep.subr.mxu0 0.0
    %3217 = vmatpush1.msra.mxu0 0.0
    %3218 = vmatprep.subr.mxu0 0.0
    %3219 = vmatpush1.msra.mxu0 0.0
    %3220 = vmatprep.subr.mxu0 0.0
    %3221 = vmatpush1.msra.mxu0 0.0
    %3222 = vmatprep.subr.mxu0 0.0
    %3223 = vmatpush1.msra.mxu0 0.0
    %3224 = vmatprep.subr.mxu0 0.0
    %3225 = vmatpush1.msra.mxu0 0.0
    %3226 = vmatprep.subr.mxu0 0.0
    %3227 = vmatpush1.msra.mxu0 0.0
    %3228 = vmatprep.subr.mxu0 0.0
    %3229 = vmatpush1.msra.mxu0 0.0
    %3230 = vmatprep.subr.mxu0 0.0
    %3231 = vmatpush1.msra.mxu0 0.0
    %3232 = vmatprep.subr.mxu0 0.0
    %3233 = vmatpush1.msra.mxu0 0.0
    %3234 = vmatprep.subr.mxu0 0.0
    %3235 = vmatpush1.msra.mxu0 0.0
    %3236 = vmatprep.subr.mxu0 0.0
    %3237 = vmatpush1.msra.mxu0 0.0
    %3238 = vmatprep.subr.mxu0 0.0
    %3239 = vmatpush1.msra.mxu0 0.0
    %3240 = vmatprep.subr.mxu0 0.0
    %3241 = vmatpush1.msra.mxu0 0.0
    %3242 = vmatprep.subr.mxu0 0.0
    %3243 = vmatpush1.msra.mxu0 0.0
    %3244 = vmatprep.subr.mxu0 0.0
    %3245 = vmatpush1.msra.mxu0 0.0
    %3246 = vmatprep.subr.mxu0 0.0
    %3247 = vmatpush1.msra.mxu0 0.0
    %3248 = vmatprep.subr.mxu0 0.0
    %3249 = vmatpush1.msra.mxu0 0.0
    %3250 = vmatprep.subr.mxu0 0.0
    %3251 = vmatpush1.msra.mxu0 0.0
    %3252 = vmatprep.subr.mxu0 0.0
    %3253 = vmatpush1.msra.mxu0 0.0
    %3254 = vmatprep.subr.mxu0 0.0
    %3255 = vmatpush1.msra.mxu0 0.0
    %3256 = vmatprep.subr.mxu0 0.0
    %3257 = vmatpush1.msra.mxu0 0.0
    %3258 = vmatprep.subr.mxu0 0.0
    %3259 = vmatpush1.msra.mxu0 0.0
    %3260 = vmatprep.subr.mxu0 0.0
    %3261 = vmatpush1.msra.mxu0 0.0
    %3262 = vmatprep.subr.mxu0 0.0
    %3263 = vmatpush1.msra.mxu0 0.0
    %3264 = vmatprep.subr.mxu0 0.0
    %3265 = vmatpush1.msra.mxu0 0.0
    %3266 = vmatprep.mubr.f32.mxu0 0.0
    %3267 = vmatmul.mubr.f32.gmra.mrb[0].mxu0 %v3197
    %v3268 = vpop.f32.mrb[0].mxu0
    %v3269 = vadd.f32 0.0, %v3268
    %v3270 = vpop.f32.mrb[0].mxu0
    %3271 = vmatprep.mubr.f32.mxu0 0.0
    %3272 = vmatmul.mubr.f32.gmra.mrb[0].mxu0 %v3200
    %v3273 = vpop.f32.mrb[0].mxu0
    %v3274 = vadd.f32 0.0, %v3273
    %v3275 = vpop.f32.mrb[0].mxu0
    %3276 = vdwg.mxu0
    %v3278 = vsel %vm2686, %v3111, 0
    %v3281 = vsel %vm2686, %v3112, 0
    %3283 = vmatprep.subr.mxu0 0.0
    %3284 = vmatpush1.msra.mxu0 %v3103
    %3285 = vmatprep.subr.mxu0 0.0
    %3286 = vmatpush1.msra.mxu0 %v3108
    %3287 = vmatprep.subr.mxu0 0.0
    %3288 = vmatpush1.msra.mxu0 0.0
    %3289 = vmatprep.subr.mxu0 0.0
    %3290 = vmatpush1.msra.mxu0 0.0
    %3291 = vmatprep.subr.mxu0 0.0
    %3292 = vmatpush1.msra.mxu0 0.0
    %3293 = vmatprep.subr.mxu0 0.0
    %3294 = vmatpush1.msra.mxu0 0.0
    %3295 = vmatprep.subr.mxu0 0.0
    %3296 = vmatpush1.msra.mxu0 0.0
    %3297 = vmatprep.subr.mxu0 0.0
    %3298 = vmatpush1.msra.mxu0 0.0
    %3299 = vmatprep.subr.mxu0 0.0
    %3300 = vmatpush1.msra.mxu0 0.0
    %3301 = vmatprep.subr.mxu0 0.0
    %3302 = vmatpush1.msra.mxu0 0.0
    %3303 = vmatprep.subr.mxu0 0.0
    %3304 = vmatpush1.msra.mxu0 0.0
    %3305 = vmatprep.subr.mxu0 0.0
    %3306 = vmatpush1.msra.mxu0 0.0
    %3307 = vmatprep.subr.mxu0 0.0
    %3308 = vmatpush1.msra.mxu0 0.0
    %3309 = vmatprep.subr.mxu0 0.0
    %3310 = vmatpush1.msra.mxu0 0.0
    %3311 = vmatprep.subr.mxu0 0.0
    %3312 = vmatpush1.msra.mxu0 0.0
    %3313 = vmatprep.subr.mxu0 0.0
    %3314 = vmatpush1.msra.mxu0 0.0
    %3315 = vmatprep.subr.mxu0 0.0
    %3316 = vmatpush1.msra.mxu0 0.0
    %3317 = vmatprep.subr.mxu0 0.0
    %3318 = vmatpush1.msra.mxu0 0.0
    %3319 = vmatprep.subr.mxu0 0.0
    %3320 = vmatpush1.msra.mxu0 0.0
    %3321 = vmatprep.subr.mxu0 0.0
    %3322 = vmatpush1.msra.mxu0 0.0
    %3323 = vmatprep.subr.mxu0 0.0
    %3324 = vmatpush1.msra.mxu0 0.0
    %3325 = vmatprep.subr.mxu0 0.0
    %3326 = vmatpush1.msra.mxu0 0.0
    %3327 = vmatprep.subr.mxu0 0.0
    %3328 = vmatpush1.msra.mxu0 0.0
    %3329 = vmatprep.subr.mxu0 0.0
    %3330 = vmatpush1.msra.mxu0 0.0
    %3331 = vmatprep.subr.mxu0 0.0
    %3332 = vmatpush1.msra.mxu0 0.0
    %3333 = vmatprep.subr.mxu0 0.0
    %3334 = vmatpush1.msra.mxu0 0.0
    %3335 = vmatprep.subr.mxu0 0.0
    %3336 = vmatpush1.msra.mxu0 0.0
    %3337 = vmatprep.subr.mxu0 0.0
    %3338 = vmatpush1.msra.mxu0 0.0
    %3339 = vmatprep.subr.mxu0 0.0
    %3340 = vmatpush1.msra.mxu0 0.0
    %3341 = vmatprep.subr.mxu0 0.0
    %3342 = vmatpush1.msra.mxu0 0.0
    %3343 = vmatprep.subr.mxu0 0.0
    %3344 = vmatpush1.msra.mxu0 0.0
    %3345 = vmatprep.subr.mxu0 0.0
    %3346 = vmatpush1.msra.mxu0 0.0
    %3347 = vmatprep.mubr.f32.mxu0 0.0
    %3348 = vmatmul.mubr.f32.gmra.mrb[0].mxu0 %v3278
    %v3349 = vpop.f32.mrb[0].mxu0
    %v3350 = vadd.f32 %v3269, %v3349
    %v3351 = vpop.f32.mrb[0].mxu0
    %3352 = vmatprep.mubr.f32.mxu0 0.0
    %3353 = vmatmul.mubr.f32.gmra.mrb[0].mxu0 %v3281
    %v3354 = vpop.f32.mrb[0].mxu0
    %v3355 = vadd.f32 %v3274, %v3354
    %v3356 = vpop.f32.mrb[0].mxu0
    %3357 = vdwg.mxu0
    %s3358 = scalar_lea.vmem %s33, 64
    %v3359 = vld [vmem:[%s3358] sm:$0xff]
    %v3360 = vld [vmem:[%s3358 + $0x8] sm:$0xff]
    %v3361 = vld [vmem:[%s3358 + $0x10] sm:$0xff]
    %v3362 = vld [vmem:[%s3358 + $0x18] sm:$0xff]
    %3363 = vmatprep.subr.mxu0 0.0
    %3364 = vmatpush1.msra.mxu0 %v3359
    %3365 = vmatprep.subr.mxu0 0.0
    %3366 = vmatpush1.msra.mxu0 %v3360
    %3367 = vmatprep.subr.mxu0 0.0
    %3368 = vmatpush1.msra.mxu0 %v3361
    %3369 = vmatprep.subr.mxu0 0.0
    %3370 = vmatpush1.msra.mxu0 %v3362
    %3371 = vmatprep.subr.mxu0 0.0
    %3372 = vmatpush1.msra.mxu0 0.0
    %3373 = vmatprep.subr.mxu0 0.0
    %3374 = vmatpush1.msra.mxu0 0.0
    %3375 = vmatprep.subr.mxu0 0.0
    %3376 = vmatpush1.msra.mxu0 0.0
    %3377 = vmatprep.subr.mxu0 0.0
    %3378 = vmatpush1.msra.mxu0 0.0
    %3379 = vmatprep.subr.mxu0 0.0
    %3380 = vmatpush1.msra.mxu0 0.0
    %3381 = vmatprep.subr.mxu0 0.0
    %3382 = vmatpush1.msra.mxu0 0.0
    %3383 = vmatprep.subr.mxu0 0.0
    %3384 = vmatpush1.msra.mxu0 0.0
    %3385 = vmatprep.subr.mxu0 0.0
    %3386 = vmatpush1.msra.mxu0 0.0
    %3387 = vmatprep.subr.mxu0 0.0
    %3388 = vmatpush1.msra.mxu0 0.0
    %3389 = vmatprep.subr.mxu0 0.0
    %3390 = vmatpush1.msra.mxu0 0.0
    %3391 = vmatprep.subr.mxu0 0.0
    %3392 = vmatpush1.msra.mxu0 0.0
    %3393 = vmatprep.subr.mxu0 0.0
    %3394 = vmatpush1.msra.mxu0 0.0
    %3395 = vmatprep.subr.mxu0 0.0
    %3396 = vmatpush1.msra.mxu0 0.0
    %3397 = vmatprep.subr.mxu0 0.0
    %3398 = vmatpush1.msra.mxu0 0.0
    %3399 = vmatprep.subr.mxu0 0.0
    %3400 = vmatpush1.msra.mxu0 0.0
    %3401 = vmatprep.subr.mxu0 0.0
    %3402 = vmatpush1.msra.mxu0 0.0
    %3403 = vmatprep.subr.mxu0 0.0
    %3404 = vmatpush1.msra.mxu0 0.0
    %3405 = vmatprep.subr.mxu0 0.0
    %3406 = vmatpush1.msra.mxu0 0.0
    %3407 = vmatprep.subr.mxu0 0.0
    %3408 = vmatpush1.msra.mxu0 0.0
    %3409 = vmatprep.subr.mxu0 0.0
    %3410 = vmatpush1.msra.mxu0 0.0
    %3411 = vmatprep.subr.mxu0 0.0
    %3412 = vmatpush1.msra.mxu0 0.0
    %3413 = vmatprep.subr.mxu0 0.0
    %3414 = vmatpush1.msra.mxu0 0.0
    %3415 = vmatprep.subr.mxu0 0.0
    %3416 = vmatpush1.msra.mxu0 0.0
    %3417 = vmatprep.subr.mxu0 0.0
    %3418 = vmatpush1.msra.mxu0 0.0
    %3419 = vmatprep.subr.mxu0 0.0
    %3420 = vmatpush1.msra.mxu0 0.0
    %3421 = vmatprep.subr.mxu0 0.0
    %3422 = vmatpush1.msra.mxu0 0.0
    %3423 = vmatprep.subr.mxu0 0.0
    %3424 = vmatpush1.msra.mxu0 0.0
    %3425 = vmatprep.subr.mxu0 0.0
    %3426 = vmatpush1.msra.mxu0 0.0
    %3427 = vmatprep.mubr.f32.mxu0 0.0
    %3428 = vmatmul.mubr.f32.gmra.mrb[0].mxu0 %v3031
    %v3429 = vpop.f32.mrb[0].mxu0
    %v3430 = vadd.f32 0.0, %v3429
    %v3431 = vpop.f32.mrb[0].mxu0
    %3432 = vmatprep.mubr.f32.mxu0 0.0
    %3433 = vmatmul.mubr.f32.gmra.mrb[0].mxu0 %v3034
    %v3434 = vpop.f32.mrb[0].mxu0
    %v3435 = vadd.f32 0.0, %v3434
    %v3436 = vpop.f32.mrb[0].mxu0
    %3437 = vdwg.mxu0
    %s3438 = scalar_lea.vmem %s31, 32
    %v3439 = vld [vmem:[%s3438] sm:$0xff]
    %v3440 = vld [vmem:[%s3438 + $0x8] sm:$0xff]
    %v3442 = vsel %vm2686, %v3439, 0
    %v3445 = vsel %vm2686, %v3440, 0
    %3447 = vmatprep.subr.mxu0 0.0
    %3448 = vmatpush1.msra.mxu0 %v3430
    %3449 = vmatprep.subr.mxu0 0.0
    %3450 = vmatpush1.msra.mxu0 %v3435
    %3451 = vmatprep.subr.mxu0 0.0
    %3452 = vmatpush1.msra.mxu0 0.0
    %3453 = vmatprep.subr.mxu0 0.0
    %3454 = vmatpush1.msra.mxu0 0.0
    %3455 = vmatprep.subr.mxu0 0.0
    %3456 = vmatpush1.msra.mxu0 0.0
    %3457 = vmatprep.subr.mxu0 0.0
    %3458 = vmatpush1.msra.mxu0 0.0
    %3459 = vmatprep.subr.mxu0 0.0
    %3460 = vmatpush1.msra.mxu0 0.0
    %3461 = vmatprep.subr.mxu0 0.0
    %3462 = vmatpush1.msra.mxu0 0.0
    %3463 = vmatprep.subr.mxu0 0.0
    %3464 = vmatpush1.msra.mxu0 0.0
    %3465 = vmatprep.subr.mxu0 0.0
    %3466 = vmatpush1.msra.mxu0 0.0
    %3467 = vmatprep.subr.mxu0 0.0
    %3468 = vmatpush1.msra.mxu0 0.0
    %3469 = vmatprep.subr.mxu0 0.0
    %3470 = vmatpush1.msra.mxu0 0.0
    %3471 = vmatprep.subr.mxu0 0.0
    %3472 = vmatpush1.msra.mxu0 0.0
    %3473 = vmatprep.subr.mxu0 0.0
    %3474 = vmatpush1.msra.mxu0 0.0
    %3475 = vmatprep.subr.mxu0 0.0
    %3476 = vmatpush1.msra.mxu0 0.0
    %3477 = vmatprep.subr.mxu0 0.0
    %3478 = vmatpush1.msra.mxu0 0.0
    %3479 = vmatprep.subr.mxu0 0.0
    %3480 = vmatpush1.msra.mxu0 0.0
    %3481 = vmatprep.subr.mxu0 0.0
    %3482 = vmatpush1.msra.mxu0 0.0
    %3483 = vmatprep.subr.mxu0 0.0
    %3484 = vmatpush1.msra.mxu0 0.0
    %3485 = vmatprep.subr.mxu0 0.0
    %3486 = vmatpush1.msra.mxu0 0.0
    %3487 = vmatprep.subr.mxu0 0.0
    %3488 = vmatpush1.msra.mxu0 0.0
    %3489 = vmatprep.subr.mxu0 0.0
    %3490 = vmatpush1.msra.mxu0 0.0
    %3491 = vmatprep.subr.mxu0 0.0
    %3492 = vmatpush1.msra.mxu0 0.0
    %3493 = vmatprep.subr.mxu0 0.0
    %3494 = vmatpush1.msra.mxu0 0.0
    %3495 = vmatprep.subr.mxu0 0.0
    %3496 = vmatpush1.msra.mxu0 0.0
    %3497 = vmatprep.subr.mxu0 0.0
    %3498 = vmatpush1.msra.mxu0 0.0
    %3499 = vmatprep.subr.mxu0 0.0
    %3500 = vmatpush1.msra.mxu0 0.0
    %3501 = vmatprep.subr.mxu0 0.0
    %3502 = vmatpush1.msra.mxu0 0.0
    %3503 = vmatprep.subr.mxu0 0.0
    %3504 = vmatpush1.msra.mxu0 0.0
    %3505 = vmatprep.subr.mxu0 0.0
    %3506 = vmatpush1.msra.mxu0 0.0
    %3507 = vmatprep.subr.mxu0 0.0
    %3508 = vmatpush1.msra.mxu0 0.0
    %3509 = vmatprep.subr.mxu0 0.0
    %3510 = vmatpush1.msra.mxu0 0.0
    %3511 = vmatprep.mubr.f32.mxu0 0.0
    %3512 = vmatmul.mubr.f32.gmra.mrb[0].mxu0 %v3442
    %v3513 = vpop.f32.mrb[0].mxu0
    %v3514 = vadd.f32 0.0, %v3513
    %v3515 = vpop.f32.mrb[0].mxu0
    %3516 = vmatprep.mubr.f32.mxu0 0.0
    %3517 = vmatmul.mubr.f32.gmra.mrb[0].mxu0 %v3445
    %v3518 = vpop.f32.mrb[0].mxu0
    %v3519 = vadd.f32 0.0, %v3518
    %v3520 = vpop.f32.mrb[0].mxu0
    %3521 = vdwg.mxu0
    %v3522 = vadd.f32 %v3350, %v3514
    %v3523 = vadd.f32 %v3355, %v3519
    %v3524 = vld [vmem:[%s35] sm:$0x1]
    %v3526 = vlaneseq
    %v3527 = vshrl.u32 %v3526, 7
    %v3528 = vsub.s32 0, %v3527
    %v3529 = vrot.slane %v3524, %v3528
    %v3531 = vadd.f32 %v3522, %v3529
    %v3532 = vadd.f32 %v3523, %v3529
    %v3533 = vmax.f32 %v3531, 0.0
    %v3534 = vmax.f32 %v3532, 0.0
    %v3535 = vadd.f32 %v3533, %v1963
    %v3536 = vadd.f32 %v3534, %v1968
    %v3537 = vld [vmem:[%s39] sm:$0xff]
    %v3538 = vld [vmem:[%s39 + $0x8] sm:$0xff]
    %v3539 = vld [vmem:[%s39 + $0x10] sm:$0xff]
    %v3540 = vld [vmem:[%s39 + $0x18] sm:$0xff]
    %v3542 = vsel %vm1889, %v3535, 0
    %v3545 = vsel %vm1889, %v3536, 0
    %3547 = vmatprep.subr.mxu0 0.0
    %3548 = vmatpush1.msra.mxu0 %v3537
    %3549 = vmatprep.subr.mxu0 0.0
    %3550 = vmatpush1.msra.mxu0 %v3538
    %3551 = vmatprep.subr.mxu0 0.0
    %3552 = vmatpush1.msra.mxu0 %v3539
    %3553 = vmatprep.subr.mxu0 0.0
    %3554 = vmatpush1.msra.mxu0 %v3540
    %3555 = vmatprep.subr.mxu0 0.0
    %3556 = vmatpush1.msra.mxu0 0.0
    %3557 = vmatprep.subr.mxu0 0.0
    %3558 = vmatpush1.msra.mxu0 0.0
    %3559 = vmatprep.subr.mxu0 0.0
    %3560 = vmatpush1.msra.mxu0 0.0
    %3561 = vmatprep.subr.mxu0 0.0
    %3562 = vmatpush1.msra.mxu0 0.0
    %3563 = vmatprep.subr.mxu0 0.0
    %3564 = vmatpush1.msra.mxu0 0.0
    %3565 = vmatprep.subr.mxu0 0.0
    %3566 = vmatpush1.msra.mxu0 0.0
    %3567 = vmatprep.subr.mxu0 0.0
    %3568 = vmatpush1.msra.mxu0 0.0
    %3569 = vmatprep.subr.mxu0 0.0
    %3570 = vmatpush1.msra.mxu0 0.0
    %3571 = vmatprep.subr.mxu0 0.0
    %3572 = vmatpush1.msra.mxu0 0.0
    %3573 = vmatprep.subr.mxu0 0.0
    %3574 = vmatpush1.msra.mxu0 0.0
    %3575 = vmatprep.subr.mxu0 0.0
    %3576 = vmatpush1.msra.mxu0 0.0
    %3577 = vmatprep.subr.mxu0 0.0
    %3578 = vmatpush1.msra.mxu0 0.0
    %3579 = vmatprep.subr.mxu0 0.0
    %3580 = vmatpush1.msra.mxu0 0.0
    %3581 = vmatprep.subr.mxu0 0.0
    %3582 = vmatpush1.msra.mxu0 0.0
    %3583 = vmatprep.subr.mxu0 0.0
    %3584 = vmatpush1.msra.mxu0 0.0
    %3585 = vmatprep.subr.mxu0 0.0
    %3586 = vmatpush1.msra.mxu0 0.0
    %3587 = vmatprep.subr.mxu0 0.0
    %3588 = vmatpush1.msra.mxu0 0.0
    %3589 = vmatprep.subr.mxu0 0.0
    %3590 = vmatpush1.msra.mxu0 0.0
    %3591 = vmatprep.subr.mxu0 0.0
    %3592 = vmatpush1.msra.mxu0 0.0
    %3593 = vmatprep.subr.mxu0 0.0
    %3594 = vmatpush1.msra.mxu0 0.0
    %3595 = vmatprep.subr.mxu0 0.0
    %3596 = vmatpush1.msra.mxu0 0.0
    %3597 = vmatprep.subr.mxu0 0.0
    %3598 = vmatpush1.msra.mxu0 0.0
    %3599 = vmatprep.subr.mxu0 0.0
    %3600 = vmatpush1.msra.mxu0 0.0
    %3601 = vmatprep.subr.mxu0 0.0
    %3602 = vmatpush1.msra.mxu0 0.0
    %3603 = vmatprep.subr.mxu0 0.0
    %3604 = vmatpush1.msra.mxu0 0.0
    %3605 = vmatprep.subr.mxu0 0.0
    %3606 = vmatpush1.msra.mxu0 0.0
    %3607 = vmatprep.subr.mxu0 0.0
    %3608 = vmatpush1.msra.mxu0 0.0
    %3609 = vmatprep.subr.mxu0 0.0
    %3610 = vmatpush1.msra.mxu0 0.0
    %3611 = vmatprep.mubr.f32.mxu0 0.0
    %3612 = vmatmul.mubr.f32.gmra.mrb[0].mxu0 %v3542
    %v3613 = vpop.f32.mrb[0].mxu0
    %v3614 = vadd.f32 0.0, %v3613
    %v3615 = vpop.f32.mrb[0].mxu0
    %3616 = vmatprep.mubr.f32.mxu0 0.0
    %3617 = vmatmul.mubr.f32.gmra.mrb[0].mxu0 %v3545
    %v3618 = vpop.f32.mrb[0].mxu0
    %v3619 = vadd.f32 0.0, %v3618
    %v3620 = vpop.f32.mrb[0].mxu0
    %3621 = vdwg.mxu0
    %v3622 = vld [vmem:[%s37] sm:$0xff]
    %v3623 = vld [vmem:[%s41] sm:$0x1]
    %v3625 = vlaneseq
    %v3626 = vshrl.u32 %v3625, 7
    %v3627 = vsub.s32 0, %v3626
    %v3628 = vrot.slane %v3623, %v3627
    %v3631 = vsel %vm2686, %v3622, 0
    %3633 = vmatprep.subr.mxu0 0.0
    %3634 = vmatpush1.msra.mxu0 %v3614
    %3635 = vmatprep.subr.mxu0 0.0
    %3636 = vmatpush1.msra.mxu0 %v3619
    %3637 = vmatprep.subr.mxu0 0.0
    %3638 = vmatpush1.msra.mxu0 0.0
    %3639 = vmatprep.subr.mxu0 0.0
    %3640 = vmatpush1.msra.mxu0 0.0
    %3641 = vmatprep.subr.mxu0 0.0
    %3642 = vmatpush1.msra.mxu0 0.0
    %3643 = vmatprep.subr.mxu0 0.0
    %3644 = vmatpush1.msra.mxu0 0.0
    %3645 = vmatprep.subr.mxu0 0.0
    %3646 = vmatpush1.msra.mxu0 0.0
    %3647 = vmatprep.subr.mxu0 0.0
    %3648 = vmatpush1.msra.mxu0 0.0
    %3649 = vmatprep.subr.mxu0 0.0
    %3650 = vmatpush1.msra.mxu0 0.0
    %3651 = vmatprep.subr.mxu0 0.0
    %3652 = vmatpush1.msra.mxu0 0.0
    %3653 = vmatprep.subr.mxu0 0.0
    %3654 = vmatpush1.msra.mxu0 0.0
    %3655 = vmatprep.subr.mxu0 0.0
    %3656 = vmatpush1.msra.mxu0 0.0
    %3657 = vmatprep.subr.mxu0 0.0
    %3658 = vmatpush1.msra.mxu0 0.0
    %3659 = vmatprep.subr.mxu0 0.0
    %3660 = vmatpush1.msra.mxu0 0.0
    %3661 = vmatprep.subr.mxu0 0.0
    %3662 = vmatpush1.msra.mxu0 0.0
    %3663 = vmatprep.subr.mxu0 0.0
    %3664 = vmatpush1.msra.mxu0 0.0
    %3665 = vmatprep.subr.mxu0 0.0
    %3666 = vmatpush1.msra.mxu0 0.0
    %3667 = vmatprep.subr.mxu0 0.0
    %3668 = vmatpush1.msra.mxu0 0.0
    %3669 = vmatprep.subr.mxu0 0.0
    %3670 = vmatpush1.msra.mxu0 0.0
    %3671 = vmatprep.subr.mxu0 0.0
    %3672 = vmatpush1.msra.mxu0 0.0
    %3673 = vmatprep.subr.mxu0 0.0
    %3674 = vmatpush1.msra.mxu0 0.0
    %3675 = vmatprep.subr.mxu0 0.0
    %3676 = vmatpush1.msra.mxu0 0.0
    %3677 = vmatprep.subr.mxu0 0.0
    %3678 = vmatpush1.msra.mxu0 0.0
    %3679 = vmatprep.subr.mxu0 0.0
    %3680 = vmatpush1.msra.mxu0 0.0
    %3681 = vmatprep.subr.mxu0 0.0
    %3682 = vmatpush1.msra.mxu0 0.0
    %3683 = vmatprep.subr.mxu0 0.0
    %3684 = vmatpush1.msra.mxu0 0.0
    %3685 = vmatprep.subr.mxu0 0.0
    %3686 = vmatpush1.msra.mxu0 0.0
    %3687 = vmatprep.subr.mxu0 0.0
    %3688 = vmatpush1.msra.mxu0 0.0
    %3689 = vmatprep.subr.mxu0 0.0
    %3690 = vmatpush1.msra.mxu0 0.0
    %3691 = vmatprep.subr.mxu0 0.0
    %3692 = vmatpush1.msra.mxu0 0.0
    %3693 = vmatprep.subr.mxu0 0.0
    %3694 = vmatpush1.msra.mxu0 0.0
    %3695 = vmatprep.subr.mxu0 0.0
    %3696 = vmatpush1.msra.mxu0 0.0
    %3697 = vmatprep.mubr.f32.mxu0 0.0
    %3698 = vmatmul.mubr.f32.gmra.mrb[0].mxu0 %v3631
    %v3699 = vpop.f32.mrb[0].mxu0
    %v3700 = vadd.f32 %v3628, %v3699
    %v3701 = vpop.f32.mrb[0].mxu0
    %3702 = vdwg.mxu0
    %v3703 = vld [vmem:[%s45] sm:$0xff]
    %v3704 = vld [vmem:[%s45 + $0x8] sm:$0xff]
    %v3705 = vld [vmem:[%s45 + $0x10] sm:$0xff]
    %v3706 = vld [vmem:[%s45 + $0x18] sm:$0xff]
    %3707 = vmatprep.subr.mxu0 0.0
    %3708 = vmatpush1.msra.mxu0 %v3703
    %3709 = vmatprep.subr.mxu0 0.0
    %3710 = vmatpush1.msra.mxu0 %v3704
    %3711 = vmatprep.subr.mxu0 0.0
    %3712 = vmatpush1.msra.mxu0 %v3705
    %3713 = vmatprep.subr.mxu0 0.0
    %3714 = vmatpush1.msra.mxu0 %v3706
    %3715 = vmatprep.subr.mxu0 0.0
    %3716 = vmatpush1.msra.mxu0 0.0
    %3717 = vmatprep.subr.mxu0 0.0
    %3718 = vmatpush1.msra.mxu0 0.0
    %3719 = vmatprep.subr.mxu0 0.0
    %3720 = vmatpush1.msra.mxu0 0.0
    %3721 = vmatprep.subr.mxu0 0.0
    %3722 = vmatpush1.msra.mxu0 0.0
    %3723 = vmatprep.subr.mxu0 0.0
    %3724 = vmatpush1.msra.mxu0 0.0
    %3725 = vmatprep.subr.mxu0 0.0
    %3726 = vmatpush1.msra.mxu0 0.0
    %3727 = vmatprep.subr.mxu0 0.0
    %3728 = vmatpush1.msra.mxu0 0.0
    %3729 = vmatprep.subr.mxu0 0.0
    %3730 = vmatpush1.msra.mxu0 0.0
    %3731 = vmatprep.subr.mxu0 0.0
    %3732 = vmatpush1.msra.mxu0 0.0
    %3733 = vmatprep.subr.mxu0 0.0
    %3734 = vmatpush1.msra.mxu0 0.0
    %3735 = vmatprep.subr.mxu0 0.0
    %3736 = vmatpush1.msra.mxu0 0.0
    %3737 = vmatprep.subr.mxu0 0.0
    %3738 = vmatpush1.msra.mxu0 0.0
    %3739 = vmatprep.subr.mxu0 0.0
    %3740 = vmatpush1.msra.mxu0 0.0
    %3741 = vmatprep.subr.mxu0 0.0
    %3742 = vmatpush1.msra.mxu0 0.0
    %3743 = vmatprep.subr.mxu0 0.0
    %3744 = vmatpush1.msra.mxu0 0.0
    %3745 = vmatprep.subr.mxu0 0.0
    %3746 = vmatpush1.msra.mxu0 0.0
    %3747 = vmatprep.subr.mxu0 0.0
    %3748 = vmatpush1.msra.mxu0 0.0
    %3749 = vmatprep.subr.mxu0 0.0
    %3750 = vmatpush1.msra.mxu0 0.0
    %3751 = vmatprep.subr.mxu0 0.0
    %3752 = vmatpush1.msra.mxu0 0.0
    %3753 = vmatprep.subr.mxu0 0.0
    %3754 = vmatpush1.msra.mxu0 0.0
    %3755 = vmatprep.subr.mxu0 0.0
    %3756 = vmatpush1.msra.mxu0 0.0
    %3757 = vmatprep.subr.mxu0 0.0
    %3758 = vmatpush1.msra.mxu0 0.0
    %3759 = vmatprep.subr.mxu0 0.0
    %3760 = vmatpush1.msra.mxu0 0.0
    %3761 = vmatprep.subr.mxu0 0.0
    %3762 = vmatpush1.msra.mxu0 0.0
    %3763 = vmatprep.subr.mxu0 0.0
    %3764 = vmatpush1.msra.mxu0 0.0
    %3765 = vmatprep.subr.mxu0 0.0
    %3766 = vmatpush1.msra.mxu0 0.0
    %3767 = vmatprep.subr.mxu0 0.0
    %3768 = vmatpush1.msra.mxu0 0.0
    %3769 = vmatprep.subr.mxu0 0.0
    %3770 = vmatpush1.msra.mxu0 0.0
    %3771 = vmatprep.mubr.f32.mxu0 0.0
    %3772 = vmatmul.mubr.f32.gmra.mrb[0].mxu0 %v3542
    %v3773 = vpop.f32.mrb[0].mxu0
    %v3774 = vadd.f32 0.0, %v3773
    %v3775 = vpop.f32.mrb[0].mxu0
    %3776 = vmatprep.mubr.f32.mxu0 0.0
    %3777 = vmatmul.mubr.f32.gmra.mrb[0].mxu0 %v3545
    %v3778 = vpop.f32.mrb[0].mxu0
    %v3779 = vadd.f32 0.0, %v3778
    %v3780 = vpop.f32.mrb[0].mxu0
    %3781 = vdwg.mxu0
    %v3782 = vld [vmem:[%s43] sm:$0xff]
    %s3783 = scalar_lea.vmem %s45, 32
    %v3784 = vld [vmem:[%s3783] sm:$0xff]
    %v3785 = vld [vmem:[%s3783 + $0x8] sm:$0xff]
    %v3786 = vld [vmem:[%s3783 + $0x10] sm:$0xff]
    %v3787 = vld [vmem:[%s3783 + $0x18] sm:$0xff]
    %3788 = vmatprep.subr.mxu0 0.0
    %3789 = vmatpush1.msra.mxu0 %v3784
    %3790 = vmatprep.subr.mxu0 0.0
    %3791 = vmatpush1.msra.mxu0 %v3785
    %3792 = vmatprep.subr.mxu0 0.0
    %3793 = vmatpush1.msra.mxu0 %v3786
    %3794 = vmatprep.subr.mxu0 0.0
    %3795 = vmatpush1.msra.mxu0 %v3787
    %3796 = vmatprep.subr.mxu0 0.0
    %3797 = vmatpush1.msra.mxu0 0.0
    %3798 = vmatprep.subr.mxu0 0.0
    %3799 = vmatpush1.msra.mxu0 0.0
    %3800 = vmatprep.subr.mxu0 0.0
    %3801 = vmatpush1.msra.mxu0 0.0
    %3802 = vmatprep.subr.mxu0 0.0
    %3803 = vmatpush1.msra.mxu0 0.0
    %3804 = vmatprep.subr.mxu0 0.0
    %3805 = vmatpush1.msra.mxu0 0.0
    %3806 = vmatprep.subr.mxu0 0.0
    %3807 = vmatpush1.msra.mxu0 0.0
    %3808 = vmatprep.subr.mxu0 0.0
    %3809 = vmatpush1.msra.mxu0 0.0
    %3810 = vmatprep.subr.mxu0 0.0
    %3811 = vmatpush1.msra.mxu0 0.0
    %3812 = vmatprep.subr.mxu0 0.0
    %3813 = vmatpush1.msra.mxu0 0.0
    %3814 = vmatprep.subr.mxu0 0.0
    %3815 = vmatpush1.msra.mxu0 0.0
    %3816 = vmatprep.subr.mxu0 0.0
    %3817 = vmatpush1.msra.mxu0 0.0
    %3818 = vmatprep.subr.mxu0 0.0
    %3819 = vmatpush1.msra.mxu0 0.0
    %3820 = vmatprep.subr.mxu0 0.0
    %3821 = vmatpush1.msra.mxu0 0.0
    %3822 = vmatprep.subr.mxu0 0.0
    %3823 = vmatpush1.msra.mxu0 0.0
    %3824 = vmatprep.subr.mxu0 0.0
    %3825 = vmatpush1.msra.mxu0 0.0
    %3826 = vmatprep.subr.mxu0 0.0
    %3827 = vmatpush1.msra.mxu0 0.0
    %3828 = vmatprep.subr.mxu0 0.0
    %3829 = vmatpush1.msra.mxu0 0.0
    %3830 = vmatprep.subr.mxu0 0.0
    %3831 = vmatpush1.msra.mxu0 0.0
    %3832 = vmatprep.subr.mxu0 0.0
    %3833 = vmatpush1.msra.mxu0 0.0
    %3834 = vmatprep.subr.mxu0 0.0
    %3835 = vmatpush1.msra.mxu0 0.0
    %3836 = vmatprep.subr.mxu0 0.0
    %3837 = vmatpush1.msra.mxu0 0.0
    %3838 = vmatprep.subr.mxu0 0.0
    %3839 = vmatpush1.msra.mxu0 0.0
    %3840 = vmatprep.subr.mxu0 0.0
    %3841 = vmatpush1.msra.mxu0 0.0
    %3842 = vmatprep.subr.mxu0 0.0
    %3843 = vmatpush1.msra.mxu0 0.0
    %3844 = vmatprep.subr.mxu0 0.0
    %3845 = vmatpush1.msra.mxu0 0.0
    %3846 = vmatprep.subr.mxu0 0.0
    %3847 = vmatpush1.msra.mxu0 0.0
    %3848 = vmatprep.subr.mxu0 0.0
    %3849 = vmatpush1.msra.mxu0 0.0
    %3850 = vmatprep.subr.mxu0 0.0
    %3851 = vmatpush1.msra.mxu0 0.0
    %3852 = vmatprep.mubr.f32.mxu0 0.0
    %3853 = vmatmul.mubr.f32.gmra.mrb[0].mxu0 %v3542
    %v3854 = vpop.f32.mrb[0].mxu0
    %v3855 = vadd.f32 0.0, %v3854
    %v3856 = vpop.f32.mrb[0].mxu0
    %3857 = vmatprep.mubr.f32.mxu0 0.0
    %3858 = vmatmul.mubr.f32.gmra.mrb[0].mxu0 %v3545
    %v3859 = vpop.f32.mrb[0].mxu0
    %v3860 = vadd.f32 0.0, %v3859
    %v3861 = vpop.f32.mrb[0].mxu0
    %3862 = vdwg.mxu0
    %s3863 = scalar_lea.vmem %s43, 8
    %v3864 = vld [vmem:[%s3863] sm:$0xff]
    %v3866 = vsel %vm2686, %v3864, 0
    %3868 = vmatprep.subr.mxu0 0.0
    %3869 = vmatpush1.msra.mxu0 %v3855
    %3870 = vmatprep.subr.mxu0 0.0
    %3871 = vmatpush1.msra.mxu0 %v3860
    %3872 = vmatprep.subr.mxu0 0.0
    %3873 = vmatpush1.msra.mxu0 0.0
    %3874 = vmatprep.subr.mxu0 0.0
    %3875 = vmatpush1.msra.mxu0 0.0
    %3876 = vmatprep.subr.mxu0 0.0
    %3877 = vmatpush1.msra.mxu0 0.0
    %3878 = vmatprep.subr.mxu0 0.0
    %3879 = vmatpush1.msra.mxu0 0.0
    %3880 = vmatprep.subr.mxu0 0.0
    %3881 = vmatpush1.msra.mxu0 0.0
    %3882 = vmatprep.subr.mxu0 0.0
    %3883 = vmatpush1.msra.mxu0 0.0
    %3884 = vmatprep.subr.mxu0 0.0
    %3885 = vmatpush1.msra.mxu0 0.0
    %3886 = vmatprep.subr.mxu0 0.0
    %3887 = vmatpush1.msra.mxu0 0.0
    %3888 = vmatprep.subr.mxu0 0.0
    %3889 = vmatpush1.msra.mxu0 0.0
    %3890 = vmatprep.subr.mxu0 0.0
    %3891 = vmatpush1.msra.mxu0 0.0
    %3892 = vmatprep.subr.mxu0 0.0
    %3893 = vmatpush1.msra.mxu0 0.0
    %3894 = vmatprep.subr.mxu0 0.0
    %3895 = vmatpush1.msra.mxu0 0.0
    %3896 = vmatprep.subr.mxu0 0.0
    %3897 = vmatpush1.msra.mxu0 0.0
    %3898 = vmatprep.subr.mxu0 0.0
    %3899 = vmatpush1.msra.mxu0 0.0
    %3900 = vmatprep.subr.mxu0 0.0
    %3901 = vmatpush1.msra.mxu0 0.0
    %3902 = vmatprep.subr.mxu0 0.0
    %3903 = vmatpush1.msra.mxu0 0.0
    %3904 = vmatprep.subr.mxu0 0.0
    %3905 = vmatpush1.msra.mxu0 0.0
    %3906 = vmatprep.subr.mxu0 0.0
    %3907 = vmatpush1.msra.mxu0 0.0
    %3908 = vmatprep.subr.mxu0 0.0
    %3909 = vmatpush1.msra.mxu0 0.0
    %3910 = vmatprep.subr.mxu0 0.0
    %3911 = vmatpush1.msra.mxu0 0.0
    %3912 = vmatprep.subr.mxu0 0.0
    %3913 = vmatpush1.msra.mxu0 0.0
    %3914 = vmatprep.subr.mxu0 0.0
    %3915 = vmatpush1.msra.mxu0 0.0
    %3916 = vmatprep.subr.mxu0 0.0
    %3917 = vmatpush1.msra.mxu0 0.0
    %3918 = vmatprep.subr.mxu0 0.0
    %3919 = vmatpush1.msra.mxu0 0.0
    %3920 = vmatprep.subr.mxu0 0.0
    %3921 = vmatpush1.msra.mxu0 0.0
    %3922 = vmatprep.subr.mxu0 0.0
    %3923 = vmatpush1.msra.mxu0 0.0
    %3924 = vmatprep.subr.mxu0 0.0
    %3925 = vmatpush1.msra.mxu0 0.0
    %3926 = vmatprep.subr.mxu0 0.0
    %3927 = vmatpush1.msra.mxu0 0.0
    %3928 = vmatprep.subr.mxu0 0.0
    %3929 = vmatpush1.msra.mxu0 0.0
    %3930 = vmatprep.subr.mxu0 0.0
    %3931 = vmatpush1.msra.mxu0 0.0
    %3932 = vmatprep.mubr.f32.mxu0 0.0
    %3933 = vmatmul.mubr.f32.gmra.mrb[0].mxu0 %v3866
    %v3934 = vpop.f32.mrb[0].mxu0
    %v3935 = vadd.f32 0.0, %v3934
    %v3936 = vpop.f32.mrb[0].mxu0
    %3937 = vdwg.mxu0
    %v3939 = vsel %vm2686, %v3782, 0
    %3941 = vmatprep.subr.mxu0 0.0
    %3942 = vmatpush1.msra.mxu0 %v3774
    %3943 = vmatprep.subr.mxu0 0.0
    %3944 = vmatpush1.msra.mxu0 %v3779
    %3945 = vmatprep.subr.mxu0 0.0
    %3946 = vmatpush1.msra.mxu0 0.0
    %3947 = vmatprep.subr.mxu0 0.0
    %3948 = vmatpush1.msra.mxu0 0.0
    %3949 = vmatprep.subr.mxu0 0.0
    %3950 = vmatpush1.msra.mxu0 0.0
    %3951 = vmatprep.subr.mxu0 0.0
    %3952 = vmatpush1.msra.mxu0 0.0
    %3953 = vmatprep.subr.mxu0 0.0
    %3954 = vmatpush1.msra.mxu0 0.0
    %3955 = vmatprep.subr.mxu0 0.0
    %3956 = vmatpush1.msra.mxu0 0.0
    %3957 = vmatprep.subr.mxu0 0.0
    %3958 = vmatpush1.msra.mxu0 0.0
    %3959 = vmatprep.subr.mxu0 0.0
    %3960 = vmatpush1.msra.mxu0 0.0
    %3961 = vmatprep.subr.mxu0 0.0
    %3962 = vmatpush1.msra.mxu0 0.0
    %3963 = vmatprep.subr.mxu0 0.0
    %3964 = vmatpush1.msra.mxu0 0.0
    %3965 = vmatprep.subr.mxu0 0.0
    %3966 = vmatpush1.msra.mxu0 0.0
    %3967 = vmatprep.subr.mxu0 0.0
    %3968 = vmatpush1.msra.mxu0 0.0
    %3969 = vmatprep.subr.mxu0 0.0
    %3970 = vmatpush1.msra.mxu0 0.0
    %3971 = vmatprep.subr.mxu0 0.0
    %3972 = vmatpush1.msra.mxu0 0.0
    %3973 = vmatprep.subr.mxu0 0.0
    %3974 = vmatpush1.msra.mxu0 0.0
    %3975 = vmatprep.subr.mxu0 0.0
    %3976 = vmatpush1.msra.mxu0 0.0
    %3977 = vmatprep.subr.mxu0 0.0
    %3978 = vmatpush1.msra.mxu0 0.0
    %3979 = vmatprep.subr.mxu0 0.0
    %3980 = vmatpush1.msra.mxu0 0.0
    %3981 = vmatprep.subr.mxu0 0.0
    %3982 = vmatpush1.msra.mxu0 0.0
    %3983 = vmatprep.subr.mxu0 0.0
    %3984 = vmatpush1.msra.mxu0 0.0
    %3985 = vmatprep.subr.mxu0 0.0
    %3986 = vmatpush1.msra.mxu0 0.0
    %3987 = vmatprep.subr.mxu0 0.0
    %3988 = vmatpush1.msra.mxu0 0.0
    %3989 = vmatprep.subr.mxu0 0.0
    %3990 = vmatpush1.msra.mxu0 0.0
    %3991 = vmatprep.subr.mxu0 0.0
    %3992 = vmatpush1.msra.mxu0 0.0
    %3993 = vmatprep.subr.mxu0 0.0
    %3994 = vmatpush1.msra.mxu0 0.0
    %3995 = vmatprep.subr.mxu0 0.0
    %3996 = vmatpush1.msra.mxu0 0.0
    %3997 = vmatprep.subr.mxu0 0.0
    %3998 = vmatpush1.msra.mxu0 0.0
    %3999 = vmatprep.subr.mxu0 0.0
    %4000 = vmatpush1.msra.mxu0 0.0
    %4001 = vmatprep.subr.mxu0 0.0
    %4002 = vmatpush1.msra.mxu0 0.0
    %4003 = vmatprep.subr.mxu0 0.0
    %4004 = vmatpush1.msra.mxu0 0.0
    %4005 = vmatprep.mubr.f32.mxu0 0.0
    %4006 = vmatmul.mubr.f32.gmra.mrb[0].mxu0 %v3939
    %v4007 = vpop.f32.mrb[0].mxu0
    %v4008 = vadd.f32 %v3935, %v4007
    %v4009 = vpop.f32.mrb[0].mxu0
    %4010 = vdwg.mxu0
    %s4011 = scalar_lea.vmem %s45, 64
    %v4012 = vld [vmem:[%s4011] sm:$0xff]
    %v4013 = vld [vmem:[%s4011 + $0x8] sm:$0xff]
    %v4014 = vld [vmem:[%s4011 + $0x10] sm:$0xff]
    %v4015 = vld [vmem:[%s4011 + $0x18] sm:$0xff]
    %4016 = vmatprep.subr.mxu0 0.0
    %4017 = vmatpush1.msra.mxu0 %v4012
    %4018 = vmatprep.subr.mxu0 0.0
    %4019 = vmatpush1.msra.mxu0 %v4013
    %4020 = vmatprep.subr.mxu0 0.0
    %4021 = vmatpush1.msra.mxu0 %v4014
    %4022 = vmatprep.subr.mxu0 0.0
    %4023 = vmatpush1.msra.mxu0 %v4015
    %4024 = vmatprep.subr.mxu0 0.0
    %4025 = vmatpush1.msra.mxu0 0.0
    %4026 = vmatprep.subr.mxu0 0.0
    %4027 = vmatpush1.msra.mxu0 0.0
    %4028 = vmatprep.subr.mxu0 0.0
    %4029 = vmatpush1.msra.mxu0 0.0
    %4030 = vmatprep.subr.mxu0 0.0
    %4031 = vmatpush1.msra.mxu0 0.0
    %4032 = vmatprep.subr.mxu0 0.0
    %4033 = vmatpush1.msra.mxu0 0.0
    %4034 = vmatprep.subr.mxu0 0.0
    %4035 = vmatpush1.msra.mxu0 0.0
    %4036 = vmatprep.subr.mxu0 0.0
    %4037 = vmatpush1.msra.mxu0 0.0
    %4038 = vmatprep.subr.mxu0 0.0
    %4039 = vmatpush1.msra.mxu0 0.0
    %4040 = vmatprep.subr.mxu0 0.0
    %4041 = vmatpush1.msra.mxu0 0.0
    %4042 = vmatprep.subr.mxu0 0.0
    %4043 = vmatpush1.msra.mxu0 0.0
    %4044 = vmatprep.subr.mxu0 0.0
    %4045 = vmatpush1.msra.mxu0 0.0
    %4046 = vmatprep.subr.mxu0 0.0
    %4047 = vmatpush1.msra.mxu0 0.0
    %4048 = vmatprep.subr.mxu0 0.0
    %4049 = vmatpush1.msra.mxu0 0.0
    %4050 = vmatprep.subr.mxu0 0.0
    %4051 = vmatpush1.msra.mxu0 0.0
    %4052 = vmatprep.subr.mxu0 0.0
    %4053 = vmatpush1.msra.mxu0 0.0
    %4054 = vmatprep.subr.mxu0 0.0
    %4055 = vmatpush1.msra.mxu0 0.0
    %4056 = vmatprep.subr.mxu0 0.0
    %4057 = vmatpush1.msra.mxu0 0.0
    %4058 = vmatprep.subr.mxu0 0.0
    %4059 = vmatpush1.msra.mxu0 0.0
    %4060 = vmatprep.subr.mxu0 0.0
    %4061 = vmatpush1.msra.mxu0 0.0
    %4062 = vmatprep.subr.mxu0 0.0
    %4063 = vmatpush1.msra.mxu0 0.0
    %4064 = vmatprep.subr.mxu0 0.0
    %4065 = vmatpush1.msra.mxu0 0.0
    %4066 = vmatprep.subr.mxu0 0.0
    %4067 = vmatpush1.msra.mxu0 0.0
    %4068 = vmatprep.subr.mxu0 0.0
    %4069 = vmatpush1.msra.mxu0 0.0
    %4070 = vmatprep.subr.mxu0 0.0
    %4071 = vmatpush1.msra.mxu0 0.0
    %4072 = vmatprep.subr.mxu0 0.0
    %4073 = vmatpush1.msra.mxu0 0.0
    %4074 = vmatprep.subr.mxu0 0.0
    %4075 = vmatpush1.msra.mxu0 0.0
    %4076 = vmatprep.subr.mxu0 0.0
    %4077 = vmatpush1.msra.mxu0 0.0
    %4078 = vmatprep.subr.mxu0 0.0
    %4079 = vmatpush1.msra.mxu0 0.0
    %4080 = vmatprep.mubr.f32.mxu0 0.0
    %4081 = vmatmul.mubr.f32.gmra.mrb[0].mxu0 %v3542
    %v4082 = vpop.f32.mrb[0].mxu0
    %v4083 = vadd.f32 0.0, %v4082
    %v4084 = vpop.f32.mrb[0].mxu0
    %4085 = vmatprep.mubr.f32.mxu0 0.0
    %4086 = vmatmul.mubr.f32.gmra.mrb[0].mxu0 %v3545
    %v4087 = vpop.f32.mrb[0].mxu0
    %v4088 = vadd.f32 0.0, %v4087
    %v4089 = vpop.f32.mrb[0].mxu0
    %4090 = vdwg.mxu0
    %s4091 = scalar_lea.vmem %s43, 16
    %v4092 = vld [vmem:[%s4091] sm:$0xff]
    %v4094 = vsel %vm2686, %v4092, 0
    %4096 = vmatprep.subr.mxu0 0.0
    %4097 = vmatpush1.msra.mxu0 %v4083
    %4098 = vmatprep.subr.mxu0 0.0
    %4099 = vmatpush1.msra.mxu0 %v4088
    %4100 = vmatprep.subr.mxu0 0.0
    %4101 = vmatpush1.msra.mxu0 0.0
    %4102 = vmatprep.subr.mxu0 0.0
    %4103 = vmatpush1.msra.mxu0 0.0
    %4104 = vmatprep.subr.mxu0 0.0
    %4105 = vmatpush1.msra.mxu0 0.0
    %4106 = vmatprep.subr.mxu0 0.0
    %4107 = vmatpush1.msra.mxu0 0.0
    %4108 = vmatprep.subr.mxu0 0.0
    %4109 = vmatpush1.msra.mxu0 0.0
    %4110 = vmatprep.subr.mxu0 0.0
    %4111 = vmatpush1.msra.mxu0 0.0
    %4112 = vmatprep.subr.mxu0 0.0
    %4113 = vmatpush1.msra.mxu0 0.0
    %4114 = vmatprep.subr.mxu0 0.0
    %4115 = vmatpush1.msra.mxu0 0.0
    %4116 = vmatprep.subr.mxu0 0.0
    %4117 = vmatpush1.msra.mxu0 0.0
    %4118 = vmatprep.subr.mxu0 0.0
    %4119 = vmatpush1.msra.mxu0 0.0
    %4120 = vmatprep.subr.mxu0 0.0
    %4121 = vmatpush1.msra.mxu0 0.0
    %4122 = vmatprep.subr.mxu0 0.0
    %4123 = vmatpush1.msra.mxu0 0.0
    %4124 = vmatprep.subr.mxu0 0.0
    %4125 = vmatpush1.msra.mxu0 0.0
    %4126 = vmatprep.subr.mxu0 0.0
    %4127 = vmatpush1.msra.mxu0 0.0
    %4128 = vmatprep.subr.mxu0 0.0
    %4129 = vmatpush1.msra.mxu0 0.0
    %4130 = vmatprep.subr.mxu0 0.0
    %4131 = vmatpush1.msra.mxu0 0.0
    %4132 = vmatprep.subr.mxu0 0.0
    %4133 = vmatpush1.msra.mxu0 0.0
    %4134 = vmatprep.subr.mxu0 0.0
    %4135 = vmatpush1.msra.mxu0 0.0
    %4136 = vmatprep.subr.mxu0 0.0
    %4137 = vmatpush1.msra.mxu0 0.0
    %4138 = vmatprep.subr.mxu0 0.0
    %4139 = vmatpush1.msra.mxu0 0.0
    %4140 = vmatprep.subr.mxu0 0.0
    %4141 = vmatpush1.msra.mxu0 0.0
    %4142 = vmatprep.subr.mxu0 0.0
    %4143 = vmatpush1.msra.mxu0 0.0
    %4144 = vmatprep.subr.mxu0 0.0
    %4145 = vmatpush1.msra.mxu0 0.0
    %4146 = vmatprep.subr.mxu0 0.0
    %4147 = vmatpush1.msra.mxu0 0.0
    %4148 = vmatprep.subr.mxu0 0.0
    %4149 = vmatpush1.msra.mxu0 0.0
    %4150 = vmatprep.subr.mxu0 0.0
    %4151 = vmatpush1.msra.mxu0 0.0
    %4152 = vmatprep.subr.mxu0 0.0
    %4153 = vmatpush1.msra.mxu0 0.0
    %4154 = vmatprep.subr.mxu0 0.0
    %4155 = vmatpush1.msra.mxu0 0.0
    %4156 = vmatprep.subr.mxu0 0.0
    %4157 = vmatpush1.msra.mxu0 0.0
    %4158 = vmatprep.subr.mxu0 0.0
    %4159 = vmatpush1.msra.mxu0 0.0
    %4160 = vmatprep.mubr.f32.mxu0 0.0
    %4161 = vmatmul.mubr.f32.gmra.mrb[0].mxu0 %v4094
    %v4162 = vpop.f32.mrb[0].mxu0
    %v4163 = vadd.f32 0.0, %v4162
    %v4164 = vpop.f32.mrb[0].mxu0
    %4165 = vdwg.mxu0
    %v4166 = vadd.f32 %v4008, %v4163
    %v4167 = vld [vmem:[%s47] sm:$0x1]
    %v4169 = vlaneseq
    %v4170 = vshrl.u32 %v4169, 7
    %v4171 = vsub.s32 0, %v4170
    %v4172 = vrot.slane %v4167, %v4171
    %v4174 = vadd.f32 %v4166, %v4172
    %v4175 = vmax.f32 %v4174, 0.0
    %v4176 = vld [vmem:[%s51] sm:$0xf]
    %vm4177 = vcmask 31744
    %v4179 = vsel %vm4177, %v4175, 0
    %vm4181 = vcmask 1043456
    %v4183 = vsel %vm4181, %v4176, 0
    %4185 = vmatprep.subr.mxu0 0.0
    %4186 = vmatpush1.msra.mxu0 %v4183
    %4187 = vmatprep.subr.mxu0 0.0
    %4188 = vmatpush1.msra.mxu0 0.0
    %4189 = vmatprep.subr.mxu0 0.0
    %4190 = vmatpush1.msra.mxu0 0.0
    %4191 = vmatprep.subr.mxu0 0.0
    %4192 = vmatpush1.msra.mxu0 0.0
    %4193 = vmatprep.subr.mxu0 0.0
    %4194 = vmatpush1.msra.mxu0 0.0
    %4195 = vmatprep.subr.mxu0 0.0
    %4196 = vmatpush1.msra.mxu0 0.0
    %4197 = vmatprep.subr.mxu0 0.0
    %4198 = vmatpush1.msra.mxu0 0.0
    %4199 = vmatprep.subr.mxu0 0.0
    %4200 = vmatpush1.msra.mxu0 0.0
    %4201 = vmatprep.subr.mxu0 0.0
    %4202 = vmatpush1.msra.mxu0 0.0
    %4203 = vmatprep.subr.mxu0 0.0
    %4204 = vmatpush1.msra.mxu0 0.0
    %4205 = vmatprep.subr.mxu0 0.0
    %4206 = vmatpush1.msra.mxu0 0.0
    %4207 = vmatprep.subr.mxu0 0.0
    %4208 = vmatpush1.msra.mxu0 0.0
    %4209 = vmatprep.subr.mxu0 0.0
    %4210 = vmatpush1.msra.mxu0 0.0
    %4211 = vmatprep.subr.mxu0 0.0
    %4212 = vmatpush1.msra.mxu0 0.0
    %4213 = vmatprep.subr.mxu0 0.0
    %4214 = vmatpush1.msra.mxu0 0.0
    %4215 = vmatprep.subr.mxu0 0.0
    %4216 = vmatpush1.msra.mxu0 0.0
    %4217 = vmatprep.subr.mxu0 0.0
    %4218 = vmatpush1.msra.mxu0 0.0
    %4219 = vmatprep.subr.mxu0 0.0
    %4220 = vmatpush1.msra.mxu0 0.0
    %4221 = vmatprep.subr.mxu0 0.0
    %4222 = vmatpush1.msra.mxu0 0.0
    %4223 = vmatprep.subr.mxu0 0.0
    %4224 = vmatpush1.msra.mxu0 0.0
    %4225 = vmatprep.subr.mxu0 0.0
    %4226 = vmatpush1.msra.mxu0 0.0
    %4227 = vmatprep.subr.mxu0 0.0
    %4228 = vmatpush1.msra.mxu0 0.0
    %4229 = vmatprep.subr.mxu0 0.0
    %4230 = vmatpush1.msra.mxu0 0.0
    %4231 = vmatprep.subr.mxu0 0.0
    %4232 = vmatpush1.msra.mxu0 0.0
    %4233 = vmatprep.subr.mxu0 0.0
    %4234 = vmatpush1.msra.mxu0 0.0
    %4235 = vmatprep.subr.mxu0 0.0
    %4236 = vmatpush1.msra.mxu0 0.0
    %4237 = vmatprep.subr.mxu0 0.0
    %4238 = vmatpush1.msra.mxu0 0.0
    %4239 = vmatprep.subr.mxu0 0.0
    %4240 = vmatpush1.msra.mxu0 0.0
    %4241 = vmatprep.subr.mxu0 0.0
    %4242 = vmatpush1.msra.mxu0 0.0
    %4243 = vmatprep.subr.mxu0 0.0
    %4244 = vmatpush1.msra.mxu0 0.0
    %4245 = vmatprep.subr.mxu0 0.0
    %4246 = vmatpush1.msra.mxu0 0.0
    %4247 = vmatprep.subr.mxu0 0.0
    %4248 = vmatpush1.msra.mxu0 0.0
    %4249 = vmatprep.mubr.f32.mxu0 0.0
    %4250 = vmatmul.mubr.f32.gmra.mrb[0].mxu0 %v4179
    %v4251 = vpop.f32.mrb[0].mxu0
    %v4252 = vadd.f32 0.0, %v4251
    %v4253 = vpop.f32.mrb[0].mxu0
    %4254 = vdwg.mxu0
    %v4255 = vld [vmem:[%s49] sm:$0xff]
    %s4256 = scalar_lea.vmem %s51, 4
    %v4257 = vld [vmem:[%s4256] sm:$0xf]
    %v4259 = vsel %vm4181, %v4257, 0
    %4261 = vmatprep.subr.mxu0 0.0
    %4262 = vmatpush1.msra.mxu0 %v4259
    %4263 = vmatprep.subr.mxu0 0.0
    %4264 = vmatpush1.msra.mxu0 0.0
    %4265 = vmatprep.subr.mxu0 0.0
    %4266 = vmatpush1.msra.mxu0 0.0
    %4267 = vmatprep.subr.mxu0 0.0
    %4268 = vmatpush1.msra.mxu0 0.0
    %4269 = vmatprep.subr.mxu0 0.0
    %4270 = vmatpush1.msra.mxu0 0.0
    %4271 = vmatprep.subr.mxu0 0.0
    %4272 = vmatpush1.msra.mxu0 0.0
    %4273 = vmatprep.subr.mxu0 0.0
    %4274 = vmatpush1.msra.mxu0 0.0
    %4275 = vmatprep.subr.mxu0 0.0
    %4276 = vmatpush1.msra.mxu0 0.0
    %4277 = vmatprep.subr.mxu0 0.0
    %4278 = vmatpush1.msra.mxu0 0.0
    %4279 = vmatprep.subr.mxu0 0.0
    %4280 = vmatpush1.msra.mxu0 0.0
    %4281 = vmatprep.subr.mxu0 0.0
    %4282 = vmatpush1.msra.mxu0 0.0
    %4283 = vmatprep.subr.mxu0 0.0
    %4284 = vmatpush1.msra.mxu0 0.0
    %4285 = vmatprep.subr.mxu0 0.0
    %4286 = vmatpush1.msra.mxu0 0.0
    %4287 = vmatprep.subr.mxu0 0.0
    %4288 = vmatpush1.msra.mxu0 0.0
    %4289 = vmatprep.subr.mxu0 0.0
    %4290 = vmatpush1.msra.mxu0 0.0
    %4291 = vmatprep.subr.mxu0 0.0
    %4292 = vmatpush1.msra.mxu0 0.0
    %4293 = vmatprep.subr.mxu0 0.0
    %4294 = vmatpush1.msra.mxu0 0.0
    %4295 = vmatprep.subr.mxu0 0.0
    %4296 = vmatpush1.msra.mxu0 0.0
    %4297 = vmatprep.subr.mxu0 0.0
    %4298 = vmatpush1.msra.mxu0 0.0
    %4299 = vmatprep.subr.mxu0 0.0
    %4300 = vmatpush1.msra.mxu0 0.0
    %4301 = vmatprep.subr.mxu0 0.0
    %4302 = vmatpush1.msra.mxu0 0.0
    %4303 = vmatprep.subr.mxu0 0.0
    %4304 = vmatpush1.msra.mxu0 0.0
    %4305 = vmatprep.subr.mxu0 0.0
    %4306 = vmatpush1.msra.mxu0 0.0
    %4307 = vmatprep.subr.mxu0 0.0
    %4308 = vmatpush1.msra.mxu0 0.0
    %4309 = vmatprep.subr.mxu0 0.0
    %4310 = vmatpush1.msra.mxu0 0.0
    %4311 = vmatprep.subr.mxu0 0.0
    %4312 = vmatpush1.msra.mxu0 0.0
    %4313 = vmatprep.subr.mxu0 0.0
    %4314 = vmatpush1.msra.mxu0 0.0
    %4315 = vmatprep.subr.mxu0 0.0
    %4316 = vmatpush1.msra.mxu0 0.0
    %4317 = vmatprep.subr.mxu0 0.0
    %4318 = vmatpush1.msra.mxu0 0.0
    %4319 = vmatprep.subr.mxu0 0.0
    %4320 = vmatpush1.msra.mxu0 0.0
    %4321 = vmatprep.subr.mxu0 0.0
    %4322 = vmatpush1.msra.mxu0 0.0
    %4323 = vmatprep.subr.mxu0 0.0
    %4324 = vmatpush1.msra.mxu0 0.0
    %4325 = vmatprep.mubr.f32.mxu0 0.0
    %4326 = vmatmul.mubr.f32.gmra.mrb[0].mxu0 %v4179
    %v4327 = vpop.f32.mrb[0].mxu0
    %v4328 = vadd.f32 0.0, %v4327
    %v4329 = vpop.f32.mrb[0].mxu0
    %4330 = vdwg.mxu0
    %s4331 = scalar_lea.vmem %s49, 8
    %v4332 = vld [vmem:[%s4331] sm:$0xff]
    %vm4333 = vcmask 64512
    %v4335 = vsel %vm4333, %v4332, 0
    %4337 = vmatprep.subr.mxu0 0.0
    %4338 = vmatpush1.msra.mxu0 %v4328
    %4339 = vmatprep.subr.mxu0 0.0
    %4340 = vmatpush1.msra.mxu0 0.0
    %4341 = vmatprep.subr.mxu0 0.0
    %4342 = vmatpush1.msra.mxu0 0.0
    %4343 = vmatprep.subr.mxu0 0.0
    %4344 = vmatpush1.msra.mxu0 0.0
    %4345 = vmatprep.subr.mxu0 0.0
    %4346 = vmatpush1.msra.mxu0 0.0
    %4347 = vmatprep.subr.mxu0 0.0
    %4348 = vmatpush1.msra.mxu0 0.0
    %4349 = vmatprep.subr.mxu0 0.0
    %4350 = vmatpush1.msra.mxu0 0.0
    %4351 = vmatprep.subr.mxu0 0.0
    %4352 = vmatpush1.msra.mxu0 0.0
    %4353 = vmatprep.subr.mxu0 0.0
    %4354 = vmatpush1.msra.mxu0 0.0
    %4355 = vmatprep.subr.mxu0 0.0
    %4356 = vmatpush1.msra.mxu0 0.0
    %4357 = vmatprep.subr.mxu0 0.0
    %4358 = vmatpush1.msra.mxu0 0.0
    %4359 = vmatprep.subr.mxu0 0.0
    %4360 = vmatpush1.msra.mxu0 0.0
    %4361 = vmatprep.subr.mxu0 0.0
    %4362 = vmatpush1.msra.mxu0 0.0
    %4363 = vmatprep.subr.mxu0 0.0
    %4364 = vmatpush1.msra.mxu0 0.0
    %4365 = vmatprep.subr.mxu0 0.0
    %4366 = vmatpush1.msra.mxu0 0.0
    %4367 = vmatprep.subr.mxu0 0.0
    %4368 = vmatpush1.msra.mxu0 0.0
    %4369 = vmatprep.subr.mxu0 0.0
    %4370 = vmatpush1.msra.mxu0 0.0
    %4371 = vmatprep.subr.mxu0 0.0
    %4372 = vmatpush1.msra.mxu0 0.0
    %4373 = vmatprep.subr.mxu0 0.0
    %4374 = vmatpush1.msra.mxu0 0.0
    %4375 = vmatprep.subr.mxu0 0.0
    %4376 = vmatpush1.msra.mxu0 0.0
    %4377 = vmatprep.subr.mxu0 0.0
    %4378 = vmatpush1.msra.mxu0 0.0
    %4379 = vmatprep.subr.mxu0 0.0
    %4380 = vmatpush1.msra.mxu0 0.0
    %4381 = vmatprep.subr.mxu0 0.0
    %4382 = vmatpush1.msra.mxu0 0.0
    %4383 = vmatprep.subr.mxu0 0.0
    %4384 = vmatpush1.msra.mxu0 0.0
    %4385 = vmatprep.subr.mxu0 0.0
    %4386 = vmatpush1.msra.mxu0 0.0
    %4387 = vmatprep.subr.mxu0 0.0
    %4388 = vmatpush1.msra.mxu0 0.0
    %4389 = vmatprep.subr.mxu0 0.0
    %4390 = vmatpush1.msra.mxu0 0.0
    %4391 = vmatprep.subr.mxu0 0.0
    %4392 = vmatpush1.msra.mxu0 0.0
    %4393 = vmatprep.subr.mxu0 0.0
    %4394 = vmatpush1.msra.mxu0 0.0
    %4395 = vmatprep.subr.mxu0 0.0
    %4396 = vmatpush1.msra.mxu0 0.0
    %4397 = vmatprep.subr.mxu0 0.0
    %4398 = vmatpush1.msra.mxu0 0.0
    %4399 = vmatprep.subr.mxu0 0.0
    %4400 = vmatpush1.msra.mxu0 0.0
    %4401 = vmatprep.mubr.f32.mxu0 0.0
    %4402 = vmatmul.mubr.f32.gmra.mrb[0].mxu0 %v4335
    %v4403 = vpop.f32.mrb[0].mxu0
    %v4404 = vadd.f32 0.0, %v4403
    %v4405 = vpop.f32.mrb[0].mxu0
    %4406 = vdwg.mxu0
    %v4408 = vsel %vm4333, %v4255, 0
    %4410 = vmatprep.subr.mxu0 0.0
    %4411 = vmatpush1.msra.mxu0 %v4252
    %4412 = vmatprep.subr.mxu0 0.0
    %4413 = vmatpush1.msra.mxu0 0.0
    %4414 = vmatprep.subr.mxu0 0.0
    %4415 = vmatpush1.msra.mxu0 0.0
    %4416 = vmatprep.subr.mxu0 0.0
    %4417 = vmatpush1.msra.mxu0 0.0
    %4418 = vmatprep.subr.mxu0 0.0
    %4419 = vmatpush1.msra.mxu0 0.0
    %4420 = vmatprep.subr.mxu0 0.0
    %4421 = vmatpush1.msra.mxu0 0.0
    %4422 = vmatprep.subr.mxu0 0.0
    %4423 = vmatpush1.msra.mxu0 0.0
    %4424 = vmatprep.subr.mxu0 0.0
    %4425 = vmatpush1.msra.mxu0 0.0
    %4426 = vmatprep.subr.mxu0 0.0
    %4427 = vmatpush1.msra.mxu0 0.0
    %4428 = vmatprep.subr.mxu0 0.0
    %4429 = vmatpush1.msra.mxu0 0.0
    %4430 = vmatprep.subr.mxu0 0.0
    %4431 = vmatpush1.msra.mxu0 0.0
    %4432 = vmatprep.subr.mxu0 0.0
    %4433 = vmatpush1.msra.mxu0 0.0
    %4434 = vmatprep.subr.mxu0 0.0
    %4435 = vmatpush1.msra.mxu0 0.0
    %4436 = vmatprep.subr.mxu0 0.0
    %4437 = vmatpush1.msra.mxu0 0.0
    %4438 = vmatprep.subr.mxu0 0.0
    %4439 = vmatpush1.msra.mxu0 0.0
    %4440 = vmatprep.subr.mxu0 0.0
    %4441 = vmatpush1.msra.mxu0 0.0
    %4442 = vmatprep.subr.mxu0 0.0
    %4443 = vmatpush1.msra.mxu0 0.0
    %4444 = vmatprep.subr.mxu0 0.0
    %4445 = vmatpush1.msra.mxu0 0.0
    %4446 = vmatprep.subr.mxu0 0.0
    %4447 = vmatpush1.msra.mxu0 0.0
    %4448 = vmatprep.subr.mxu0 0.0
    %4449 = vmatpush1.msra.mxu0 0.0
    %4450 = vmatprep.subr.mxu0 0.0
    %4451 = vmatpush1.msra.mxu0 0.0
    %4452 = vmatprep.subr.mxu0 0.0
    %4453 = vmatpush1.msra.mxu0 0.0
    %4454 = vmatprep.subr.mxu0 0.0
    %4455 = vmatpush1.msra.mxu0 0.0
    %4456 = vmatprep.subr.mxu0 0.0
    %4457 = vmatpush1.msra.mxu0 0.0
    %4458 = vmatprep.subr.mxu0 0.0
    %4459 = vmatpush1.msra.mxu0 0.0
    %4460 = vmatprep.subr.mxu0 0.0
    %4461 = vmatpush1.msra.mxu0 0.0
    %4462 = vmatprep.subr.mxu0 0.0
    %4463 = vmatpush1.msra.mxu0 0.0
    %4464 = vmatprep.subr.mxu0 0.0
    %4465 = vmatpush1.msra.mxu0 0.0
    %4466 = vmatprep.subr.mxu0 0.0
    %4467 = vmatpush1.msra.mxu0 0.0
    %4468 = vmatprep.subr.mxu0 0.0
    %4469 = vmatpush1.msra.mxu0 0.0
    %4470 = vmatprep.subr.mxu0 0.0
    %4471 = vmatpush1.msra.mxu0 0.0
    %4472 = vmatprep.subr.mxu0 0.0
    %4473 = vmatpush1.msra.mxu0 0.0
    %4474 = vmatprep.mubr.f32.mxu0 0.0
    %4475 = vmatmul.mubr.f32.gmra.mrb[0].mxu0 %v4408
    %v4476 = vpop.f32.mrb[0].mxu0
    %v4477 = vadd.f32 %v4404, %v4476
    %v4478 = vpop.f32.mrb[0].mxu0
    %4479 = vdwg.mxu0
    %s4480 = scalar_lea.vmem %s51, 8
    %v4481 = vld [vmem:[%s4480] sm:$0xf]
    %v4483 = vsel %vm4181, %v4481, 0
    %4485 = vmatprep.subr.mxu0 0.0
    %4486 = vmatpush1.msra.mxu0 %v4483
    %4487 = vmatprep.subr.mxu0 0.0
    %4488 = vmatpush1.msra.mxu0 0.0
    %4489 = vmatprep.subr.mxu0 0.0
    %4490 = vmatpush1.msra.mxu0 0.0
    %4491 = vmatprep.subr.mxu0 0.0
    %4492 = vmatpush1.msra.mxu0 0.0
    %4493 = vmatprep.subr.mxu0 0.0
    %4494 = vmatpush1.msra.mxu0 0.0
    %4495 = vmatprep.subr.mxu0 0.0
    %4496 = vmatpush1.msra.mxu0 0.0
    %4497 = vmatprep.subr.mxu0 0.0
    %4498 = vmatpush1.msra.mxu0 0.0
    %4499 = vmatprep.subr.mxu0 0.0
    %4500 = vmatpush1.msra.mxu0 0.0
    %4501 = vmatprep.subr.mxu0 0.0
    %4502 = vmatpush1.msra.mxu0 0.0
    %4503 = vmatprep.subr.mxu0 0.0
    %4504 = vmatpush1.msra.mxu0 0.0
    %4505 = vmatprep.subr.mxu0 0.0
    %4506 = vmatpush1.msra.mxu0 0.0
    %4507 = vmatprep.subr.mxu0 0.0
    %4508 = vmatpush1.msra.mxu0 0.0
    %4509 = vmatprep.subr.mxu0 0.0
    %4510 = vmatpush1.msra.mxu0 0.0
    %4511 = vmatprep.subr.mxu0 0.0
    %4512 = vmatpush1.msra.mxu0 0.0
    %4513 = vmatprep.subr.mxu0 0.0
    %4514 = vmatpush1.msra.mxu0 0.0
    %4515 = vmatprep.subr.mxu0 0.0
    %4516 = vmatpush1.msra.mxu0 0.0
    %4517 = vmatprep.subr.mxu0 0.0
    %4518 = vmatpush1.msra.mxu0 0.0
    %4519 = vmatprep.subr.mxu0 0.0
    %4520 = vmatpush1.msra.mxu0 0.0
    %4521 = vmatprep.subr.mxu0 0.0
    %4522 = vmatpush1.msra.mxu0 0.0
    %4523 = vmatprep.subr.mxu0 0.0
    %4524 = vmatpush1.msra.mxu0 0.0
    %4525 = vmatprep.subr.mxu0 0.0
    %4526 = vmatpush1.msra.mxu0 0.0
    %4527 = vmatprep.subr.mxu0 0.0
    %4528 = vmatpush1.msra.mxu0 0.0
    %4529 = vmatprep.subr.mxu0 0.0
    %4530 = vmatpush1.msra.mxu0 0.0
    %4531 = vmatprep.subr.mxu0 0.0
    %4532 = vmatpush1.msra.mxu0 0.0
    %4533 = vmatprep.subr.mxu0 0.0
    %4534 = vmatpush1.msra.mxu0 0.0
    %4535 = vmatprep.subr.mxu0 0.0
    %4536 = vmatpush1.msra.mxu0 0.0
    %4537 = vmatprep.subr.mxu0 0.0
    %4538 = vmatpush1.msra.mxu0 0.0
    %4539 = vmatprep.subr.mxu0 0.0
    %4540 = vmatpush1.msra.mxu0 0.0
    %4541 = vmatprep.subr.mxu0 0.0
    %4542 = vmatpush1.msra.mxu0 0.0
    %4543 = vmatprep.subr.mxu0 0.0
    %4544 = vmatpush1.msra.mxu0 0.0
    %4545 = vmatprep.subr.mxu0 0.0
    %4546 = vmatpush1.msra.mxu0 0.0
    %4547 = vmatprep.subr.mxu0 0.0
    %4548 = vmatpush1.msra.mxu0 0.0
    %4549 = vmatprep.mubr.f32.mxu0 0.0
    %4550 = vmatmul.mubr.f32.gmra.mrb[0].mxu0 %v4179
    %v4551 = vpop.f32.mrb[0].mxu0
    %v4552 = vadd.f32 0.0, %v4551
    %v4553 = vpop.f32.mrb[0].mxu0
    %4554 = vdwg.mxu0
    %s4555 = scalar_lea.vmem %s49, 16
    %v4556 = vld [vmem:[%s4555] sm:$0xff]
    %v4558 = vsel %vm4333, %v4556, 0
    %4560 = vmatprep.subr.mxu0 0.0
    %4561 = vmatpush1.msra.mxu0 %v4552
    %4562 = vmatprep.subr.mxu0 0.0
    %4563 = vmatpush1.msra.mxu0 0.0
    %4564 = vmatprep.subr.mxu0 0.0
    %4565 = vmatpush1.msra.mxu0 0.0
    %4566 = vmatprep.subr.mxu0 0.0
    %4567 = vmatpush1.msra.mxu0 0.0
    %4568 = vmatprep.subr.mxu0 0.0
    %4569 = vmatpush1.msra.mxu0 0.0
    %4570 = vmatprep.subr.mxu0 0.0
    %4571 = vmatpush1.msra.mxu0 0.0
    %4572 = vmatprep.subr.mxu0 0.0
    %4573 = vmatpush1.msra.mxu0 0.0
    %4574 = vmatprep.subr.mxu0 0.0
    %4575 = vmatpush1.msra.mxu0 0.0
    %4576 = vmatprep.subr.mxu0 0.0
    %4577 = vmatpush1.msra.mxu0 0.0
    %4578 = vmatprep.subr.mxu0 0.0
    %4579 = vmatpush1.msra.mxu0 0.0
    %4580 = vmatprep.subr.mxu0 0.0
    %4581 = vmatpush1.msra.mxu0 0.0
    %4582 = vmatprep.subr.mxu0 0.0
    %4583 = vmatpush1.msra.mxu0 0.0
    %4584 = vmatprep.subr.mxu0 0.0
    %4585 = vmatpush1.msra.mxu0 0.0
    %4586 = vmatprep.subr.mxu0 0.0
    %4587 = vmatpush1.msra.mxu0 0.0
    %4588 = vmatprep.subr.mxu0 0.0
    %4589 = vmatpush1.msra.mxu0 0.0
    %4590 = vmatprep.subr.mxu0 0.0
    %4591 = vmatpush1.msra.mxu0 0.0
    %4592 = vmatprep.subr.mxu0 0.0
    %4593 = vmatpush1.msra.mxu0 0.0
    %4594 = vmatprep.subr.mxu0 0.0
    %4595 = vmatpush1.msra.mxu0 0.0
    %4596 = vmatprep.subr.mxu0 0.0
    %4597 = vmatpush1.msra.mxu0 0.0
    %4598 = vmatprep.subr.mxu0 0.0
    %4599 = vmatpush1.msra.mxu0 0.0
    %4600 = vmatprep.subr.mxu0 0.0
    %4601 = vmatpush1.msra.mxu0 0.0
    %4602 = vmatprep.subr.mxu0 0.0
    %4603 = vmatpush1.msra.mxu0 0.0
    %4604 = vmatprep.subr.mxu0 0.0
    %4605 = vmatpush1.msra.mxu0 0.0
    %4606 = vmatprep.subr.mxu0 0.0
    %4607 = vmatpush1.msra.mxu0 0.0
    %4608 = vmatprep.subr.mxu0 0.0
    %4609 = vmatpush1.msra.mxu0 0.0
    %4610 = vmatprep.subr.mxu0 0.0
    %4611 = vmatpush1.msra.mxu0 0.0
    %4612 = vmatprep.subr.mxu0 0.0
    %4613 = vmatpush1.msra.mxu0 0.0
    %4614 = vmatprep.subr.mxu0 0.0
    %4615 = vmatpush1.msra.mxu0 0.0
    %4616 = vmatprep.subr.mxu0 0.0
    %4617 = vmatpush1.msra.mxu0 0.0
    %4618 = vmatprep.subr.mxu0 0.0
    %4619 = vmatpush1.msra.mxu0 0.0
    %4620 = vmatprep.subr.mxu0 0.0
    %4621 = vmatpush1.msra.mxu0 0.0
    %4622 = vmatprep.subr.mxu0 0.0
    %4623 = vmatpush1.msra.mxu0 0.0
    %4624 = vmatprep.mubr.f32.mxu0 0.0
    %4625 = vmatmul.mubr.f32.gmra.mrb[0].mxu0 %v4558
    %v4626 = vpop.f32.mrb[0].mxu0
    %v4627 = vadd.f32 0.0, %v4626
    %v4628 = vpop.f32.mrb[0].mxu0
    %4629 = vdwg.mxu0
    %v4630 = vadd.f32 %v4477, %v4627
    %v4631 = vld [vmem:[%s53] sm:$0x1]
    %v4633 = vlaneseq
    %v4634 = vshrl.u32 %v4633, 7
    %v4635 = vsub.s32 0, %v4634
    %v4636 = vrot.slane %v4631, %v4635
    %v4638 = vadd.f32 %v4630, %v4636
    %v4639 = vmax.f32 %v4638, 0.0
    %v4640 = vld [vmem:[%s57] sm:$0xf]
    %v4642 = vsel %vm4177, %v4639, 0
    %v4645 = vsel %vm4181, %v4640, 0
    %4647 = vmatprep.subr.mxu0 0.0
    %4648 = vmatpush1.msra.mxu0 %v4645
    %4649 = vmatprep.subr.mxu0 0.0
    %4650 = vmatpush1.msra.mxu0 0.0
    %4651 = vmatprep.subr.mxu0 0.0
    %4652 = vmatpush1.msra.mxu0 0.0
    %4653 = vmatprep.subr.mxu0 0.0
    %4654 = vmatpush1.msra.mxu0 0.0
    %4655 = vmatprep.subr.mxu0 0.0
    %4656 = vmatpush1.msra.mxu0 0.0
    %4657 = vmatprep.subr.mxu0 0.0
    %4658 = vmatpush1.msra.mxu0 0.0
    %4659 = vmatprep.subr.mxu0 0.0
    %4660 = vmatpush1.msra.mxu0 0.0
    %4661 = vmatprep.subr.mxu0 0.0
    %4662 = vmatpush1.msra.mxu0 0.0
    %4663 = vmatprep.subr.mxu0 0.0
    %4664 = vmatpush1.msra.mxu0 0.0
    %4665 = vmatprep.subr.mxu0 0.0
    %4666 = vmatpush1.msra.mxu0 0.0
    %4667 = vmatprep.subr.mxu0 0.0
    %4668 = vmatpush1.msra.mxu0 0.0
    %4669 = vmatprep.subr.mxu0 0.0
    %4670 = vmatpush1.msra.mxu0 0.0
    %4671 = vmatprep.subr.mxu0 0.0
    %4672 = vmatpush1.msra.mxu0 0.0
    %4673 = vmatprep.subr.mxu0 0.0
    %4674 = vmatpush1.msra.mxu0 0.0
    %4675 = vmatprep.subr.mxu0 0.0
    %4676 = vmatpush1.msra.mxu0 0.0
    %4677 = vmatprep.subr.mxu0 0.0
    %4678 = vmatpush1.msra.mxu0 0.0
    %4679 = vmatprep.subr.mxu0 0.0
    %4680 = vmatpush1.msra.mxu0 0.0
    %4681 = vmatprep.subr.mxu0 0.0
    %4682 = vmatpush1.msra.mxu0 0.0
    %4683 = vmatprep.subr.mxu0 0.0
    %4684 = vmatpush1.msra.mxu0 0.0
    %4685 = vmatprep.subr.mxu0 0.0
    %4686 = vmatpush1.msra.mxu0 0.0
    %4687 = vmatprep.subr.mxu0 0.0
    %4688 = vmatpush1.msra.mxu0 0.0
    %4689 = vmatprep.subr.mxu0 0.0
    %4690 = vmatpush1.msra.mxu0 0.0
    %4691 = vmatprep.subr.mxu0 0.0
    %4692 = vmatpush1.msra.mxu0 0.0
    %4693 = vmatprep.subr.mxu0 0.0
    %4694 = vmatpush1.msra.mxu0 0.0
    %4695 = vmatprep.subr.mxu0 0.0
    %4696 = vmatpush1.msra.mxu0 0.0
    %4697 = vmatprep.subr.mxu0 0.0
    %4698 = vmatpush1.msra.mxu0 0.0
    %4699 = vmatprep.subr.mxu0 0.0
    %4700 = vmatpush1.msra.mxu0 0.0
    %4701 = vmatprep.subr.mxu0 0.0
    %4702 = vmatpush1.msra.mxu0 0.0
    %4703 = vmatprep.subr.mxu0 0.0
    %4704 = vmatpush1.msra.mxu0 0.0
    %4705 = vmatprep.subr.mxu0 0.0
    %4706 = vmatpush1.msra.mxu0 0.0
    %4707 = vmatprep.subr.mxu0 0.0
    %4708 = vmatpush1.msra.mxu0 0.0
    %4709 = vmatprep.subr.mxu0 0.0
    %4710 = vmatpush1.msra.mxu0 0.0
    %4711 = vmatprep.mubr.f32.mxu0 0.0
    %4712 = vmatmul.mubr.f32.gmra.mrb[0].mxu0 %v4642
    %v4713 = vpop.f32.mrb[0].mxu0
    %v4714 = vadd.f32 0.0, %v4713
    %v4715 = vpop.f32.mrb[0].mxu0
    %4716 = vdwg.mxu0
    %v4717 = vld [vmem:[%s55] sm:$0xff]
    %s4718 = scalar_lea.vmem %s57, 4
    %v4719 = vld [vmem:[%s4718] sm:$0xf]
    %v4721 = vsel %vm4181, %v4719, 0
    %4723 = vmatprep.subr.mxu0 0.0
    %4724 = vmatpush1.msra.mxu0 %v4721
    %4725 = vmatprep.subr.mxu0 0.0
    %4726 = vmatpush1.msra.mxu0 0.0
    %4727 = vmatprep.subr.mxu0 0.0
    %4728 = vmatpush1.msra.mxu0 0.0
    %4729 = vmatprep.subr.mxu0 0.0
    %4730 = vmatpush1.msra.mxu0 0.0
    %4731 = vmatprep.subr.mxu0 0.0
    %4732 = vmatpush1.msra.mxu0 0.0
    %4733 = vmatprep.subr.mxu0 0.0
    %4734 = vmatpush1.msra.mxu0 0.0
    %4735 = vmatprep.subr.mxu0 0.0
    %4736 = vmatpush1.msra.mxu0 0.0
    %4737 = vmatprep.subr.mxu0 0.0
    %4738 = vmatpush1.msra.mxu0 0.0
    %4739 = vmatprep.subr.mxu0 0.0
    %4740 = vmatpush1.msra.mxu0 0.0
    %4741 = vmatprep.subr.mxu0 0.0
    %4742 = vmatpush1.msra.mxu0 0.0
    %4743 = vmatprep.subr.mxu0 0.0
    %4744 = vmatpush1.msra.mxu0 0.0
    %4745 = vmatprep.subr.mxu0 0.0
    %4746 = vmatpush1.msra.mxu0 0.0
    %4747 = vmatprep.subr.mxu0 0.0
    %4748 = vmatpush1.msra.mxu0 0.0
    %4749 = vmatprep.subr.mxu0 0.0
    %4750 = vmatpush1.msra.mxu0 0.0
    %4751 = vmatprep.subr.mxu0 0.0
    %4752 = vmatpush1.msra.mxu0 0.0
    %4753 = vmatprep.subr.mxu0 0.0
    %4754 = vmatpush1.msra.mxu0 0.0
    %4755 = vmatprep.subr.mxu0 0.0
    %4756 = vmatpush1.msra.mxu0 0.0
    %4757 = vmatprep.subr.mxu0 0.0
    %4758 = vmatpush1.msra.mxu0 0.0
    %4759 = vmatprep.subr.mxu0 0.0
    %4760 = vmatpush1.msra.mxu0 0.0
    %4761 = vmatprep.subr.mxu0 0.0
    %4762 = vmatpush1.msra.mxu0 0.0
    %4763 = vmatprep.subr.mxu0 0.0
    %4764 = vmatpush1.msra.mxu0 0.0
    %4765 = vmatprep.subr.mxu0 0.0
    %4766 = vmatpush1.msra.mxu0 0.0
    %4767 = vmatprep.subr.mxu0 0.0
    %4768 = vmatpush1.msra.mxu0 0.0
    %4769 = vmatprep.subr.mxu0 0.0
    %4770 = vmatpush1.msra.mxu0 0.0
    %4771 = vmatprep.subr.mxu0 0.0
    %4772 = vmatpush1.msra.mxu0 0.0
    %4773 = vmatprep.subr.mxu0 0.0
    %4774 = vmatpush1.msra.mxu0 0.0
    %4775 = vmatprep.subr.mxu0 0.0
    %4776 = vmatpush1.msra.mxu0 0.0
    %4777 = vmatprep.subr.mxu0 0.0
    %4778 = vmatpush1.msra.mxu0 0.0
    %4779 = vmatprep.subr.mxu0 0.0
    %4780 = vmatpush1.msra.mxu0 0.0
    %4781 = vmatprep.subr.mxu0 0.0
    %4782 = vmatpush1.msra.mxu0 0.0
    %4783 = vmatprep.subr.mxu0 0.0
    %4784 = vmatpush1.msra.mxu0 0.0
    %4785 = vmatprep.subr.mxu0 0.0
    %4786 = vmatpush1.msra.mxu0 0.0
    %4787 = vmatprep.mubr.f32.mxu0 0.0
    %4788 = vmatmul.mubr.f32.gmra.mrb[0].mxu0 %v4642
    %v4789 = vpop.f32.mrb[0].mxu0
    %v4790 = vadd.f32 0.0, %v4789
    %v4791 = vpop.f32.mrb[0].mxu0
    %4792 = vdwg.mxu0
    %s4793 = scalar_lea.vmem %s55, 8
    %v4794 = vld [vmem:[%s4793] sm:$0xff]
    %v4796 = vsel %vm4333, %v4794, 0
    %4798 = vmatprep.subr.mxu0 0.0
    %4799 = vmatpush1.msra.mxu0 %v4790
    %4800 = vmatprep.subr.mxu0 0.0
    %4801 = vmatpush1.msra.mxu0 0.0
    %4802 = vmatprep.subr.mxu0 0.0
    %4803 = vmatpush1.msra.mxu0 0.0
    %4804 = vmatprep.subr.mxu0 0.0
    %4805 = vmatpush1.msra.mxu0 0.0
    %4806 = vmatprep.subr.mxu0 0.0
    %4807 = vmatpush1.msra.mxu0 0.0
    %4808 = vmatprep.subr.mxu0 0.0
    %4809 = vmatpush1.msra.mxu0 0.0
    %4810 = vmatprep.subr.mxu0 0.0
    %4811 = vmatpush1.msra.mxu0 0.0
    %4812 = vmatprep.subr.mxu0 0.0
    %4813 = vmatpush1.msra.mxu0 0.0
    %4814 = vmatprep.subr.mxu0 0.0
    %4815 = vmatpush1.msra.mxu0 0.0
    %4816 = vmatprep.subr.mxu0 0.0
    %4817 = vmatpush1.msra.mxu0 0.0
    %4818 = vmatprep.subr.mxu0 0.0
    %4819 = vmatpush1.msra.mxu0 0.0
    %4820 = vmatprep.subr.mxu0 0.0
    %4821 = vmatpush1.msra.mxu0 0.0
    %4822 = vmatprep.subr.mxu0 0.0
    %4823 = vmatpush1.msra.mxu0 0.0
    %4824 = vmatprep.subr.mxu0 0.0
    %4825 = vmatpush1.msra.mxu0 0.0
    %4826 = vmatprep.subr.mxu0 0.0
    %4827 = vmatpush1.msra.mxu0 0.0
    %4828 = vmatprep.subr.mxu0 0.0
    %4829 = vmatpush1.msra.mxu0 0.0
    %4830 = vmatprep.subr.mxu0 0.0
    %4831 = vmatpush1.msra.mxu0 0.0
    %4832 = vmatprep.subr.mxu0 0.0
    %4833 = vmatpush1.msra.mxu0 0.0
    %4834 = vmatprep.subr.mxu0 0.0
    %4835 = vmatpush1.msra.mxu0 0.0
    %4836 = vmatprep.subr.mxu0 0.0
    %4837 = vmatpush1.msra.mxu0 0.0
    %4838 = vmatprep.subr.mxu0 0.0
    %4839 = vmatpush1.msra.mxu0 0.0
    %4840 = vmatprep.subr.mxu0 0.0
    %4841 = vmatpush1.msra.mxu0 0.0
    %4842 = vmatprep.subr.mxu0 0.0
    %4843 = vmatpush1.msra.mxu0 0.0
    %4844 = vmatprep.subr.mxu0 0.0
    %4845 = vmatpush1.msra.mxu0 0.0
    %4846 = vmatprep.subr.mxu0 0.0
    %4847 = vmatpush1.msra.mxu0 0.0
    %4848 = vmatprep.subr.mxu0 0.0
    %4849 = vmatpush1.msra.mxu0 0.0
    %4850 = vmatprep.subr.mxu0 0.0
    %4851 = vmatpush1.msra.mxu0 0.0
    %4852 = vmatprep.subr.mxu0 0.0
    %4853 = vmatpush1.msra.mxu0 0.0
    %4854 = vmatprep.subr.mxu0 0.0
    %4855 = vmatpush1.msra.mxu0 0.0
    %4856 = vmatprep.subr.mxu0 0.0
    %4857 = vmatpush1.msra.mxu0 0.0
    %4858 = vmatprep.subr.mxu0 0.0
    %4859 = vmatpush1.msra.mxu0 0.0
    %4860 = vmatprep.subr.mxu0 0.0
    %4861 = vmatpush1.msra.mxu0 0.0
    %4862 = vmatprep.mubr.f32.mxu0 0.0
    %4863 = vmatmul.mubr.f32.gmra.mrb[0].mxu0 %v4796
    %v4864 = vpop.f32.mrb[0].mxu0
    %v4865 = vadd.f32 0.0, %v4864
    %v4866 = vpop.f32.mrb[0].mxu0
    %4867 = vdwg.mxu0
    %v4869 = vsel %vm4333, %v4717, 0
    %4871 = vmatprep.subr.mxu0 0.0
    %4872 = vmatpush1.msra.mxu0 %v4714
    %4873 = vmatprep.subr.mxu0 0.0
    %4874 = vmatpush1.msra.mxu0 0.0
    %4875 = vmatprep.subr.mxu0 0.0
    %4876 = vmatpush1.msra.mxu0 0.0
    %4877 = vmatprep.subr.mxu0 0.0
    %4878 = vmatpush1.msra.mxu0 0.0
    %4879 = vmatprep.subr.mxu0 0.0
    %4880 = vmatpush1.msra.mxu0 0.0
    %4881 = vmatprep.subr.mxu0 0.0
    %4882 = vmatpush1.msra.mxu0 0.0
    %4883 = vmatprep.subr.mxu0 0.0
    %4884 = vmatpush1.msra.mxu0 0.0
    %4885 = vmatprep.subr.mxu0 0.0
    %4886 = vmatpush1.msra.mxu0 0.0
    %4887 = vmatprep.subr.mxu0 0.0
    %4888 = vmatpush1.msra.mxu0 0.0
    %4889 = vmatprep.subr.mxu0 0.0
    %4890 = vmatpush1.msra.mxu0 0.0
    %4891 = vmatprep.subr.mxu0 0.0
    %4892 = vmatpush1.msra.mxu0 0.0
    %4893 = vmatprep.subr.mxu0 0.0
    %4894 = vmatpush1.msra.mxu0 0.0
    %4895 = vmatprep.subr.mxu0 0.0
    %4896 = vmatpush1.msra.mxu0 0.0
    %4897 = vmatprep.subr.mxu0 0.0
    %4898 = vmatpush1.msra.mxu0 0.0
    %4899 = vmatprep.subr.mxu0 0.0
    %4900 = vmatpush1.msra.mxu0 0.0
    %4901 = vmatprep.subr.mxu0 0.0
    %4902 = vmatpush1.msra.mxu0 0.0
    %4903 = vmatprep.subr.mxu0 0.0
    %4904 = vmatpush1.msra.mxu0 0.0
    %4905 = vmatprep.subr.mxu0 0.0
    %4906 = vmatpush1.msra.mxu0 0.0
    %4907 = vmatprep.subr.mxu0 0.0
    %4908 = vmatpush1.msra.mxu0 0.0
    %4909 = vmatprep.subr.mxu0 0.0
    %4910 = vmatpush1.msra.mxu0 0.0
    %4911 = vmatprep.subr.mxu0 0.0
    %4912 = vmatpush1.msra.mxu0 0.0
    %4913 = vmatprep.subr.mxu0 0.0
    %4914 = vmatpush1.msra.mxu0 0.0
    %4915 = vmatprep.subr.mxu0 0.0
    %4916 = vmatpush1.msra.mxu0 0.0
    %4917 = vmatprep.subr.mxu0 0.0
    %4918 = vmatpush1.msra.mxu0 0.0
    %4919 = vmatprep.subr.mxu0 0.0
    %4920 = vmatpush1.msra.mxu0 0.0
    %4921 = vmatprep.subr.mxu0 0.0
    %4922 = vmatpush1.msra.mxu0 0.0
    %4923 = vmatprep.subr.mxu0 0.0
    %4924 = vmatpush1.msra.mxu0 0.0
    %4925 = vmatprep.subr.mxu0 0.0
    %4926 = vmatpush1.msra.mxu0 0.0
    %4927 = vmatprep.subr.mxu0 0.0
    %4928 = vmatpush1.msra.mxu0 0.0
    %4929 = vmatprep.subr.mxu0 0.0
    %4930 = vmatpush1.msra.mxu0 0.0
    %4931 = vmatprep.subr.mxu0 0.0
    %4932 = vmatpush1.msra.mxu0 0.0
    %4933 = vmatprep.subr.mxu0 0.0
    %4934 = vmatpush1.msra.mxu0 0.0
    %4935 = vmatprep.mubr.f32.mxu0 0.0
    %4936 = vmatmul.mubr.f32.gmra.mrb[0].mxu0 %v4869
    %v4937 = vpop.f32.mrb[0].mxu0
    %v4938 = vadd.f32 %v4865, %v4937
    %v4939 = vpop.f32.mrb[0].mxu0
    %4940 = vdwg.mxu0
    %s4941 = scalar_lea.vmem %s57, 8
    %v4942 = vld [vmem:[%s4941] sm:$0xf]
    %v4944 = vsel %vm4181, %v4942, 0
    %4946 = vmatprep.subr.mxu0 0.0
    %4947 = vmatpush1.msra.mxu0 %v4944
    %4948 = vmatprep.subr.mxu0 0.0
    %4949 = vmatpush1.msra.mxu0 0.0
    %4950 = vmatprep.subr.mxu0 0.0
    %4951 = vmatpush1.msra.mxu0 0.0
    %4952 = vmatprep.subr.mxu0 0.0
    %4953 = vmatpush1.msra.mxu0 0.0
    %4954 = vmatprep.subr.mxu0 0.0
    %4955 = vmatpush1.msra.mxu0 0.0
    %4956 = vmatprep.subr.mxu0 0.0
    %4957 = vmatpush1.msra.mxu0 0.0
    %4958 = vmatprep.subr.mxu0 0.0
    %4959 = vmatpush1.msra.mxu0 0.0
    %4960 = vmatprep.subr.mxu0 0.0
    %4961 = vmatpush1.msra.mxu0 0.0
    %4962 = vmatprep.subr.mxu0 0.0
    %4963 = vmatpush1.msra.mxu0 0.0
    %4964 = vmatprep.subr.mxu0 0.0
    %4965 = vmatpush1.msra.mxu0 0.0
    %4966 = vmatprep.subr.mxu0 0.0
    %4967 = vmatpush1.msra.mxu0 0.0
    %4968 = vmatprep.subr.mxu0 0.0
    %4969 = vmatpush1.msra.mxu0 0.0
    %4970 = vmatprep.subr.mxu0 0.0
    %4971 = vmatpush1.msra.mxu0 0.0
    %4972 = vmatprep.subr.mxu0 0.0
    %4973 = vmatpush1.msra.mxu0 0.0
    %4974 = vmatprep.subr.mxu0 0.0
    %4975 = vmatpush1.msra.mxu0 0.0
    %4976 = vmatprep.subr.mxu0 0.0
    %4977 = vmatpush1.msra.mxu0 0.0
    %4978 = vmatprep.subr.mxu0 0.0
    %4979 = vmatpush1.msra.mxu0 0.0
    %4980 = vmatprep.subr.mxu0 0.0
    %4981 = vmatpush1.msra.mxu0 0.0
    %4982 = vmatprep.subr.mxu0 0.0
    %4983 = vmatpush1.msra.mxu0 0.0
    %4984 = vmatprep.subr.mxu0 0.0
    %4985 = vmatpush1.msra.mxu0 0.0
    %4986 = vmatprep.subr.mxu0 0.0
    %4987 = vmatpush1.msra.mxu0 0.0
    %4988 = vmatprep.subr.mxu0 0.0
    %4989 = vmatpush1.msra.mxu0 0.0
    %4990 = vmatprep.subr.mxu0 0.0
    %4991 = vmatpush1.msra.mxu0 0.0
    %4992 = vmatprep.subr.mxu0 0.0
    %4993 = vmatpush1.msra.mxu0 0.0
    %4994 = vmatprep.subr.mxu0 0.0
    %4995 = vmatpush1.msra.mxu0 0.0
    %4996 = vmatprep.subr.mxu0 0.0
    %4997 = vmatpush1.msra.mxu0 0.0
    %4998 = vmatprep.subr.mxu0 0.0
    %4999 = vmatpush1.msra.mxu0 0.0
    %5000 = vmatprep.subr.mxu0 0.0
    %5001 = vmatpush1.msra.mxu0 0.0
    %5002 = vmatprep.subr.mxu0 0.0
    %5003 = vmatpush1.msra.mxu0 0.0
    %5004 = vmatprep.subr.mxu0 0.0
    %5005 = vmatpush1.msra.mxu0 0.0
    %5006 = vmatprep.subr.mxu0 0.0
    %5007 = vmatpush1.msra.mxu0 0.0
    %5008 = vmatprep.subr.mxu0 0.0
    %5009 = vmatpush1.msra.mxu0 0.0
    %5010 = vmatprep.mubr.f32.mxu0 0.0
    %5011 = vmatmul.mubr.f32.gmra.mrb[0].mxu0 %v4642
    %v5012 = vpop.f32.mrb[0].mxu0
    %v5013 = vadd.f32 0.0, %v5012
    %v5014 = vpop.f32.mrb[0].mxu0
    %5015 = vdwg.mxu0
    %s5016 = scalar_lea.vmem %s55, 16
    %v5017 = vld [vmem:[%s5016] sm:$0xff]
    %v5019 = vsel %vm4333, %v5017, 0
    %5021 = vmatprep.subr.mxu0 0.0
    %5022 = vmatpush1.msra.mxu0 %v5013
    %5023 = vmatprep.subr.mxu0 0.0
    %5024 = vmatpush1.msra.mxu0 0.0
    %5025 = vmatprep.subr.mxu0 0.0
    %5026 = vmatpush1.msra.mxu0 0.0
    %5027 = vmatprep.subr.mxu0 0.0
    %5028 = vmatpush1.msra.mxu0 0.0
    %5029 = vmatprep.subr.mxu0 0.0
    %5030 = vmatpush1.msra.mxu0 0.0
    %5031 = vmatprep.subr.mxu0 0.0
    %5032 = vmatpush1.msra.mxu0 0.0
    %5033 = vmatprep.subr.mxu0 0.0
    %5034 = vmatpush1.msra.mxu0 0.0
    %5035 = vmatprep.subr.mxu0 0.0
    %5036 = vmatpush1.msra.mxu0 0.0
    %5037 = vmatprep.subr.mxu0 0.0
    %5038 = vmatpush1.msra.mxu0 0.0
    %5039 = vmatprep.subr.mxu0 0.0
    %5040 = vmatpush1.msra.mxu0 0.0
    %5041 = vmatprep.subr.mxu0 0.0
    %5042 = vmatpush1.msra.mxu0 0.0
    %5043 = vmatprep.subr.mxu0 0.0
    %5044 = vmatpush1.msra.mxu0 0.0
    %5045 = vmatprep.subr.mxu0 0.0
    %5046 = vmatpush1.msra.mxu0 0.0
    %5047 = vmatprep.subr.mxu0 0.0
    %5048 = vmatpush1.msra.mxu0 0.0
    %5049 = vmatprep.subr.mxu0 0.0
    %5050 = vmatpush1.msra.mxu0 0.0
    %5051 = vmatprep.subr.mxu0 0.0
    %5052 = vmatpush1.msra.mxu0 0.0
    %5053 = vmatprep.subr.mxu0 0.0
    %5054 = vmatpush1.msra.mxu0 0.0
    %5055 = vmatprep.subr.mxu0 0.0
    %5056 = vmatpush1.msra.mxu0 0.0
    %5057 = vmatprep.subr.mxu0 0.0
    %5058 = vmatpush1.msra.mxu0 0.0
    %5059 = vmatprep.subr.mxu0 0.0
    %5060 = vmatpush1.msra.mxu0 0.0
    %5061 = vmatprep.subr.mxu0 0.0
    %5062 = vmatpush1.msra.mxu0 0.0
    %5063 = vmatprep.subr.mxu0 0.0
    %5064 = vmatpush1.msra.mxu0 0.0
    %5065 = vmatprep.subr.mxu0 0.0
    %5066 = vmatpush1.msra.mxu0 0.0
    %5067 = vmatprep.subr.mxu0 0.0
    %5068 = vmatpush1.msra.mxu0 0.0
    %5069 = vmatprep.subr.mxu0 0.0
    %5070 = vmatpush1.msra.mxu0 0.0
    %5071 = vmatprep.subr.mxu0 0.0
    %5072 = vmatpush1.msra.mxu0 0.0
    %5073 = vmatprep.subr.mxu0 0.0
    %5074 = vmatpush1.msra.mxu0 0.0
    %5075 = vmatprep.subr.mxu0 0.0
    %5076 = vmatpush1.msra.mxu0 0.0
    %5077 = vmatprep.subr.mxu0 0.0
    %5078 = vmatpush1.msra.mxu0 0.0
    %5079 = vmatprep.subr.mxu0 0.0
    %5080 = vmatpush1.msra.mxu0 0.0
    %5081 = vmatprep.subr.mxu0 0.0
    %5082 = vmatpush1.msra.mxu0 0.0
    %5083 = vmatprep.subr.mxu0 0.0
    %5084 = vmatpush1.msra.mxu0 0.0
    %5085 = vmatprep.mubr.f32.mxu0 0.0
    %5086 = vmatmul.mubr.f32.gmra.mrb[0].mxu0 %v5019
    %v5087 = vpop.f32.mrb[0].mxu0
    %v5088 = vadd.f32 0.0, %v5087
    %v5089 = vpop.f32.mrb[0].mxu0
    %5090 = vdwg.mxu0
    %v5091 = vadd.f32 %v4938, %v5088
    %v5092 = vld [vmem:[%s59] sm:$0x1]
    %v5094 = vlaneseq
    %v5095 = vshrl.u32 %v5094, 7
    %v5096 = vsub.s32 0, %v5095
    %v5097 = vrot.slane %v5092, %v5096
    %v5099 = vadd.f32 %v5091, %v5097
    %v5100 = vmax.f32 %v5099, 0.0
    %v5101 = vadd.f32 %v5100, %v3700
    %v5102 = vld [vmem:[%s61] sm:$0x1]
    %v5103 = vld [vmem:[%s63] sm:$0xf]
    %vm5104 = vcmask 27648
    %v5105 = vsel %vm5104, %v5101, -inf
    %5106 = vmax.xlane.f32.xlu0 %v5105
    %v5107 = vpop.xlane.xlu0 %5106
    %v5108 = vsel %vm4181, %v5107, -inf
    %v5109 = vrot.slane %v5108, 4
    %v5110 = vmax.f32 %v5108, %v5109
    %v5111 = vrot.slane %v5110, 2
    %v5112 = vmax.f32 %v5110, %v5111
    %v5113 = vrot.slane %v5112, 1
    %v5114 = vmax.f32 %v5112, %v5113
    %v5115 = vsub.f32 %v5101, %v5114
    %v5116 = vmul.f32 %v5115, 1.442695
    %v5117 = vpow.pop %v5116
    %v5118 = vsel %vm5104, %v5117, 0.0
    %5119 = vadd.xlane.f32.xlu0 %v5118
    %v5120 = vpop.xlane.xlu0 %5119
    %v5121 = vsel %vm4181, %v5120, 0.0
    %v5122 = vrot.slane %v5121, 4
    %v5123 = vadd.f32 %v5121, %v5122
    %v5124 = vrot.slane %v5123, 2
    %v5125 = vadd.f32 %v5123, %v5124
    %v5126 = vrot.slane %v5125, 1
    %v5127 = vadd.f32 %v5125, %v5126
    %v5128 = vrcp.pop %v5127
    %v5129 = vmul.f32 %v5117, %v5128
    %v5130 = vsel %vm5104, %v5129, 0.0
    %v5131 = vrot.slane %v5130, 4
    %v5132 = vadd.f32 %v5130, %v5131
    %v5133 = vrot.slane %v5132, 2
    %v5134 = vadd.f32 %v5132, %v5133
    %v5135 = vrot.slane %v5134, 1
    %v5136 = vadd.f32 %v5134, %v5135
    %5137 = vadd.xlane.f32.xlu0 %v5130
    %v5138 = vpop.xlane.xlu0 %5137
    %v5139 = vmul.f32 %v5136, %v5102
    %vm5140 = vcmask 24576
    %v5141 = vsel %vm5140, %v5139, 0.0
    %5142 = vadd.xlane.f32.xlu0 %v5141
    %v5143 = vpop.xlane.xlu0 %5142
    %v5144 = vmul.f32 %v5138, %v5103
    %vm5145 = vcmask 3072
    %v5146 = vsel %vm5145, %v5144, 0.0
    %v5147 = vrot.slane %v5146, 4
    %v5148 = vadd.f32 %v5146, %v5147
    %v5149 = vrot.slane %v5148, 2
    %v5150 = vadd.f32 %v5148, %v5149
    %v5151 = vrot.slane %v5150, 1
    %v5152 = vadd.f32 %v5150, %v5151
    %vm5153 = vcmask 0
    %5154 = vst.msk [vmem:[#allocation2] sm:$0x1] %vm5153, %v5143
    %5156 = vrot.lane.b32.xlu0 %v5152, 1
    %v5157 = vpop.permute.xlu0 %5156
    %vm5159 = vcmask 8200
    %5160 = vst.msk [vmem:[#allocation2] sm:$0x1] %vm5159, %v5157
    %vm5161 = vcmask 31748
    %v5162 = vsel %vm5161, %v5101, -inf
    %5163 = vmax.xlane.f32.xlu0 %v5162
    %v5164 = vpop.xlane.xlu0 %5163
    %vm5165 = vcmask 1047556
    %v5166 = vsel %vm5165, %v5164, -inf
    %v5167 = vrot.slane %v5166, 4
    %v5168 = vmax.f32 %v5166, %v5167
    %v5169 = vrot.slane %v5168, 2
    %v5170 = vmax.f32 %v5168, %v5169
    %v5171 = vrot.slane %v5170, 1
    %v5172 = vmax.f32 %v5170, %v5171
    %v5173 = vsub.f32 %v5101, %v5172
    %v5174 = vmul.f32 %v5173, 1.442695
    %v5175 = vpow.pop %v5174
    %v5176 = vsel %vm5161, %v5175, 0.0
    %5177 = vadd.xlane.f32.xlu0 %v5176
    %v5178 = vpop.xlane.xlu0 %5177
    %v5180 = vrot.slane %v5178, 4
    %v5182 = vsel %vm4181, %v5180, 0.0
    %v5183 = vrot.slane %v5182, 4
    %v5184 = vadd.f32 %v5182, %v5183
    %v5185 = vrot.slane %v5184, 2
    %v5186 = vadd.f32 %v5184, %v5185
    %v5187 = vrot.slane %v5186, 1
    %v5188 = vadd.f32 %v5186, %v5187
    %v5189 = vrcp.pop %v5188
    %v5190 = vmul.f32 %v5175, %v5189
    %v5192 = vrot.slane %v5190, 4
    %v5194 = vsel %vm5104, %v5192, 0.0
    %v5195 = vrot.slane %v5194, 4
    %v5196 = vadd.f32 %v5194, %v5195
    %v5197 = vrot.slane %v5196, 2
    %v5198 = vadd.f32 %v5196, %v5197
    %v5199 = vrot.slane %v5198, 1
    %v5200 = vadd.f32 %v5198, %v5199
    %v5201 = vsel %vm5161, %v5190, 0.0
    %5202 = vadd.xlane.f32.xlu0 %v5201
    %v5203 = vpop.xlane.xlu0 %5202
    %v5204 = vmul.f32 %v5200, %v5102
    %v5205 = vsel %vm5140, %v5204, 0.0
    %5206 = vadd.xlane.f32.xlu0 %v5205
    %v5207 = vpop.xlane.xlu0 %5206
    %v5209 = vrot.slane %v5103, 4
    %v5211 = vmul.f32 %v5203, %v5209
    %v5213 = vrot.slane %v5211, 4
    %v5215 = vsel %vm5145, %v5213, 0.0
    %v5216 = vrot.slane %v5215, 4
    %v5217 = vadd.f32 %v5215, %v5216
    %v5218 = vrot.slane %v5217, 2
    %v5219 = vadd.f32 %v5217, %v5218
    %v5220 = vrot.slane %v5219, 1
    %v5221 = vadd.f32 %v5219, %v5220
    %5222 = vst.msk [vmem:[#allocation2 + $0x1] sm:$0x1] %vm5153, %v5207
    %5224 = vrot.lane.b32.xlu0 %v5221, 1
    %v5225 = vpop.permute.xlu0 %5224
    %5227 = vst.msk [vmem:[#allocation2 + $0x1] sm:$0x1] %vm5159, %v5225
    // Predicated region
    $region130: #{planner_forward.1} parent=1 // pred_check
      _
    $region131: #{planner_forward.1} parent=1 // pred_check_branch
      %5229 = sbr.rel (0) target = $region133
    $region132: #{planner_forward.1} parent=1 // pred_region
      %s5231 = ssub.s32 32, 32
      %5232 = vsyncadd [#allocation3], %s5231
      %s5234 = sshll.u32 [#allocation2], 4
      %s5235 = int_to_ptr.vmem [resolvable:$true] %s5234
      %5237 = dma.vmem_to_hbm [thread:$0]  %s5235, 32, %s65, [#allocation3]
    $region133: #{planner_forward.1} parent=1 // pred_fallthru
      _
    // Predicated region
    $region134: #{planner_forward.1} parent=1 // pred_check
      _
    $region135: #{planner_forward.1} parent=1 // pred_check_branch
      %5239 = sbr.rel (0) target = $region137
    $region136: #{planner_forward.1} parent=1 // pred_region
      %5240 = dma.done [#allocation3], 32
    $region137: #{planner_forward.1} parent=1 // pred_fallthru
      _
    %5241 = vsyncpa [#allocation3], 1

</llo_original>
